<compile_context>
chip_gen: v5e
topology: v5e:2x2
jax: 0.10.0
libtpu: 0.0.40
codegen_flags: <defaults>
</compile_context>

<pallas_src>
import jax
import jax.numpy as jnp
import numpy as np
from jax.experimental import pallas as pl
from jax.experimental.pallas import tpu as pltpu

# ----------------------------- config (small) -------------------------------
B, T, S = 2, 8, 16          # batch, decoder seq, encoder seq
D_DEC, D_ENC = 64, 32       # decoder / encoder embed dims
NQ, NKV, HD = 4, 2, 16      # self-attn: query heads, kv heads (GQA), head dim
NC, HC = 2, 16              # cross-attn: heads, head dim
D_FF = 128                  # MLP intermediate dim
V = 32                      # target vocab size
C = 2                       # audio channels
N_LAYERS = 2
EPS = 1e-5
ROPE_MIN, ROPE_MAX = 1.0, 10000.0
NEG_INF = -1e30

QKV_W = NQ * HD + 2 * NKV * HD          # 128: fused [q | k | v] projection width
CA_W = NC * HC                          # 32: cross-attn q width
KV_W = 2 * CA_W                         # 64: fused cross [k | v] width
LOGITS_PAD = pl.cdiv(C * V, 128) * 128  # lane-dense logits output width (128)


# ------------------------------- Pallas kernel -------------------------------
def _decoder_stack_kernel(
    x_in_ref,        # (B*T, D)        f32  summed token embeddings
    enc_ref,         # (B*S, E)        f32  encoder output (flattened)
    self_bias_ref,   # (B*T, B*T)      f32  causal + batch-block-diagonal bias
    cross_bias_ref,  # (B*T, B*S)      f32  src_len + batch-block-diagonal bias
    rope_qkv_ref,    # (B*T, 2*QKV_W)  f32  [cos | sin]
    rope_cq_ref,     # (B*T, 2*CA_W)   f32  [cos | sin]
    rope_ckv_ref,    # (B*S, 2*KV_W)   f32  [cos | sin] (identity on V cols)
    p_qkv_ref,       # (QKV_W, QKV_W)  bf16 head-half swap matrix
    p_cq_ref,        # (CA_W, CA_W)    bf16
    p_ckv_ref,       # (KV_W, KV_W)    bf16
    final_norm_ref,  # (1, D)          f32
    logits_k_ref,    # (D, LOGITS_PAD) bf16 (zero-padded)
    norm_ref,        # (1, 3, D)       f32  [pre_sa, pre_ca, pre_mlp]   (per layer)
    w_qkv_ref,       # (1, D, QKV_W)   bf16 [Wq | Wk | Wv]              (per layer)
    w_sa_o_ref,      # (1, NQ*HD, D)   bf16                             (per layer)
    w_ca_q_ref,      # (1, D, CA_W)    bf16                             (per layer)
    w_ca_kv_ref,     # (1, E, KV_W)    bf16 [Wk | Wv]                   (per layer)
    w_ca_o_ref,      # (1, CA_W, D)    bf16                             (per layer)
    w_mlp_wi_ref,    # (1, D, 2*D_FF)  bf16 [gate | up]                 (per layer)
    w_mlp_wo_ref,    # (1, D_FF, D)    bf16                             (per layer)
    logits_out_ref,  # (B*T, LOGITS_PAD) f32  (written at last layer only)
    x_scratch,       # VMEM (B*T, D)   f32  residual stream, carried across layers
):
    l = pl.program_id(0)

    @pl.when(l == 0)
    def _():
        x_scratch[...] = x_in_ref[...].astype(jnp.float32)

    x = x_scratch[...]                                    # (B*T, D) f32

    def rms(val, w):
        var = jnp.mean(val * val, axis=-1, keepdims=True)
        return val * jax.lax.rsqrt(var + EPS) * w

    def mm(a, w):        # activation (f32) x bf16 weight -> bf16 MXU, f32 accum
        return jnp.dot(a.astype(w.dtype), w, preferred_element_type=jnp.float32)

    def mm_nt(a, bmat):  # a @ bmat.T without an explicit transpose (f32, accurate scores)
        return jax.lax.dot_general(a, bmat, (((1,), (1,)), ((), ())),
                                   preferred_element_type=jnp.float32)

    def attend(qh, kh, vh, bias):
        # scale = 1.0 (matches F.scaled_dot_product_attention(scale=1.0)).
        s = mm_nt(qh, kh) + bias
        m = jnp.max(s, axis=-1, keepdims=True)
        p = jnp.exp(s - m)
        # denom >= 1 always (the row max exponentiates to 1), so the approx
        # reciprocal is safe; fully-masked rows degrade to uniform attention.
        denom = jnp.sum(p, axis=-1, keepdims=True)
        pv = jnp.dot(p.astype(jnp.bfloat16), vh.astype(jnp.bfloat16),
                     preferred_element_type=jnp.float32)
        return pv * pl.reciprocal(denom, approx=True)

    norms = norm_ref[0]                                   # (3, D) f32

    # ------------------- self-attention (causal, GQA, batch-folded) ----------
    h = rms(x, norms[0])
    qkv = mm(h, w_qkv_ref[0])                             # (B*T, 128)
    rope = rope_qkv_ref[...]
    # lane-dense RoPE: x*cos + (x @ P)*sin  (V columns: cos=1, sin=0 -> identity)
    qkv = qkv * rope[:, :QKV_W] + mm(qkv, p_qkv_ref[...]) * rope[:, QKV_W:]
    q = qkv[:, :NQ * HD]
    k = qkv[:, NQ * HD:NQ * HD + NKV * HD]
    v = qkv[:, NQ * HD + NKV * HD:]

    sbias = self_bias_ref[...]
    groups = NQ // NKV
    sa_heads = []
    for n in range(NQ):                                   # static unrolled loop
        g = n // groups                                    # GQA: repeat_interleave
        sa_heads.append(attend(q[:, n * HD:(n + 1) * HD],
                               k[:, g * HD:(g + 1) * HD],
                               v[:, g * HD:(g + 1) * HD],
                               sbias))
    sa = jnp.concatenate(sa_heads, axis=-1)               # (B*T, NQ*HD)
    x = x + mm(sa, w_sa_o_ref[0])                         # single o-proj matmul

    # ------------- cross-attention (K/V projected + RoPE'd in-kernel) --------
    h = rms(x, norms[1])
    qc = mm(h, w_ca_q_ref[0])                             # (B*T, 32)
    ropec = rope_cq_ref[...]
    qc = qc * ropec[:, :CA_W] + mm(qc, p_cq_ref[...]) * ropec[:, CA_W:]

    kv = mm(enc_ref[...], w_ca_kv_ref[0])                 # (B*S, 64) = [K | V]
    ropekv = rope_ckv_ref[...]
    kv = kv * ropekv[:, :KV_W] + mm(kv, p_ckv_ref[...]) * ropekv[:, KV_W:]

    cbias = cross_bias_ref[...]
    ca_heads = []
    for n in range(NC):
        ca_heads.append(attend(qc[:, n * HC:(n + 1) * HC],
                               kv[:, n * HC:(n + 1) * HC],
                               kv[:, CA_W + n * HC:CA_W + (n + 1) * HC],
                               cbias))
    ca = jnp.concatenate(ca_heads, axis=-1)                # (B*T, NC*HC)
    x = x + mm(ca, w_ca_o_ref[0])

    # -------------------------- SiLU-gated MLP --------------------------------
    h = rms(x, norms[2])
    fused = mm(h, w_mlp_wi_ref[0])                         # (B*T, 2*D_FF)
    gate = fused[:, :D_FF]
    up = fused[:, D_FF:]
    x = x + mm(gate * jax.nn.sigmoid(gate) * up, w_mlp_wo_ref[0])

    x_scratch[...] = x

    # ---------------- epilogue: final RMSNorm + logits (lane-dense) ----------
    @pl.when(l == pl.num_programs(0) - 1)
    def _():
        hf = rms(x, final_norm_ref[0])
        logits_out_ref[...] = mm(hf, logits_k_ref[...])


def decoder_stack_pallas(x2d, enc2d, self_bias, cross_bias,
                         rope_qkv, rope_cq, rope_ckv,
                         p_qkv, p_cq, p_ckv,
                         final_norm, logits_k, packed):
    BT = x2d.shape[0]
    BS = enc2d.shape[0]
    L = packed["norm"].shape[0]

    cmap = lambda l: (0, 0)            # constants: DMA'd once (index unchanged)
    lmap = lambda l: (l, 0, 0)         # per-layer weights

    return pl.pallas_call(
        _decoder_stack_kernel,
        out_shape=jax.ShapeDtypeStruct((BT, LOGITS_PAD), jnp.float32),
        grid=(L,),
        in_specs=[
            pl.BlockSpec((BT, D_DEC), cmap),               # x_in
            pl.BlockSpec((BS, D_ENC), cmap),               # enc2d
            pl.BlockSpec((BT, BT), cmap),                  # self_bias
            pl.BlockSpec((BT, BS), cmap),                  # cross_bias
            pl.BlockSpec((BT, 2 * QKV_W), cmap),           # rope_qkv
            pl.BlockSpec((BT, 2 * CA_W), cmap),            # rope_cq
            pl.BlockSpec((BS, 2 * KV_W), cmap),            # rope_ckv
            pl.BlockSpec((QKV_W, QKV_W), cmap),            # p_qkv
            pl.BlockSpec((CA_W, CA_W), cmap),              # p_cq
            pl.BlockSpec((KV_W, KV_W), cmap),              # p_ckv
            pl.BlockSpec((1, D_DEC), cmap),                # final_norm
            pl.BlockSpec((D_DEC, LOGITS_PAD), cmap),       # logits_k (padded)
            pl.BlockSpec((1, 3, D_DEC), lmap),             # norms
            pl.BlockSpec((1, D_DEC, QKV_W), lmap),         # w_qkv
            pl.BlockSpec((1, NQ * HD, D_DEC), lmap),       # w_sa_o
            pl.BlockSpec((1, D_DEC, CA_W), lmap),          # w_ca_q
            pl.BlockSpec((1, D_ENC, KV_W), lmap),          # w_ca_kv
            pl.BlockSpec((1, CA_W, D_DEC), lmap),          # w_ca_o
            pl.BlockSpec((1, D_DEC, 2 * D_FF), lmap),      # w_mlp_wi
            pl.BlockSpec((1, D_FF, D_DEC), lmap),          # w_mlp_wo
        ],
        out_specs=pl.BlockSpec((BT, LOGITS_PAD), cmap),
        scratch_shapes=[pltpu.VMEM((BT, D_DEC), jnp.float32)],
        compiler_params=pltpu.CompilerParams(
            dimension_semantics=("arbitrary",)),
    )(x2d, enc2d, self_bias, cross_bias, rope_qkv, rope_cq, rope_ckv,
      p_qkv, p_cq, p_ckv, final_norm, logits_k,
      packed["norm"], packed["w_qkv"], packed["w_sa_o"], packed["w_ca_q"],
      packed["w_ca_kv"], packed["w_ca_o"], packed["w_mlp_wi"], packed["w_mlp_wo"])


# --------------------------- RoPE / packing glue ------------------------------
def _rope_sin_cos(positions, head_dim):
    half = head_dim // 2
    fraction = 2.0 * jnp.arange(half, dtype=jnp.float32) / head_dim
    timescale = ROPE_MIN * (ROPE_MAX / ROPE_MIN) ** fraction
    sinusoid = positions.astype(jnp.float32)[..., None] / timescale
    return jnp.sin(sinusoid), jnp.cos(sinusoid)            # each (..., half)


def rope_tables(positions, head_dim, num_rot_heads, pad_cols=0):
    """[cos | sin] table over concatenated head columns; optional trailing
    identity columns (cos=1, sin=0) for unrotated (e.g. V) columns."""
    sin, cos = _rope_sin_cos(positions, head_dim)
    cos_h = jnp.concatenate([cos, cos], axis=-1)            # (..., H)
    sin_h = jnp.concatenate([-sin, sin], axis=-1)           # (..., H)
    reps = (1,) * positions.ndim + (num_rot_heads,)
    cos_full = jnp.tile(cos_h, reps)
    sin_full = jnp.tile(sin_h, reps)
    if pad_cols:
        pad_shape = positions.shape + (pad_cols,)
        cos_full = jnp.concatenate([cos_full, jnp.ones(pad_shape, jnp.float32)], -1)
        sin_full = jnp.concatenate([sin_full, jnp.zeros(pad_shape, jnp.float32)], -1)
    return jnp.concatenate([cos_full, sin_full], axis=-1)


def rope_swap_matrix(width, head_dim, rot_cols):
    """Permutation matrix P with per-head half swaps on the first rot_cols
    columns (so x @ P swaps the two halves of each head); zero elsewhere."""
    half = head_dim // 2
    P = np.zeros((width, width), dtype=np.float32)
    for base in range(0, rot_cols, head_dim):
        P[base + half:base + head_dim, base:base + half] = np.eye(half)
        P[base:base + half, base + half:base + head_dim] = np.eye(half)
    return jnp.asarray(P)


def pack_params(params):
    stack = lambda fn: jnp.stack([fn(lp) for lp in params["layers"]], axis=0)
    bf = lambda a: a.astype(jnp.bfloat16)
    return {
        "norm": stack(lambda lp: jnp.stack(
            [lp["pre_sa_norm"], lp["pre_ca_norm"], lp["pre_mlp_norm"]], 0)),
        "w_qkv": bf(stack(lambda lp: jnp.concatenate(
            [lp["sa_q"], lp["sa_k"], lp["sa_v"]], axis=1))),
        "w_sa_o": bf(stack(lambda lp: lp["sa_o"])),
        "w_ca_q": bf(stack(lambda lp: lp["ca_q"])),
        "w_ca_kv": bf(stack(lambda lp: jnp.concatenate(
            [lp["ca_k"], lp["ca_v"]], axis=1))),
        "w_ca_o": bf(stack(lambda lp: lp["ca_o"])),
        "w_mlp_wi": bf(stack(lambda lp: lp["mlp_wi"])),
        "w_mlp_wo": bf(stack(lambda lp: lp["mlp_wo"])),
    }


# ------------------------------ Pallas forward --------------------------------
def decoder_forward_pallas(params, tgt_ids_BTC, enc_out, enc_pos, dec_pos, src_lens):
    Bb, Tt, Cin = tgt_ids_BTC.shape
    Be, Se, Ee = enc_out.shape
    BT, BS = Bb * Tt, Be * Se

    # channel-embedding sum (gather kept as plain-JAX glue)
    x = None
    for c in range(Cin):
        emb = jnp.take(params["embeddings"][c], tgt_ids_BTC[..., c], axis=0)
        x = emb if x is None else x + emb
    x2d = x.reshape(BT, D_DEC)
    enc2d = enc_out.reshape(BS, Ee)

    packed = pack_params(params)

    # RoPE tables + head-half swap matrices (rotation done as MXU matmuls)
    rope_qkv = rope_tables(dec_pos.reshape(-1), HD, NQ + NKV, pad_cols=NKV * HD)
    rope_cq = rope_tables(dec_pos.reshape(-1), HC, NC)
    rope_ckv = rope_tables(enc_pos.reshape(-1), HC, NC, pad_cols=CA_W)
    p_qkv = rope_swap_matrix(QKV_W, HD, (NQ + NKV) * HD).astype(jnp.bfloat16)
    p_cq = rope_swap_matrix(CA_W, HC, CA_W).astype(jnp.bfloat16)
    p_ckv = rope_swap_matrix(KV_W, HC, CA_W).astype(jnp.bfloat16)

    # batch-block-diagonal attention biases, built once in JAX (no per-step VPU work)
    row_b = jnp.repeat(jnp.arange(Bb), Tt)                 # (BT,) batch id
    row_t = jnp.tile(jnp.arange(Tt), Bb)                   # (BT,) time id
    col_b = jnp.repeat(jnp.arange(Be), Se)                 # (BS,)
    col_s = jnp.tile(jnp.arange(Se), Be)                   # (BS,)
    self_ok = (row_b[:, None] == row_b[None, :]) & (row_t[None, :] <= row_t[:, None])
    self_bias = jnp.where(self_ok, 0.0, NEG_INF).astype(jnp.float32)
    cross_ok = (row_b[:, None] == col_b[None, :]) & \
               (col_s[None, :] < src_lens[row_b][:, None])
    cross_bias = jnp.where(cross_ok, 0.0, NEG_INF).astype(jnp.float32)

    logits_k = jnp.pad(params["logits"],
                       ((0, 0), (0, LOGITS_PAD - C * V))).astype(jnp.bfloat16)
    final_norm = params["final_norm"].reshape(1, -1)

    out = decoder_stack_pallas(x2d, enc2d, self_bias, cross_bias,
                               rope_qkv, rope_cq, rope_ckv,
                               p_qkv, p_cq, p_ckv,
                               final_norm, logits_k, packed)
    return out[:, :C * V].reshape(Bb, Tt, C, V)


# ------------------------- pure-JAX reference forward -------------------------
def _rms_ref(x, w):
    xf = x.astype(jnp.float32)
    var = jnp.mean(xf * xf, axis=-1, keepdims=True)
    return xf * jax.lax.rsqrt(var + EPS) * w


def _rope_ref(x_BTNH, positions):
    Hh = x_BTNH.shape[-1]
    half = Hh // 2
    sin, cos = _rope_sin_cos(positions, Hh)
    sin = sin[..., None, :]
    cos = cos[..., None, :]
    xf = x_BTNH.astype(jnp.float32)
    x1, x2 = xf[..., :half], xf[..., half:]
    return jnp.concatenate([x1 * cos - x2 * sin, x2 * cos + x1 * sin], axis=-1)


def _attn_ref(q, k, v, bias):
    g = q.shape[1] // k.shape[1]
    if g > 1:
        k = jnp.repeat(k, g, axis=1)
        v = jnp.repeat(v, g, axis=1)
    s = jnp.einsum("bnth,bnsh->bnts", q, k, precision=jax.lax.Precision.HIGHEST) + bias
    p = jax.nn.softmax(s, axis=-1)
    return jnp.einsum("bnts,bnsh->bnth", p, v, precision=jax.lax.Precision.HIGHEST)


def decoder_forward_ref(params, tgt_ids_BTC, enc_out, enc_pos, dec_pos, src_lens):
    Bb, Tt, Cin = tgt_ids_BTC.shape
    x = None
    for c in range(Cin):
        emb = jnp.take(params["embeddings"][c], tgt_ids_BTC[..., c], axis=0)
        x = emb if x is None else x + emb

    causal = jnp.tril(jnp.ones((Tt, Tt), dtype=bool))
    causal_bias = jnp.where(causal, 0.0, NEG_INF)[None, None]
    cross_bias = jnp.where(
        jnp.arange(S)[None, None, None, :] < src_lens[:, None, None, None], 0.0, NEG_INF)

    dg = lambda a, w: jnp.einsum("...k,kn->...n", a, w,
                                 precision=jax.lax.Precision.HIGHEST)

    for lp in params["layers"]:
        # self-attention (causal, GQA, scale=1.0)
        h = _rms_ref(x, lp["pre_sa_norm"])
        q = _rope_ref(dg(h, lp["sa_q"]).reshape(Bb, Tt, NQ, HD), dec_pos)
        k = _rope_ref(dg(h, lp["sa_k"]).reshape(Bb, Tt, NKV, HD), dec_pos)
        v = dg(h, lp["sa_v"]).reshape(Bb, Tt, NKV, HD)
        ao = _attn_ref(q.transpose(0, 2, 1, 3), k.transpose(0, 2, 1, 3),
                       v.transpose(0, 2, 1, 3), causal_bias)
        x = x + dg(ao.transpose(0, 2, 1, 3).reshape(Bb, Tt, NQ * HD), lp["sa_o"])
        # cross-attention
        h = _rms_ref(x, lp["pre_ca_norm"])
        qc = _rope_ref(dg(h, lp["ca_q"]).reshape(Bb, Tt, NC, HC), dec_pos)
        kc = _rope_ref(dg(enc_out, lp["ca_k"]).reshape(Bb, S, NC, HC), enc_pos)
        vc = dg(enc_out, lp["ca_v"]).reshape(Bb, S, NC, HC)
        ao = _attn_ref(qc.transpose(0, 2, 1, 3), kc.transpose(0, 2, 1, 3),
                       vc.transpose(0, 2, 1, 3), cross_bias)
        x = x + dg(ao.transpose(0, 2, 1, 3).reshape(Bb, Tt, NC * HC), lp["ca_o"])
        # MLP
        h = _rms_ref(x, lp["pre_mlp_norm"])
        fused = dg(h, lp["mlp_wi"])
        gate, up = fused[..., :D_FF], fused[..., D_FF:]
        x = x + dg(gate * jax.nn.sigmoid(gate) * up, lp["mlp_wo"])

    xn = _rms_ref(x, params["final_norm"])
    logits = dg(xn, params["logits"]).astype(jnp.float32)
    return logits.reshape(Bb, Tt, C, V)


# ------------------------------ params init ---------------------------------
def _normal(key, shape, std):
    return std * jax.random.normal(key, shape, dtype=jnp.float32)


def _bf16_round(a):
    # Matmul weights live in compute_dtype (bf16) in the PyTorch module; round
    # once so the Pallas kernel (bf16 storage) and the f32 reference use
    # bit-identical weight values.
    return a.astype(jnp.bfloat16).astype(jnp.float32)


def init_params(key):
    keys = iter(jax.random.split(key, 64))
    nk = lambda: next(keys)
    params = {"embeddings": [_normal(nk(), (V, D_DEC), 1.0) for _ in range(C)]}
    layers = []
    for _ in range(N_LAYERS):
        layers.append({
            "pre_sa_norm": 1.0 + _normal(nk(), (D_DEC,), 0.02),
            "pre_ca_norm": 1.0 + _normal(nk(), (D_DEC,), 0.02),
            "pre_mlp_norm": 1.0 + _normal(nk(), (D_DEC,), 0.02),
            "sa_q": _normal(nk(), (D_DEC, NQ * HD), 0.08),
            "sa_k": _normal(nk(), (D_DEC, NKV * HD), 0.08),
            "sa_v": _normal(nk(), (D_DEC, NKV * HD), 0.08),
            "sa_o": _normal(nk(), (NQ * HD, D_DEC), 0.08),
            "ca_q": _normal(nk(), (D_DEC, NC * HC), 0.08),
            "ca_k": _normal(nk(), (D_ENC, NC * HC), 0.08),
            "ca_v": _normal(nk(), (D_ENC, NC * HC), 0.08),
            "ca_o": _normal(nk(), (NC * HC, D_DEC), 0.08),
            "mlp_wi": _normal(nk(), (D_DEC, 2 * D_FF), 0.08),
            "mlp_wo": _normal(nk(), (D_FF, D_DEC), 0.08),
        })
    mat_keys = ("sa_q", "sa_k", "sa_v", "sa_o", "ca_q", "ca_k", "ca_v", "ca_o",
                "mlp_wi", "mlp_wo")
    for lp in layers:
        for kname in mat_keys:
            lp[kname] = _bf16_round(lp[kname])
    params["layers"] = layers
    params["final_norm"] = 1.0 + _normal(nk(), (D_DEC,), 0.02)
    params["logits"] = _bf16_round(_normal(nk(), (D_DEC, C * V), 0.08))
    return params


# ---------------------------------- main -------------------------------------
if __name__ == "__main__":
    key = jax.random.PRNGKey(0)
    kp, ke, kt = jax.random.split(key, 3)
    params = init_params(kp)

    enc_out = 0.5 * jax.random.normal(ke, (B, S, D_ENC), dtype=jnp.float32)
    tgt_ids = jax.random.randint(kt, (B, T, C), 0, V, dtype=jnp.int32)
    enc_pos = jnp.broadcast_to(jnp.arange(S, dtype=jnp.int32), (B, S))
    dec_pos = jnp.broadcast_to(jnp.arange(T, dtype=jnp.int32), (B, T))
    src_lens = jnp.array([S, S - 5], dtype=jnp.int32)   # cross-attn padding mask (>0)

    fwd = jax.jit(decoder_forward_pallas)
    logits = jax.block_until_ready(
        fwd(params, tgt_ids, enc_out, enc_pos, dec_pos, src_lens))

    ref = jax.block_until_ready(jax.jit(decoder_forward_ref)(
        params, tgt_ids, enc_out, enc_pos, dec_pos, src_lens))

    assert logits.shape == (B, T, C, V) and logits.dtype == jnp.float32
    rel_err = float(jnp.max(jnp.abs(logits - ref)) / (jnp.max(jnp.abs(ref)) + 1e-6))
    # Tolerance covers bf16 MXU-input casts + approx-reciprocal softmax vs the
    # f32 HIGHEST-precision reference (shared bf16-rounded weights).
    assert rel_err < 2e-2, f"mismatch vs reference: rel_err={rel_err}"
    print("KERNEL_OK")
</pallas_src>

<mosaic_0001>
module attributes {stable_mosaic.version = 11 : i64} {
  func.func @_decoder_stack_kernel(%arg0: i32, %arg1: memref<16x64xf32, #tpu.memory_space<vmem>>, %arg2: memref<32x32xf32, #tpu.memory_space<vmem>>, %arg3: memref<16x16xf32, #tpu.memory_space<vmem>>, %arg4: memref<16x32xf32, #tpu.memory_space<vmem>>, %arg5: memref<16x256xf32, #tpu.memory_space<vmem>>, %arg6: memref<16x64xf32, #tpu.memory_space<vmem>>, %arg7: memref<32x128xf32, #tpu.memory_space<vmem>>, %arg8: memref<128x128xbf16, #tpu.memory_space<vmem>>, %arg9: memref<32x32xbf16, #tpu.memory_space<vmem>>, %arg10: memref<64x64xbf16, #tpu.memory_space<vmem>>, %arg11: memref<1x64xf32, #tpu.memory_space<vmem>>, %arg12: memref<64x128xbf16, #tpu.memory_space<vmem>>, %arg13: memref<1x3x64xf32, #tpu.memory_space<vmem>>, %arg14: memref<1x64x128xbf16, #tpu.memory_space<vmem>>, %arg15: memref<1x64x64xbf16, #tpu.memory_space<vmem>>, %arg16: memref<1x64x32xbf16, #tpu.memory_space<vmem>>, %arg17: memref<1x32x64xbf16, #tpu.memory_space<vmem>>, %arg18: memref<1x32x64xbf16, #tpu.memory_space<vmem>>, %arg19: memref<1x64x256xbf16, #tpu.memory_space<vmem>>, %arg20: memref<1x128x64xbf16, #tpu.memory_space<vmem>>, %arg21: memref<16x128xf32, #tpu.memory_space<vmem>>, %arg22: memref<16x64xf32, #tpu.memory_space<vmem>>) attributes {dimension_semantics = [#tpu.dimension_semantics<arbitrary>], iteration_bounds = array<i64: 2>, scalar_prefetch = 0 : i64, scratch_operands = 1 : i64, tpu.core_type = #tpu.core_type<tc>, window_params = [{pipeline_mode = #tpu.pipeline_mode<synchronous>, transform_indices = @transform_0, window_bounds = array<i64: 16, 64>}, {pipeline_mode = #tpu.pipeline_mode<synchronous>, transform_indices = @transform_1, window_bounds = array<i64: 32, 32>}, {pipeline_mode = #tpu.pipeline_mode<synchronous>, transform_indices = @transform_2, window_bounds = array<i64: 16, 16>}, {pipeline_mode = #tpu.pipeline_mode<synchronous>, transform_indices = @transform_3, window_bounds = array<i64: 16, 32>}, {pipeline_mode = #tpu.pipeline_mode<synchronous>, transform_indices = @transform_4, window_bounds = array<i64: 16, 256>}, {pipeline_mode = #tpu.pipeline_mode<synchronous>, transform_indices = @transform_5, window_bounds = array<i64: 16, 64>}, {pipeline_mode = #tpu.pipeline_mode<synchronous>, transform_indices = @transform_6, window_bounds = array<i64: 32, 128>}, {pipeline_mode = #tpu.pipeline_mode<synchronous>, transform_indices = @transform_7, window_bounds = array<i64: 128, 128>}, {pipeline_mode = #tpu.pipeline_mode<synchronous>, transform_indices = @transform_8, window_bounds = array<i64: 32, 32>}, {pipeline_mode = #tpu.pipeline_mode<synchronous>, transform_indices = @transform_9, window_bounds = array<i64: 64, 64>}, {pipeline_mode = #tpu.pipeline_mode<synchronous>, transform_indices = @transform_10, window_bounds = array<i64: 1, 64>}, {pipeline_mode = #tpu.pipeline_mode<synchronous>, transform_indices = @transform_11, window_bounds = array<i64: 64, 128>}, {transform_indices = @transform_12, window_bounds = array<i64: 1, 3, 64>}, {transform_indices = @transform_13, window_bounds = array<i64: 1, 64, 128>}, {transform_indices = @transform_14, window_bounds = array<i64: 1, 64, 64>}, {transform_indices = @transform_15, window_bounds = array<i64: 1, 64, 32>}, {transform_indices = @transform_16, window_bounds = array<i64: 1, 32, 64>}, {transform_indices = @transform_17, window_bounds = array<i64: 1, 32, 64>}, {transform_indices = @transform_18, window_bounds = array<i64: 1, 64, 256>}, {transform_indices = @transform_19, window_bounds = array<i64: 1, 128, 64>}, {pipeline_mode = #tpu.pipeline_mode<synchronous>, transform_indices = @transform_20, window_bounds = array<i64: 16, 128>}]} {
    %c0_i32 = arith.constant 0 : i32
    %0 = arith.cmpi eq, %arg0, %c0_i32 : i32
    %1 = arith.extui %0 : i1 to i32
    %c0_i32_0 = arith.constant 0 : i32
    %2 = arith.cmpi ne, %1, %c0_i32_0 : i32
    scf.if %2 {
      %c0_90 = arith.constant 0 : index
      %c0_91 = arith.constant 0 : index
      %238 = vector.load %arg1[%c0_90, %c0_91] : memref<16x64xf32, #tpu.memory_space<vmem>>, vector<16x64xf32>
      %c0_92 = arith.constant 0 : index
      %c0_93 = arith.constant 0 : index
      %239 = vector.load %arg22[%c0_92, %c0_93] : memref<16x64xf32, #tpu.memory_space<vmem>>, vector<16x64xf32>
      tpu.vector_store %arg22[%c0_92, %c0_93], %238 {strides = array<i32>} : memref<16x64xf32, #tpu.memory_space<vmem>>, vector<16x64xf32>,
    } else {
    }
    %c0 = arith.constant 0 : index
    %c0_1 = arith.constant 0 : index
    %3 = vector.load %arg22[%c0, %c0_1] : memref<16x64xf32, #tpu.memory_space<vmem>>, vector<16x64xf32>
    %c0_2 = arith.constant 0 : index
    %c0_3 = arith.constant 0 : index
    %c0_4 = arith.constant 0 : index
    %4 = vector.load %arg13[%c0_2, %c0_3, %c0_4] : memref<1x3x64xf32, #tpu.memory_space<vmem>>, vector<1x3x64xf32>
    %5 = vector.shape_cast %4 : vector<1x3x64xf32> to vector<3x64xf32>
    %6 = vector.extract_strided_slice %5 {offsets = [0, 0], sizes = [1, 64], strides = [1, 1]} : vector<3x64xf32> to vector<1x64xf32>
    %7 = vector.shape_cast %6 : vector<1x64xf32> to vector<64xf32>
    %8 = arith.mulf %3, %3 : vector<16x64xf32>
    %cst = arith.constant dense<0.000000e+00> : vector<16xf32>
    %9 = vector.multi_reduction <add>, %8, %cst [1] : vector<16x64xf32> to vector<16xf32>
    %10 = vector.shape_cast %9 : vector<16xf32> to vector<16x1xf32>
    %cst_5 = arith.constant 6.400000e+01 : f32
    %11 = vector.broadcast %cst_5 : f32 to vector<16x1xf32>
    %12 = arith.divf %10, %11 : vector<16x1xf32>
    %cst_6 = arith.constant 9.99999974E-6 : f32
    %13 = vector.broadcast %cst_6 : f32 to vector<16x1xf32>
    %14 = arith.addf %12, %13 : vector<16x1xf32>
    %15 = math.rsqrt %14 : vector<16x1xf32>
    %16 = vector.broadcast %15 : vector<16x1xf32> to vector<16x64xf32>
    %17 = arith.mulf %3, %16 : vector<16x64xf32>
    %18 = vector.shape_cast %7 : vector<64xf32> to vector<1x64xf32>
    %19 = vector.broadcast %18 : vector<1x64xf32> to vector<16x64xf32>
    %20 = arith.mulf %17, %19 : vector<16x64xf32>
    %c0_7 = arith.constant 0 : index
    %c0_8 = arith.constant 0 : index
    %c0_9 = arith.constant 0 : index
    %21 = vector.load %arg14[%c0_7, %c0_8, %c0_9] : memref<1x64x128xbf16, #tpu.memory_space<vmem>>, vector<1x64x128xbf16>
    %22 = vector.shape_cast %21 : vector<1x64x128xbf16> to vector<64x128xbf16>
    %23 = arith.truncf %20 : vector<16x64xf32> to vector<16x64xbf16>
    %cst_10 = arith.constant dense<0.000000e+00> : vector<16x128xf32>
    %24 = tpu.matmul %23, %22, %cst_10 {dimension_numbers = #tpu.dot_dimension_numbers<[1], [0], [0], [1], [0, 0, 1, 1], [], []>} : vector<16x64xbf16>, vector<64x128xbf16>, vector<16x128xf32> -> vector<16x128xf32>
    %c0_11 = arith.constant 0 : index
    %c0_12 = arith.constant 0 : index
    %25 = vector.load %arg5[%c0_11, %c0_12] : memref<16x256xf32, #tpu.memory_space<vmem>>, vector<16x256xf32>
    %26 = vector.extract_strided_slice %25 {offsets = [0, 0], sizes = [16, 128], strides = [1, 1]} : vector<16x256xf32> to vector<16x128xf32>
    %27 = arith.mulf %24, %26 : vector<16x128xf32>
    %c0_13 = arith.constant 0 : index
    %c0_14 = arith.constant 0 : index
    %28 = vector.load %arg8[%c0_13, %c0_14] : memref<128x128xbf16, #tpu.memory_space<vmem>>, vector<128x128xbf16>
    %29 = arith.truncf %24 : vector<16x128xf32> to vector<16x128xbf16>
    %cst_15 = arith.constant dense<0.000000e+00> : vector<16x128xf32>
    %30 = tpu.matmul %29, %28, %cst_15 {dimension_numbers = #tpu.dot_dimension_numbers<[1], [0], [0], [1], [0, 0, 1, 1], [], []>} : vector<16x128xbf16>, vector<128x128xbf16>, vector<16x128xf32> -> vector<16x128xf32>
    %31 = vector.extract_strided_slice %25 {offsets = [0, 128], sizes = [16, 128], strides = [1, 1]} : vector<16x256xf32> to vector<16x128xf32>
    %32 = arith.mulf %30, %31 : vector<16x128xf32>
    %33 = arith.addf %27, %32 : vector<16x128xf32>
    %34 = vector.extract_strided_slice %33 {offsets = [0, 0], sizes = [16, 64], strides = [1, 1]} : vector<16x128xf32> to vector<16x64xf32>
    %35 = vector.extract_strided_slice %33 {offsets = [0, 64], sizes = [16, 32], strides = [1, 1]} : vector<16x128xf32> to vector<16x32xf32>
    %36 = vector.extract_strided_slice %33 {offsets = [0, 96], sizes = [16, 32], strides = [1, 1]} : vector<16x128xf32> to vector<16x32xf32>
    %c0_16 = arith.constant 0 : index
    %c0_17 = arith.constant 0 : index
    %37 = vector.load %arg3[%c0_16, %c0_17] : memref<16x16xf32, #tpu.memory_space<vmem>>, vector<16x16xf32>
    %38 = vector.extract_strided_slice %34 {offsets = [0, 0], sizes = [16, 16], strides = [1, 1]} : vector<16x64xf32> to vector<16x16xf32>
    %39 = vector.extract_strided_slice %35 {offsets = [0, 0], sizes = [16, 16], strides = [1, 1]} : vector<16x32xf32> to vector<16x16xf32>
    %40 = vector.extract_strided_slice %36 {offsets = [0, 0], sizes = [16, 16], strides = [1, 1]} : vector<16x32xf32> to vector<16x16xf32>
    %cst_18 = arith.constant dense<0.000000e+00> : vector<16x16xf32>
    %41 = tpu.matmul %38, %39, %cst_18 {dimension_numbers = #tpu.dot_dimension_numbers<[1], [1], [0], [0], [0, 0, 1, 0], [], []>} : vector<16x16xf32>, vector<16x16xf32>, vector<16x16xf32> -> vector<16x16xf32>
    %42 = arith.addf %41, %37 : vector<16x16xf32>
    %cst_19 = arith.constant dense<0xFF800000> : vector<16xf32>
    %43 = vector.multi_reduction <maximumf>, %42, %cst_19 [1] : vector<16x16xf32> to vector<16xf32>
    %44 = vector.shape_cast %43 : vector<16xf32> to vector<16x1xf32>
    %45 = vector.broadcast %44 : vector<16x1xf32> to vector<16x16xf32>
    %46 = arith.subf %42, %45 : vector<16x16xf32>
    %47 = math.exp %46 : vector<16x16xf32>
    %cst_20 = arith.constant dense<0.000000e+00> : vector<16xf32>
    %48 = vector.multi_reduction <add>, %47, %cst_20 [1] : vector<16x16xf32> to vector<16xf32>
    %49 = vector.shape_cast %48 : vector<16xf32> to vector<16x1xf32>
    %50 = arith.truncf %47 : vector<16x16xf32> to vector<16x16xbf16>
    %51 = arith.truncf %40 : vector<16x16xf32> to vector<16x16xbf16>
    %cst_21 = arith.constant dense<0.000000e+00> : vector<16x16xf32>
    %52 = tpu.matmul %50, %51, %cst_21 {dimension_numbers = #tpu.dot_dimension_numbers<[1], [0], [0], [1], [0, 0, 1, 1], [], []>} : vector<16x16xbf16>, vector<16x16xbf16>, vector<16x16xf32> -> vector<16x16xf32>
    %53 = tpu.reciprocal %49 {approx = true} : vector<16x1xf32> -> vector<16x1xf32>
    %54 = vector.broadcast %53 : vector<16x1xf32> to vector<16x16xf32>
    %55 = arith.mulf %52, %54 : vector<16x16xf32>
    %56 = vector.extract_strided_slice %34 {offsets = [0, 16], sizes = [16, 16], strides = [1, 1]} : vector<16x64xf32> to vector<16x16xf32>
    %57 = vector.extract_strided_slice %35 {offsets = [0, 0], sizes = [16, 16], strides = [1, 1]} : vector<16x32xf32> to vector<16x16xf32>
    %58 = vector.extract_strided_slice %36 {offsets = [0, 0], sizes = [16, 16], strides = [1, 1]} : vector<16x32xf32> to vector<16x16xf32>
    %cst_22 = arith.constant dense<0.000000e+00> : vector<16x16xf32>
    %59 = tpu.matmul %56, %57, %cst_22 {dimension_numbers = #tpu.dot_dimension_numbers<[1], [1], [0], [0], [0, 0, 1, 0], [], []>} : vector<16x16xf32>, vector<16x16xf32>, vector<16x16xf32> -> vector<16x16xf32>
    %60 = arith.addf %59, %37 : vector<16x16xf32>
    %cst_23 = arith.constant dense<0xFF800000> : vector<16xf32>
    %61 = vector.multi_reduction <maximumf>, %60, %cst_23 [1] : vector<16x16xf32> to vector<16xf32>
    %62 = vector.shape_cast %61 : vector<16xf32> to vector<16x1xf32>
    %63 = vector.broadcast %62 : vector<16x1xf32> to vector<16x16xf32>
    %64 = arith.subf %60, %63 : vector<16x16xf32>
    %65 = math.exp %64 : vector<16x16xf32>
    %cst_24 = arith.constant dense<0.000000e+00> : vector<16xf32>
    %66 = vector.multi_reduction <add>, %65, %cst_24 [1] : vector<16x16xf32> to vector<16xf32>
    %67 = vector.shape_cast %66 : vector<16xf32> to vector<16x1xf32>
    %68 = arith.truncf %65 : vector<16x16xf32> to vector<16x16xbf16>
    %69 = arith.truncf %58 : vector<16x16xf32> to vector<16x16xbf16>
    %cst_25 = arith.constant dense<0.000000e+00> : vector<16x16xf32>
    %70 = tpu.matmul %68, %69, %cst_25 {dimension_numbers = #tpu.dot_dimension_numbers<[1], [0], [0], [1], [0, 0, 1, 1], [], []>} : vector<16x16xbf16>, vector<16x16xbf16>, vector<16x16xf32> -> vector<16x16xf32>
    %71 = tpu.reciprocal %67 {approx = true} : vector<16x1xf32> -> vector<16x1xf32>
    %72 = vector.broadcast %71 : vector<16x1xf32> to vector<16x16xf32>
    %73 = arith.mulf %70, %72 : vector<16x16xf32>
    %74 = vector.extract_strided_slice %34 {offsets = [0, 32], sizes = [16, 16], strides = [1, 1]} : vector<16x64xf32> to vector<16x16xf32>
    %75 = vector.extract_strided_slice %35 {offsets = [0, 16], sizes = [16, 16], strides = [1, 1]} : vector<16x32xf32> to vector<16x16xf32>
    %76 = vector.extract_strided_slice %36 {offsets = [0, 16], sizes = [16, 16], strides = [1, 1]} : vector<16x32xf32> to vector<16x16xf32>
    %cst_26 = arith.constant dense<0.000000e+00> : vector<16x16xf32>
    %77 = tpu.matmul %74, %75, %cst_26 {dimension_numbers = #tpu.dot_dimension_numbers<[1], [1], [0], [0], [0, 0, 1, 0], [], []>} : vector<16x16xf32>, vector<16x16xf32>, vector<16x16xf32> -> vector<16x16xf32>
    %78 = arith.addf %77, %37 : vector<16x16xf32>
    %cst_27 = arith.constant dense<0xFF800000> : vector<16xf32>
    %79 = vector.multi_reduction <maximumf>, %78, %cst_27 [1] : vector<16x16xf32> to vector<16xf32>
    %80 = vector.shape_cast %79 : vector<16xf32> to vector<16x1xf32>
    %81 = vector.broadcast %80 : vector<16x1xf32> to vector<16x16xf32>
    %82 = arith.subf %78, %81 : vector<16x16xf32>
    %83 = math.exp %82 : vector<16x16xf32>
    %cst_28 = arith.constant dense<0.000000e+00> : vector<16xf32>
    %84 = vector.multi_reduction <add>, %83, %cst_28 [1] : vector<16x16xf32> to vector<16xf32>
    %85 = vector.shape_cast %84 : vector<16xf32> to vector<16x1xf32>
    %86 = arith.truncf %83 : vector<16x16xf32> to vector<16x16xbf16>
    %87 = arith.truncf %76 : vector<16x16xf32> to vector<16x16xbf16>
    %cst_29 = arith.constant dense<0.000000e+00> : vector<16x16xf32>
    %88 = tpu.matmul %86, %87, %cst_29 {dimension_numbers = #tpu.dot_dimension_numbers<[1], [0], [0], [1], [0, 0, 1, 1], [], []>} : vector<16x16xbf16>, vector<16x16xbf16>, vector<16x16xf32> -> vector<16x16xf32>
    %89 = tpu.reciprocal %85 {approx = true} : vector<16x1xf32> -> vector<16x1xf32>
    %90 = vector.broadcast %89 : vector<16x1xf32> to vector<16x16xf32>
    %91 = arith.mulf %88, %90 : vector<16x16xf32>
    %92 = vector.extract_strided_slice %34 {offsets = [0, 48], sizes = [16, 16], strides = [1, 1]} : vector<16x64xf32> to vector<16x16xf32>
    %93 = vector.extract_strided_slice %35 {offsets = [0, 16], sizes = [16, 16], strides = [1, 1]} : vector<16x32xf32> to vector<16x16xf32>
    %94 = vector.extract_strided_slice %36 {offsets = [0, 16], sizes = [16, 16], strides = [1, 1]} : vector<16x32xf32> to vector<16x16xf32>
    %cst_30 = arith.constant dense<0.000000e+00> : vector<16x16xf32>
    %95 = tpu.matmul %92, %93, %cst_30 {dimension_numbers = #tpu.dot_dimension_numbers<[1], [1], [0], [0], [0, 0, 1, 0], [], []>} : vector<16x16xf32>, vector<16x16xf32>, vector<16x16xf32> -> vector<16x16xf32>
    %96 = arith.addf %95, %37 : vector<16x16xf32>
    %cst_31 = arith.constant dense<0xFF800000> : vector<16xf32>
    %97 = vector.multi_reduction <maximumf>, %96, %cst_31 [1] : vector<16x16xf32> to vector<16xf32>
    %98 = vector.shape_cast %97 : vector<16xf32> to vector<16x1xf32>
    %99 = vector.broadcast %98 : vector<16x1xf32> to vector<16x16xf32>
    %100 = arith.subf %96, %99 : vector<16x16xf32>
    %101 = math.exp %100 : vector<16x16xf32>
    %cst_32 = arith.constant dense<0.000000e+00> : vector<16xf32>
    %102 = vector.multi_reduction <add>, %101, %cst_32 [1] : vector<16x16xf32> to vector<16xf32>
    %103 = vector.shape_cast %102 : vector<16xf32> to vector<16x1xf32>
    %104 = arith.truncf %101 : vector<16x16xf32> to vector<16x16xbf16>
    %105 = arith.truncf %94 : vector<16x16xf32> to vector<16x16xbf16>
    %cst_33 = arith.constant dense<0.000000e+00> : vector<16x16xf32>
    %106 = tpu.matmul %104, %105, %cst_33 {dimension_numbers = #tpu.dot_dimension_numbers<[1], [0], [0], [1], [0, 0, 1, 1], [], []>} : vector<16x16xbf16>, vector<16x16xbf16>, vector<16x16xf32> -> vector<16x16xf32>
    %107 = tpu.reciprocal %103 {approx = true} : vector<16x1xf32> -> vector<16x1xf32>
    %108 = vector.broadcast %107 : vector<16x1xf32> to vector<16x16xf32>
    %109 = arith.mulf %106, %108 : vector<16x16xf32>
    %110 = tpu.concatenate %55, %73, %91, %109 in 1 : vector<16x16xf32>, vector<16x16xf32>, vector<16x16xf32>, vector<16x16xf32> -> vector<16x64xf32>
    %c0_34 = arith.constant 0 : index
    %c0_35 = arith.constant 0 : index
    %c0_36 = arith.constant 0 : index
    %111 = vector.load %arg15[%c0_34, %c0_35, %c0_36] : memref<1x64x64xbf16, #tpu.memory_space<vmem>>, vector<1x64x64xbf16>
    %112 = vector.shape_cast %111 : vector<1x64x64xbf16> to vector<64x64xbf16>
    %113 = arith.truncf %110 : vector<16x64xf32> to vector<16x64xbf16>
    %cst_37 = arith.constant dense<0.000000e+00> : vector<16x64xf32>
    %114 = tpu.matmul %113, %112, %cst_37 {dimension_numbers = #tpu.dot_dimension_numbers<[1], [0], [0], [1], [0, 0, 1, 1], [], []>} : vector<16x64xbf16>, vector<64x64xbf16>, vector<16x64xf32> -> vector<16x64xf32>
    %115 = arith.addf %3, %114 : vector<16x64xf32>
    %116 = vector.extract_strided_slice %5 {offsets = [1, 0], sizes = [1, 64], strides = [1, 1]} : vector<3x64xf32> to vector<1x64xf32>
    %117 = vector.shape_cast %116 : vector<1x64xf32> to vector<64xf32>
    %118 = arith.mulf %115, %115 : vector<16x64xf32>
    %cst_38 = arith.constant dense<0.000000e+00> : vector<16xf32>
    %119 = vector.multi_reduction <add>, %118, %cst_38 [1] : vector<16x64xf32> to vector<16xf32>
    %120 = vector.shape_cast %119 : vector<16xf32> to vector<16x1xf32>
    %cst_39 = arith.constant 6.400000e+01 : f32
    %121 = vector.broadcast %cst_39 : f32 to vector<16x1xf32>
    %122 = arith.divf %120, %121 : vector<16x1xf32>
    %cst_40 = arith.constant 9.99999974E-6 : f32
    %123 = vector.broadcast %cst_40 : f32 to vector<16x1xf32>
    %124 = arith.addf %122, %123 : vector<16x1xf32>
    %125 = math.rsqrt %124 : vector<16x1xf32>
    %126 = vector.broadcast %125 : vector<16x1xf32> to vector<16x64xf32>
    %127 = arith.mulf %115, %126 : vector<16x64xf32>
    %128 = vector.shape_cast %117 : vector<64xf32> to vector<1x64xf32>
    %129 = vector.broadcast %128 : vector<1x64xf32> to vector<16x64xf32>
    %130 = arith.mulf %127, %129 : vector<16x64xf32>
    %c0_41 = arith.constant 0 : index
    %c0_42 = arith.constant 0 : index
    %c0_43 = arith.constant 0 : index
    %131 = vector.load %arg16[%c0_41, %c0_42, %c0_43] : memref<1x64x32xbf16, #tpu.memory_space<vmem>>, vector<1x64x32xbf16>
    %132 = vector.shape_cast %131 : vector<1x64x32xbf16> to vector<64x32xbf16>
    %133 = arith.truncf %130 : vector<16x64xf32> to vector<16x64xbf16>
    %cst_44 = arith.constant dense<0.000000e+00> : vector<16x32xf32>
    %134 = tpu.matmul %133, %132, %cst_44 {dimension_numbers = #tpu.dot_dimension_numbers<[1], [0], [0], [1], [0, 0, 1, 1], [], []>} : vector<16x64xbf16>, vector<64x32xbf16>, vector<16x32xf32> -> vector<16x32xf32>
    %c0_45 = arith.constant 0 : index
    %c0_46 = arith.constant 0 : index
    %135 = vector.load %arg6[%c0_45, %c0_46] : memref<16x64xf32, #tpu.memory_space<vmem>>, vector<16x64xf32>
    %136 = vector.extract_strided_slice %135 {offsets = [0, 0], sizes = [16, 32], strides = [1, 1]} : vector<16x64xf32> to vector<16x32xf32>
    %137 = arith.mulf %134, %136 : vector<16x32xf32>
    %c0_47 = arith.constant 0 : index
    %c0_48 = arith.constant 0 : index
    %138 = vector.load %arg9[%c0_47, %c0_48] : memref<32x32xbf16, #tpu.memory_space<vmem>>, vector<32x32xbf16>
    %139 = arith.truncf %134 : vector<16x32xf32> to vector<16x32xbf16>
    %cst_49 = arith.constant dense<0.000000e+00> : vector<16x32xf32>
    %140 = tpu.matmul %139, %138, %cst_49 {dimension_numbers = #tpu.dot_dimension_numbers<[1], [0], [0], [1], [0, 0, 1, 1], [], []>} : vector<16x32xbf16>, vector<32x32xbf16>, vector<16x32xf32> -> vector<16x32xf32>
    %141 = vector.extract_strided_slice %135 {offsets = [0, 32], sizes = [16, 32], strides = [1, 1]} : vector<16x64xf32> to vector<16x32xf32>
    %142 = arith.mulf %140, %141 : vector<16x32xf32>
    %143 = arith.addf %137, %142 : vector<16x32xf32>
    %c0_50 = arith.constant 0 : index
    %c0_51 = arith.constant 0 : index
    %144 = vector.load %arg2[%c0_50, %c0_51] : memref<32x32xf32, #tpu.memory_space<vmem>>, vector<32x32xf32>
    %c0_52 = arith.constant 0 : index
    %c0_53 = arith.constant 0 : index
    %c0_54 = arith.constant 0 : index
    %145 = vector.load %arg17[%c0_52, %c0_53, %c0_54] : memref<1x32x64xbf16, #tpu.memory_space<vmem>>, vector<1x32x64xbf16>
    %146 = vector.shape_cast %145 : vector<1x32x64xbf16> to vector<32x64xbf16>
    %147 = arith.truncf %144 : vector<32x32xf32> to vector<32x32xbf16>
    %cst_55 = arith.constant dense<0.000000e+00> : vector<32x64xf32>
    %148 = tpu.matmul %147, %146, %cst_55 {dimension_numbers = #tpu.dot_dimension_numbers<[1], [0], [0], [1], [0, 0, 1, 1], [], []>} : vector<32x32xbf16>, vector<32x64xbf16>, vector<32x64xf32> -> vector<32x64xf32>
    %c0_56 = arith.constant 0 : index
    %c0_57 = arith.constant 0 : index
    %149 = vector.load %arg7[%c0_56, %c0_57] : memref<32x128xf32, #tpu.memory_space<vmem>>, vector<32x128xf32>
    %150 = vector.extract_strided_slice %149 {offsets = [0, 0], sizes = [32, 64], strides = [1, 1]} : vector<32x128xf32> to vector<32x64xf32>
    %151 = arith.mulf %148, %150 : vector<32x64xf32>
    %c0_58 = arith.constant 0 : index
    %c0_59 = arith.constant 0 : index
    %152 = vector.load %arg10[%c0_58, %c0_59] : memref<64x64xbf16, #tpu.memory_space<vmem>>, vector<64x64xbf16>
    %153 = arith.truncf %148 : vector<32x64xf32> to vector<32x64xbf16>
    %cst_60 = arith.constant dense<0.000000e+00> : vector<32x64xf32>
    %154 = tpu.matmul %153, %152, %cst_60 {dimension_numbers = #tpu.dot_dimension_numbers<[1], [0], [0], [1], [0, 0, 1, 1], [], []>} : vector<32x64xbf16>, vector<64x64xbf16>, vector<32x64xf32> -> vector<32x64xf32>
    %155 = vector.extract_strided_slice %149 {offsets = [0, 64], sizes = [32, 64], strides = [1, 1]} : vector<32x128xf32> to vector<32x64xf32>
    %156 = arith.mulf %154, %155 : vector<32x64xf32>
    %157 = arith.addf %151, %156 : vector<32x64xf32>
    %c0_61 = arith.constant 0 : index
    %c0_62 = arith.constant 0 : index
    %158 = vector.load %arg4[%c0_61, %c0_62] : memref<16x32xf32, #tpu.memory_space<vmem>>, vector<16x32xf32>
    %159 = vector.extract_strided_slice %143 {offsets = [0, 0], sizes = [16, 16], strides = [1, 1]} : vector<16x32xf32> to vector<16x16xf32>
    %160 = vector.extract_strided_slice %157 {offsets = [0, 0], sizes = [32, 16], strides = [1, 1]} : vector<32x64xf32> to vector<32x16xf32>
    %161 = vector.extract_strided_slice %157 {offsets = [0, 32], sizes = [32, 16], strides = [1, 1]} : vector<32x64xf32> to vector<32x16xf32>
    %cst_63 = arith.constant dense<0.000000e+00> : vector<16x32xf32>
    %162 = tpu.matmul %159, %160, %cst_63 {dimension_numbers = #tpu.dot_dimension_numbers<[1], [1], [0], [0], [0, 0, 1, 0], [], []>} : vector<16x16xf32>, vector<32x16xf32>, vector<16x32xf32> -> vector<16x32xf32>
    %163 = arith.addf %162, %158 : vector<16x32xf32>
    %cst_64 = arith.constant dense<0xFF800000> : vector<16xf32>
    %164 = vector.multi_reduction <maximumf>, %163, %cst_64 [1] : vector<16x32xf32> to vector<16xf32>
    %165 = vector.shape_cast %164 : vector<16xf32> to vector<16x1xf32>
    %166 = vector.broadcast %165 : vector<16x1xf32> to vector<16x32xf32>
    %167 = arith.subf %163, %166 : vector<16x32xf32>
    %168 = math.exp %167 : vector<16x32xf32>
    %cst_65 = arith.constant dense<0.000000e+00> : vector<16xf32>
    %169 = vector.multi_reduction <add>, %168, %cst_65 [1] : vector<16x32xf32> to vector<16xf32>
    %170 = vector.shape_cast %169 : vector<16xf32> to vector<16x1xf32>
    %171 = arith.truncf %168 : vector<16x32xf32> to vector<16x32xbf16>
    %172 = arith.truncf %161 : vector<32x16xf32> to vector<32x16xbf16>
    %cst_66 = arith.constant dense<0.000000e+00> : vector<16x16xf32>
    %173 = tpu.matmul %171, %172, %cst_66 {dimension_numbers = #tpu.dot_dimension_numbers<[1], [0], [0], [1], [0, 0, 1, 1], [], []>} : vector<16x32xbf16>, vector<32x16xbf16>, vector<16x16xf32> -> vector<16x16xf32>
    %174 = tpu.reciprocal %170 {approx = true} : vector<16x1xf32> -> vector<16x1xf32>
    %175 = vector.broadcast %174 : vector<16x1xf32> to vector<16x16xf32>
    %176 = arith.mulf %173, %175 : vector<16x16xf32>
    %177 = vector.extract_strided_slice %143 {offsets = [0, 16], sizes = [16, 16], strides = [1, 1]} : vector<16x32xf32> to vector<16x16xf32>
    %178 = vector.extract_strided_slice %157 {offsets = [0, 16], sizes = [32, 16], strides = [1, 1]} : vector<32x64xf32> to vector<32x16xf32>
    %179 = vector.extract_strided_slice %157 {offsets = [0, 48], sizes = [32, 16], strides = [1, 1]} : vector<32x64xf32> to vector<32x16xf32>
    %cst_67 = arith.constant dense<0.000000e+00> : vector<16x32xf32>
    %180 = tpu.matmul %177, %178, %cst_67 {dimension_numbers = #tpu.dot_dimension_numbers<[1], [1], [0], [0], [0, 0, 1, 0], [], []>} : vector<16x16xf32>, vector<32x16xf32>, vector<16x32xf32> -> vector<16x32xf32>
    %181 = arith.addf %180, %158 : vector<16x32xf32>
    %cst_68 = arith.constant dense<0xFF800000> : vector<16xf32>
    %182 = vector.multi_reduction <maximumf>, %181, %cst_68 [1] : vector<16x32xf32> to vector<16xf32>
    %183 = vector.shape_cast %182 : vector<16xf32> to vector<16x1xf32>
    %184 = vector.broadcast %183 : vector<16x1xf32> to vector<16x32xf32>
    %185 = arith.subf %181, %184 : vector<16x32xf32>
    %186 = math.exp %185 : vector<16x32xf32>
    %cst_69 = arith.constant dense<0.000000e+00> : vector<16xf32>
    %187 = vector.multi_reduction <add>, %186, %cst_69 [1] : vector<16x32xf32> to vector<16xf32>
    %188 = vector.shape_cast %187 : vector<16xf32> to vector<16x1xf32>
    %189 = arith.truncf %186 : vector<16x32xf32> to vector<16x32xbf16>
    %190 = arith.truncf %179 : vector<32x16xf32> to vector<32x16xbf16>
    %cst_70 = arith.constant dense<0.000000e+00> : vector<16x16xf32>
    %191 = tpu.matmul %189, %190, %cst_70 {dimension_numbers = #tpu.dot_dimension_numbers<[1], [0], [0], [1], [0, 0, 1, 1], [], []>} : vector<16x32xbf16>, vector<32x16xbf16>, vector<16x16xf32> -> vector<16x16xf32>
    %192 = tpu.reciprocal %188 {approx = true} : vector<16x1xf32> -> vector<16x1xf32>
    %193 = vector.broadcast %192 : vector<16x1xf32> to vector<16x16xf32>
    %194 = arith.mulf %191, %193 : vector<16x16xf32>
    %195 = tpu.concatenate %176, %194 in 1 : vector<16x16xf32>, vector<16x16xf32> -> vector<16x32xf32>
    %c0_71 = arith.constant 0 : index
    %c0_72 = arith.constant 0 : index
    %c0_73 = arith.constant 0 : index
    %196 = vector.load %arg18[%c0_71, %c0_72, %c0_73] : memref<1x32x64xbf16, #tpu.memory_space<vmem>>, vector<1x32x64xbf16>
    %197 = vector.shape_cast %196 : vector<1x32x64xbf16> to vector<32x64xbf16>
    %198 = arith.truncf %195 : vector<16x32xf32> to vector<16x32xbf16>
    %cst_74 = arith.constant dense<0.000000e+00> : vector<16x64xf32>
    %199 = tpu.matmul %198, %197, %cst_74 {dimension_numbers = #tpu.dot_dimension_numbers<[1], [0], [0], [1], [0, 0, 1, 1], [], []>} : vector<16x32xbf16>, vector<32x64xbf16>, vector<16x64xf32> -> vector<16x64xf32>
    %200 = arith.addf %115, %199 : vector<16x64xf32>
    %201 = vector.extract_strided_slice %5 {offsets = [2, 0], sizes = [1, 64], strides = [1, 1]} : vector<3x64xf32> to vector<1x64xf32>
    %202 = vector.shape_cast %201 : vector<1x64xf32> to vector<64xf32>
    %203 = arith.mulf %200, %200 : vector<16x64xf32>
    %cst_75 = arith.constant dense<0.000000e+00> : vector<16xf32>
    %204 = vector.multi_reduction <add>, %203, %cst_75 [1] : vector<16x64xf32> to vector<16xf32>
    %205 = vector.shape_cast %204 : vector<16xf32> to vector<16x1xf32>
    %cst_76 = arith.constant 6.400000e+01 : f32
    %206 = vector.broadcast %cst_76 : f32 to vector<16x1xf32>
    %207 = arith.divf %205, %206 : vector<16x1xf32>
    %cst_77 = arith.constant 9.99999974E-6 : f32
    %208 = vector.broadcast %cst_77 : f32 to vector<16x1xf32>
    %209 = arith.addf %207, %208 : vector<16x1xf32>
    %210 = math.rsqrt %209 : vector<16x1xf32>
    %211 = vector.broadcast %210 : vector<16x1xf32> to vector<16x64xf32>
    %212 = arith.mulf %200, %211 : vector<16x64xf32>
    %213 = vector.shape_cast %202 : vector<64xf32> to vector<1x64xf32>
    %214 = vector.broadcast %213 : vector<1x64xf32> to vector<16x64xf32>
    %215 = arith.mulf %212, %214 : vector<16x64xf32>
    %c0_78 = arith.constant 0 : index
    %c0_79 = arith.constant 0 : index
    %c0_80 = arith.constant 0 : index
    %216 = vector.load %arg19[%c0_78, %c0_79, %c0_80] : memref<1x64x256xbf16, #tpu.memory_space<vmem>>, vector<1x64x256xbf16>
    %217 = vector.shape_cast %216 : vector<1x64x256xbf16> to vector<64x256xbf16>
    %218 = arith.truncf %215 : vector<16x64xf32> to vector<16x64xbf16>
    %cst_81 = arith.constant dense<0.000000e+00> : vector<16x256xf32>
    %219 = tpu.matmul %218, %217, %cst_81 {dimension_numbers = #tpu.dot_dimension_numbers<[1], [0], [0], [1], [0, 0, 1, 1], [], []>} : vector<16x64xbf16>, vector<64x256xbf16>, vector<16x256xf32> -> vector<16x256xf32>
    %220 = vector.extract_strided_slice %219 {offsets = [0, 0], sizes = [16, 128], strides = [1, 1]} : vector<16x256xf32> to vector<16x128xf32>
    %221 = vector.extract_strided_slice %219 {offsets = [0, 128], sizes = [16, 128], strides = [1, 1]} : vector<16x256xf32> to vector<16x128xf32>
    %222 = arith.negf %220 : vector<16x128xf32>
    %223 = math.exp %222 : vector<16x128xf32>
    %cst_82 = arith.constant 1.000000e+00 : f32
    %224 = vector.broadcast %cst_82 : f32 to vector<16x128xf32>
    %225 = arith.addf %224, %223 : vector<16x128xf32>
    %226 = arith.divf %224, %225 : vector<16x128xf32>
    %227 = arith.mulf %220, %226 : vector<16x128xf32>
    %228 = arith.mulf %227, %221 : vector<16x128xf32>
    %c0_83 = arith.constant 0 : index
    %c0_84 = arith.constant 0 : index
    %c0_85 = arith.constant 0 : index
    %229 = vector.load %arg20[%c0_83, %c0_84, %c0_85] : memref<1x128x64xbf16, #tpu.memory_space<vmem>>, vector<1x128x64xbf16>
    %230 = vector.shape_cast %229 : vector<1x128x64xbf16> to vector<128x64xbf16>
    %231 = arith.truncf %228 : vector<16x128xf32> to vector<16x128xbf16>
    %cst_86 = arith.constant dense<0.000000e+00> : vector<16x64xf32>
    %232 = tpu.matmul %231, %230, %cst_86 {dimension_numbers = #tpu.dot_dimension_numbers<[1], [0], [0], [1], [0, 0, 1, 1], [], []>} : vector<16x128xbf16>, vector<128x64xbf16>, vector<16x64xf32> -> vector<16x64xf32>
    %233 = arith.addf %200, %232 : vector<16x64xf32>
    %c0_87 = arith.constant 0 : index
    %c0_88 = arith.constant 0 : index
    %234 = vector.load %arg22[%c0_87, %c0_88] : memref<16x64xf32, #tpu.memory_space<vmem>>, vector<16x64xf32>
    tpu.vector_store %arg22[%c0_87, %c0_88], %233 {strides = array<i32>} : memref<16x64xf32, #tpu.memory_space<vmem>>, vector<16x64xf32>,
    %c1_i32 = arith.constant 1 : i32
    %235 = arith.cmpi eq, %arg0, %c1_i32 : i32
    %236 = arith.extui %235 : i1 to i32
    %c0_i32_89 = arith.constant 0 : i32
    %237 = arith.cmpi ne, %236, %c0_i32_89 : i32
    scf.if %237 {
      %c0_90 = arith.constant 0 : index
      %c0_91 = arith.constant 0 : index
      %238 = vector.load %arg11[%c0_90, %c0_91] : memref<1x64xf32, #tpu.memory_space<vmem>>, vector<1x64xf32>
      %239 = vector.shape_cast %238 : vector<1x64xf32> to vector<64xf32>
      %240 = arith.mulf %233, %233 : vector<16x64xf32>
      %cst_92 = arith.constant dense<0.000000e+00> : vector<16xf32>
      %241 = vector.multi_reduction <add>, %240, %cst_92 [1] : vector<16x64xf32> to vector<16xf32>
      %242 = vector.shape_cast %241 : vector<16xf32> to vector<16x1xf32>
      %cst_93 = arith.constant 6.400000e+01 : f32
      %243 = vector.broadcast %cst_93 : f32 to vector<16x1xf32>
      %244 = arith.divf %242, %243 : vector<16x1xf32>
      %cst_94 = arith.constant 9.99999974E-6 : f32
      %245 = vector.broadcast %cst_94 : f32 to vector<16x1xf32>
      %246 = arith.addf %244, %245 : vector<16x1xf32>
      %247 = math.rsqrt %246 : vector<16x1xf32>
      %248 = vector.broadcast %247 : vector<16x1xf32> to vector<16x64xf32>
      %249 = arith.mulf %233, %248 : vector<16x64xf32>
      %250 = vector.shape_cast %239 : vector<64xf32> to vector<1x64xf32>
      %251 = vector.broadcast %250 : vector<1x64xf32> to vector<16x64xf32>
      %252 = arith.mulf %249, %251 : vector<16x64xf32>
      %c0_95 = arith.constant 0 : index
      %c0_96 = arith.constant 0 : index
      %253 = vector.load %arg12[%c0_95, %c0_96] : memref<64x128xbf16, #tpu.memory_space<vmem>>, vector<64x128xbf16>
      %254 = arith.truncf %252 : vector<16x64xf32> to vector<16x64xbf16>
      %cst_97 = arith.constant dense<0.000000e+00> : vector<16x128xf32>
      %255 = tpu.matmul %254, %253, %cst_97 {dimension_numbers = #tpu.dot_dimension_numbers<[1], [0], [0], [1], [0, 0, 1, 1], [], []>} : vector<16x64xbf16>, vector<64x128xbf16>, vector<16x128xf32> -> vector<16x128xf32>
      %c0_98 = arith.constant 0 : index
      %c0_99 = arith.constant 0 : index
      %256 = vector.load %arg21[%c0_98, %c0_99] : memref<16x128xf32, #tpu.memory_space<vmem>>, vector<16x128xf32>
      tpu.vector_store %arg21[%c0_98, %c0_99], %255 {strides = array<i32>} : memref<16x128xf32, #tpu.memory_space<vmem>>, vector<16x128xf32>,
    } else {
    }
    return
  }
  func.func @transform_0(%arg0: i32) -> (i32, i32) {
    %c0_i32 = arith.constant 0 : i32
    %c0_i32_0 = arith.constant 0 : i32
    %c0_i32_1 = arith.constant 0 : i32
    return %c0_i32, %c0_i32_0 : i32, i32
  }
  func.func @transform_1(%arg0: i32) -> (i32, i32) {
    %c0_i32 = arith.constant 0 : i32
    %c0_i32_0 = arith.constant 0 : i32
    %c0_i32_1 = arith.constant 0 : i32
    return %c0_i32, %c0_i32_0 : i32, i32
  }
  func.func @transform_2(%arg0: i32) -> (i32, i32) {
    %c0_i32 = arith.constant 0 : i32
    %c0_i32_0 = arith.constant 0 : i32
    %c0_i32_1 = arith.constant 0 : i32
    return %c0_i32, %c0_i32_0 : i32, i32
  }
  func.func @transform_3(%arg0: i32) -> (i32, i32) {
    %c0_i32 = arith.constant 0 : i32
    %c0_i32_0 = arith.constant 0 : i32
    %c0_i32_1 = arith.constant 0 : i32
    return %c0_i32, %c0_i32_0 : i32, i32
  }
  func.func @transform_4(%arg0: i32) -> (i32, i32) {
    %c0_i32 = arith.constant 0 : i32
    %c0_i32_0 = arith.constant 0 : i32
    %c0_i32_1 = arith.constant 0 : i32
    return %c0_i32, %c0_i32_0 : i32, i32
  }
  func.func @transform_5(%arg0: i32) -> (i32, i32) {
    %c0_i32 = arith.constant 0 : i32
    %c0_i32_0 = arith.constant 0 : i32
    %c0_i32_1 = arith.constant 0 : i32
    return %c0_i32, %c0_i32_0 : i32, i32
  }
  func.func @transform_6(%arg0: i32) -> (i32, i32) {
    %c0_i32 = arith.constant 0 : i32
    %c0_i32_0 = arith.constant 0 : i32
    %c0_i32_1 = arith.constant 0 : i32
    return %c0_i32, %c0_i32_0 : i32, i32
  }
  func.func @transform_7(%arg0: i32) -> (i32, i32) {
    %c0_i32 = arith.constant 0 : i32
    %c0_i32_0 = arith.constant 0 : i32
    %c0_i32_1 = arith.constant 0 : i32
    return %c0_i32, %c0_i32_0 : i32, i32
  }
  func.func @transform_8(%arg0: i32) -> (i32, i32) {
    %c0_i32 = arith.constant 0 : i32
    %c0_i32_0 = arith.constant 0 : i32
    %c0_i32_1 = arith.constant 0 : i32
    return %c0_i32, %c0_i32_0 : i32, i32
  }
  func.func @transform_9(%arg0: i32) -> (i32, i32) {
    %c0_i32 = arith.constant 0 : i32
    %c0_i32_0 = arith.constant 0 : i32
    %c0_i32_1 = arith.constant 0 : i32
    return %c0_i32, %c0_i32_0 : i32, i32
  }
  func.func @transform_10(%arg0: i32) -> (i32, i32) {
    %c0_i32 = arith.constant 0 : i32
    %c0_i32_0 = arith.constant 0 : i32
    %c0_i32_1 = arith.constant 0 : i32
    return %c0_i32, %c0_i32_0 : i32, i32
  }
  func.func @transform_11(%arg0: i32) -> (i32, i32) {
    %c0_i32 = arith.constant 0 : i32
    %c0_i32_0 = arith.constant 0 : i32
    %c0_i32_1 = arith.constant 0 : i32
    return %c0_i32, %c0_i32_0 : i32, i32
  }
  func.func @transform_12(%arg0: i32) -> (i32, i32, i32) {
    %c0_i32 = arith.constant 0 : i32
    %c0_i32_0 = arith.constant 0 : i32
    %c0_i32_1 = arith.constant 0 : i32
    return %arg0, %c0_i32, %c0_i32_0 : i32, i32, i32
  }
  func.func @transform_13(%arg0: i32) -> (i32, i32, i32) {
    %c0_i32 = arith.constant 0 : i32
    %c0_i32_0 = arith.constant 0 : i32
    %c0_i32_1 = arith.constant 0 : i32
    return %arg0, %c0_i32, %c0_i32_0 : i32, i32, i32
  }
  func.func @transform_14(%arg0: i32) -> (i32, i32, i32) {
    %c0_i32 = arith.constant 0 : i32
    %c0_i32_0 = arith.constant 0 : i32
    %c0_i32_1 = arith.constant 0 : i32
    return %arg0, %c0_i32, %c0_i32_0 : i32, i32, i32
  }
  func.func @transform_15(%arg0: i32) -> (i32, i32, i32) {
    %c0_i32 = arith.constant 0 : i32
    %c0_i32_0 = arith.constant 0 : i32
    %c0_i32_1 = arith.constant 0 : i32
    return %arg0, %c0_i32, %c0_i32_0 : i32, i32, i32
  }
  func.func @transform_16(%arg0: i32) -> (i32, i32, i32) {
    %c0_i32 = arith.constant 0 : i32
    %c0_i32_0 = arith.constant 0 : i32
    %c0_i32_1 = arith.constant 0 : i32
    return %arg0, %c0_i32, %c0_i32_0 : i32, i32, i32
  }
  func.func @transform_17(%arg0: i32) -> (i32, i32, i32) {
    %c0_i32 = arith.constant 0 : i32
    %c0_i32_0 = arith.constant 0 : i32
    %c0_i32_1 = arith.constant 0 : i32
    return %arg0, %c0_i32, %c0_i32_0 : i32, i32, i32
  }
  func.func @transform_18(%arg0: i32) -> (i32, i32, i32) {
    %c0_i32 = arith.constant 0 : i32
    %c0_i32_0 = arith.constant 0 : i32
    %c0_i32_1 = arith.constant 0 : i32
    return %arg0, %c0_i32, %c0_i32_0 : i32, i32, i32
  }
  func.func @transform_19(%arg0: i32) -> (i32, i32, i32) {
    %c0_i32 = arith.constant 0 : i32
    %c0_i32_0 = arith.constant 0 : i32
    %c0_i32_1 = arith.constant 0 : i32
    return %arg0, %c0_i32, %c0_i32_0 : i32, i32, i32
  }
  func.func @transform_20(%arg0: i32) -> (i32, i32) {
    %c0_i32 = arith.constant 0 : i32
    %c0_i32_0 = arith.constant 0 : i32
    %c0_i32_1 = arith.constant 0 : i32
    return %c0_i32, %c0_i32_0 : i32, i32
  }
}

</mosaic_0001>

<llo_original>
// kernel: tile.50
$region0: #{tile.50}
  %s0 = inlined_call_operand.vmem [shape: f32[16,6,16], index: 0, kind: input, shape index: {}]
  %s1 = inlined_call_operand.vmem [shape: f32[16,96], index: 1, kind: output, shape index: {}]
  %v2 = vld [vmem:[%s0] ss:$8 sm:$0xf]
  %v3 = vld [vmem:[%s0] ss:$8 sm:$0xf0]
  %vm4 = vcmask 1047556
  %v5 = vsel %vm4, %v3, %v2
  %vm6 = vcmask 130048
  %7 = vst.msk [vmem:[%s1] sm:$0xff] %vm6, %v5
  %s8 = scalar_lea.vmem %s0, 64
  %v9 = vld [vmem:[%s8] ss:$8 sm:$0xf]
  %s10 = scalar_lea.vmem %s0, 64
  %v11 = vld [vmem:[%s10] ss:$8 sm:$0xf0]
  %vm12 = vcmask 1047556
  %v13 = vsel %vm12, %v11, %v9
  %vm14 = vcmask 130048
  %s15 = scalar_lea.vmem %s1, 8
  %16 = vst.msk [vmem:[%s15] sm:$0xff] %vm14, %v13
  %s17 = scalar_lea.vmem %s0, 5
  %v18 = vld [vmem:[%s17] ss:$8 sm:$0xf]
  %s19 = scalar_lea.vmem %s0, 5
  %v20 = vld [vmem:[%s19] ss:$8 sm:$0xf0]
  %vm21 = vcmask 1047556
  %v22 = vsel %vm21, %v20, %v18
  %23 = vrot.lane.b32.xlu0 %v22, 80
  %v24 = vpop.permute.xlu0 %23
  %vm25 = vcmask 786048
  %26 = vst.msk [vmem:[%s1] sm:$0xff] %vm25, %v24
  %s27 = scalar_lea.vmem %s0, 69
  %v28 = vld [vmem:[%s27] ss:$8 sm:$0xf]
  %s29 = scalar_lea.vmem %s0, 69
  %v30 = vld [vmem:[%s29] ss:$8 sm:$0xf0]
  %vm31 = vcmask 1047556
  %v32 = vsel %vm31, %v30, %v28
  %33 = vrot.lane.b32.xlu0 %v32, 80
  %v34 = vpop.permute.xlu0 %33
  %vm35 = vcmask 786048
  %s36 = scalar_lea.vmem %s1, 8
  %37 = vst.msk [vmem:[%s36] sm:$0xff] %vm35, %v34
  %s38 = scalar_lea.vmem %s0, 4
  %v39 = vld [vmem:[%s38] ss:$8 sm:$0xf]
  %s40 = scalar_lea.vmem %s0, 4
  %v41 = vld [vmem:[%s40] ss:$8 sm:$0xf0]
  %vm42 = vcmask 1047556
  %v43 = vsel %vm42, %v41, %v39
  %44 = vrot.lane.b32.xlu0 %v43, 64
  %v45 = vpop.permute.xlu0 %44
  %vm46 = vcmask 654848
  %47 = vst.msk [vmem:[%s1] sm:$0xff] %vm46, %v45
  %s48 = scalar_lea.vmem %s0, 68
  %v49 = vld [vmem:[%s48] ss:$8 sm:$0xf]
  %s50 = scalar_lea.vmem %s0, 68
  %v51 = vld [vmem:[%s50] ss:$8 sm:$0xf0]
  %vm52 = vcmask 1047556
  %v53 = vsel %vm52, %v51, %v49
  %54 = vrot.lane.b32.xlu0 %v53, 64
  %v55 = vpop.permute.xlu0 %54
  %vm56 = vcmask 654848
  %s57 = scalar_lea.vmem %s1, 8
  %58 = vst.msk [vmem:[%s57] sm:$0xff] %vm56, %v55
  %s59 = scalar_lea.vmem %s0, 3
  %v60 = vld [vmem:[%s59] ss:$8 sm:$0xf]
  %s61 = scalar_lea.vmem %s0, 3
  %v62 = vld [vmem:[%s61] ss:$8 sm:$0xf0]
  %vm63 = vcmask 1047556
  %v64 = vsel %vm63, %v62, %v60
  %65 = vrot.lane.b32.xlu0 %v64, 48
  %v66 = vpop.permute.xlu0 %65
  %vm67 = vcmask 523648
  %68 = vst.msk [vmem:[%s1] sm:$0xff] %vm67, %v66
  %s69 = scalar_lea.vmem %s0, 67
  %v70 = vld [vmem:[%s69] ss:$8 sm:$0xf]
  %s71 = scalar_lea.vmem %s0, 67
  %v72 = vld [vmem:[%s71] ss:$8 sm:$0xf0]
  %vm73 = vcmask 1047556
  %v74 = vsel %vm73, %v72, %v70
  %75 = vrot.lane.b32.xlu0 %v74, 48
  %v76 = vpop.permute.xlu0 %75
  %vm77 = vcmask 523648
  %s78 = scalar_lea.vmem %s1, 8
  %79 = vst.msk [vmem:[%s78] sm:$0xff] %vm77, %v76
  %s80 = scalar_lea.vmem %s0, 2
  %v81 = vld [vmem:[%s80] ss:$8 sm:$0xf]
  %s82 = scalar_lea.vmem %s0, 2
  %v83 = vld [vmem:[%s82] ss:$8 sm:$0xf0]
  %vm84 = vcmask 1047556
  %v85 = vsel %vm84, %v83, %v81
  %86 = vrot.lane.b32.xlu0 %v85, 32
  %v87 = vpop.permute.xlu0 %86
  %vm88 = vcmask 392448
  %89 = vst.msk [vmem:[%s1] sm:$0xff] %vm88, %v87
  %s90 = scalar_lea.vmem %s0, 66
  %v91 = vld [vmem:[%s90] ss:$8 sm:$0xf]
  %s92 = scalar_lea.vmem %s0, 66
  %v93 = vld [vmem:[%s92] ss:$8 sm:$0xf0]
  %vm94 = vcmask 1047556
  %v95 = vsel %vm94, %v93, %v91
  %96 = vrot.lane.b32.xlu0 %v95, 32
  %v97 = vpop.permute.xlu0 %96
  %vm98 = vcmask 392448
  %s99 = scalar_lea.vmem %s1, 8
  %100 = vst.msk [vmem:[%s99] sm:$0xff] %vm98, %v97
  %s101 = scalar_lea.vmem %s0, 1
  %v102 = vld [vmem:[%s101] ss:$8 sm:$0xf]
  %s103 = scalar_lea.vmem %s0, 1
  %v104 = vld [vmem:[%s103] ss:$8 sm:$0xf0]
  %vm105 = vcmask 1047556
  %v106 = vsel %vm105, %v104, %v102
  %107 = vrot.lane.b32.xlu0 %v106, 16
  %v108 = vpop.permute.xlu0 %107
  %vm109 = vcmask 261248
  %110 = vst.msk [vmem:[%s1] sm:$0xff] %vm109, %v108
  %s111 = scalar_lea.vmem %s0, 65
  %v112 = vld [vmem:[%s111] ss:$8 sm:$0xf]
  %s113 = scalar_lea.vmem %s0, 65
  %v114 = vld [vmem:[%s113] ss:$8 sm:$0xf0]
  %vm115 = vcmask 1047556
  %v116 = vsel %vm115, %v114, %v112
  %117 = vrot.lane.b32.xlu0 %v116, 16
  %v118 = vpop.permute.xlu0 %117
  %vm119 = vcmask 261248
  %s120 = scalar_lea.vmem %s1, 8
  %121 = vst.msk [vmem:[%s120] sm:$0xff] %vm119, %v118

// kernel: tile.60
$region0: #{tile.60}
  %s0 = inlined_call_operand.vmem [shape: f32[16,2,16], index: 0, kind: input, shape index: {}]
  %s1 = inlined_call_operand.vmem [shape: f32[16,32], index: 1, kind: output, shape index: {}]
  $region1: #{tile.60} parent=0
    #allocation0 [shape = 'u8[65536]{0}', space=vmem, size = 0x10000, scoped, tag = 'scoped mem for input reshape']
    %s3 = ssub.s32 4, 1
    %s4 = scalar_lea.vmem %s0, 30
    %v5 = vld [vmem:[%s4] sm:%s3]
    %s6 = scalar_lea.vmem [#allocation0], 120
    %7 = vst [vmem:[%s6] sm:%s3] %v5
    %s8 = scalar_lea.vmem %s0, 28
    %v9 = vld [vmem:[%s8] sm:%s3]
    %s10 = scalar_lea.vmem [#allocation0], 112
    %11 = vst [vmem:[%s10] sm:%s3] %v9
    %s12 = scalar_lea.vmem %s0, 26
    %v13 = vld [vmem:[%s12] sm:%s3]
    %s14 = scalar_lea.vmem [#allocation0], 104
    %15 = vst [vmem:[%s14] sm:%s3] %v13
    %s16 = scalar_lea.vmem %s0, 24
    %v17 = vld [vmem:[%s16] sm:%s3]
    %s18 = scalar_lea.vmem [#allocation0], 96
    %19 = vst [vmem:[%s18] sm:%s3] %v17
    %s20 = scalar_lea.vmem %s0, 22
    %v21 = vld [vmem:[%s20] sm:%s3]
    %s22 = scalar_lea.vmem [#allocation0], 88
    %23 = vst [vmem:[%s22] sm:%s3] %v21
    %s24 = scalar_lea.vmem %s0, 20
    %v25 = vld [vmem:[%s24] sm:%s3]
    %s26 = scalar_lea.vmem [#allocation0], 80
    %27 = vst [vmem:[%s26] sm:%s3] %v25
    %s28 = scalar_lea.vmem %s0, 18
    %v29 = vld [vmem:[%s28] sm:%s3]
    %s30 = scalar_lea.vmem [#allocation0], 72
    %31 = vst [vmem:[%s30] sm:%s3] %v29
    %s32 = scalar_lea.vmem %s0, 16
    %v33 = vld [vmem:[%s32] sm:%s3]
    %s34 = scalar_lea.vmem [#allocation0], 64
    %35 = vst [vmem:[%s34] sm:%s3] %v33
    %s36 = scalar_lea.vmem %s0, 14
    %v37 = vld [vmem:[%s36] sm:%s3]
    %s38 = scalar_lea.vmem [#allocation0], 56
    %39 = vst [vmem:[%s38] sm:%s3] %v37
    %s40 = scalar_lea.vmem %s0, 12
    %v41 = vld [vmem:[%s40] sm:%s3]
    %s42 = scalar_lea.vmem [#allocation0], 48
    %43 = vst [vmem:[%s42] sm:%s3] %v41
    %s44 = scalar_lea.vmem %s0, 10
    %v45 = vld [vmem:[%s44] sm:%s3]
    %s46 = scalar_lea.vmem [#allocation0], 40
    %47 = vst [vmem:[%s46] sm:%s3] %v45
    %s48 = scalar_lea.vmem %s0, 8
    %v49 = vld [vmem:[%s48] sm:%s3]
    %s50 = scalar_lea.vmem [#allocation0], 32
    %51 = vst [vmem:[%s50] sm:%s3] %v49
    %s52 = scalar_lea.vmem %s0, 6
    %v53 = vld [vmem:[%s52] sm:%s3]
    %s54 = scalar_lea.vmem [#allocation0], 24
    %55 = vst [vmem:[%s54] sm:%s3] %v53
    %s56 = scalar_lea.vmem %s0, 4
    %v57 = vld [vmem:[%s56] sm:%s3]
    %s58 = scalar_lea.vmem [#allocation0], 16
    %59 = vst [vmem:[%s58] sm:%s3] %v57
    %s60 = scalar_lea.vmem %s0, 2
    %v61 = vld [vmem:[%s60] sm:%s3]
    %s62 = scalar_lea.vmem [#allocation0], 8
    %63 = vst [vmem:[%s62] sm:%s3] %v61
    %v64 = vld [vmem:[%s0] sm:%s3]
    %65 = vst [vmem:[#allocation0] sm:%s3] %v64
    %v66 = vld [vmem:[#allocation0] ss:$8 sm:$0xf]
    %v67 = vld [vmem:[#allocation0] ss:$8 sm:$0xf0]
    %vm68 = vcmask 1047556
    %v69 = vsel %vm68, %v67, %v66
    %vm70 = vcmask 130048
    %71 = vst.msk [vmem:[%s1] sm:$0xff] %vm70, %v69
    %s72 = scalar_lea.vmem [#allocation0], 64
    %v73 = vld [vmem:[%s72] ss:$8 sm:$0xf]
    %s74 = scalar_lea.vmem [#allocation0], 64
    %v75 = vld [vmem:[%s74] ss:$8 sm:$0xf0]
    %vm76 = vcmask 1047556
    %v77 = vsel %vm76, %v75, %v73
    %vm78 = vcmask 130048
    %s79 = scalar_lea.vmem %s1, 8
    %80 = vst.msk [vmem:[%s79] sm:$0xff] %vm78, %v77
    %s81 = scalar_lea.vmem [#allocation0], 1
    %v82 = vld [vmem:[%s81] ss:$8 sm:$0xf]
    %s83 = scalar_lea.vmem [#allocation0], 1
    %v84 = vld [vmem:[%s83] ss:$8 sm:$0xf0]
    %vm85 = vcmask 1047556
    %v86 = vsel %vm85, %v84, %v82
    %87 = vrot.lane.b32.xlu0 %v86, 16
    %v88 = vpop.permute.xlu0 %87
    %vm89 = vcmask 261248
    %90 = vst.msk [vmem:[%s1] sm:$0xff] %vm89, %v88
    %s91 = scalar_lea.vmem [#allocation0], 65
    %v92 = vld [vmem:[%s91] ss:$8 sm:$0xf]
    %s93 = scalar_lea.vmem [#allocation0], 65
    %v94 = vld [vmem:[%s93] ss:$8 sm:$0xf0]
    %vm95 = vcmask 1047556
    %v96 = vsel %vm95, %v94, %v92
    %97 = vrot.lane.b32.xlu0 %v96, 16
    %v98 = vpop.permute.xlu0 %97
    %vm99 = vcmask 261248
    %s100 = scalar_lea.vmem %s1, 8
    %101 = vst.msk [vmem:[%s100] sm:$0xff] %vm99, %v98

// kernel: eq.25
$region0: #{eq.25}
  %s0 = inlined_call_operand.vmem [shape: s32[2,16], index: 0, kind: input, shape index: {}]
  %s1 = inlined_call_operand.vmem [shape: s32[32], index: 1, kind: output, shape index: {}]
  $region1: #{eq.25} parent=0
    #allocation0 [shape = 'u8[4096]{0}', space=vmem, size = 0x1000, scoped, tag = 'scoped mem for output reshape']
    #allocation1 [shape = 'u8[4096]{0}', space=vmem, size = 0x1000, scoped, tag = 'scoped mem for input reshape']
    %s3 = ssub.s32 4, 1
    %v4 = vld [vmem:[%s0] sm:%s3]
    %5 = vst [vmem:[#allocation1] sm:%s3] %v4
    %v6 = vld [vmem:[#allocation1] sm:$0x1]
    %vm7 = vcmask 130048
    %8 = vst.msk [vmem:[#allocation0] sm:$0x1] %vm7, %v6
    %s9 = scalar_lea.vmem [#allocation1], 1
    %v10 = vld [vmem:[%s9] sm:$0x1]
    %11 = vrot.lane.b32.xlu0 %v10, 16
    %v12 = vpop.permute.xlu0 %11
    %vm13 = vcmask 261248
    %14 = vst.msk [vmem:[#allocation0] sm:$0x1] %vm13, %v12
    %s16 = ssub.s32 2, 1
    %v17 = vld [vmem:[#allocation0] sm:%s16]
    %s19 = ssub.s32 2, 1
    %20 = vst [vmem:[%s1] sm:%s19] %v17

// kernel: decoder_forward_pallas.1
$region0: #{decoder_forward_pallas.1}
  #allocation0 [shape = 'u32[]', space=smem, size = 0x4, offset = 0x4, fixed_abs, tag = 'smem constant byte address 0x4 - core index']
  #allocation1 [shape = 'u32[72,128]{1,0:T(1,128)}', space=vmem, size = 0x9000, scoped, tag = 'internal scratch']
  #allocation2 [shape = 'f32[16,64]{1,0:T(8,128)}', space=vmem, size = 0x2000, scoped, tag = 'scratch operand']
  %s0 = inlined_call_operand.vmem [shape: f32[16,64], index: 0, kind: input, shape index: {}]
  %s1 = inlined_call_operand.vmem [shape: f32[32,32], index: 1, kind: input, shape index: {}]
  %s2 = inlined_call_operand.vmem [shape: f32[16,16], index: 2, kind: input, shape index: {}]
  %s3 = inlined_call_operand.vmem [shape: f32[16,32], index: 3, kind: input, shape index: {}]
  %s4 = inlined_call_operand.vmem [shape: f32[16,256], index: 4, kind: input, shape index: {}]
  %s5 = inlined_call_operand.vmem [shape: f32[16,64], index: 5, kind: input, shape index: {}]
  %s6 = inlined_call_operand.vmem [shape: f32[32,128], index: 6, kind: input, shape index: {}]
  %s7 = inlined_call_operand.vmem [shape: bf16[128,128], index: 7, kind: input, shape index: {}]
  %s8 = inlined_call_operand.vmem [shape: bf16[32,32], index: 8, kind: input, shape index: {}]
  %s9 = inlined_call_operand.vmem [shape: bf16[64,64], index: 9, kind: input, shape index: {}]
  %s10 = inlined_call_operand.vmem [shape: f32[1,64], index: 10, kind: input, shape index: {}]
  %s11 = inlined_call_operand.vmem [shape: bf16[64,128], index: 11, kind: input, shape index: {}]
  %s12 = inlined_call_operand.vmem [shape: f32[2,3,64], index: 12, kind: input, shape index: {}]
  %s13 = inlined_call_operand.vmem [shape: bf16[2,64,128], index: 13, kind: input, shape index: {}]
  %s14 = inlined_call_operand.vmem [shape: bf16[2,64,64], index: 14, kind: input, shape index: {}]
  %s15 = inlined_call_operand.vmem [shape: bf16[2,64,32], index: 15, kind: input, shape index: {}]
  %s16 = inlined_call_operand.vmem [shape: bf16[2,32,64], index: 16, kind: input, shape index: {}]
  %s17 = inlined_call_operand.vmem [shape: bf16[2,32,64], index: 17, kind: input, shape index: {}]
  %s18 = inlined_call_operand.vmem [shape: bf16[2,64,256], index: 18, kind: input, shape index: {}]
  %s19 = inlined_call_operand.vmem [shape: bf16[2,128,64], index: 19, kind: input, shape index: {}]
  %s20 = inlined_call_operand.vmem [shape: f32[16,128], index: 20, kind: output, shape index: {}]
  %s21 = sld [smem:[#allocation0]]
  $region121: #{decoder_forward_pallas.1} parent=0
    _
  %s23 = ssub.s32 1, %s21
  %s24 = scalar_select 0, %s23, %s21
  loop: start=0, step=1, limit=4
  $region2: #{decoder_forward_pallas.1} parent=0 // loop_pre_header
    _
  $region3: #{decoder_forward_pallas.1} parent=0 // loop_header
    %s26 = sphi 0, %s30
    %p27 = scmp.ge.s32.totalorder %s26, 4
    %s34 = sphi 0, %s34
    %s36 = sphi 0, %s34
    %s37 = sphi 0, %s36
    %s51 = sphi 0, %s37
    %s55 = sphi 0, %s55
    %s57 = sphi 0, %s55
    %s58 = sphi 0, %s57
    %s72 = sphi 0, %s58
    %s76 = sphi 0, %s76
    %s78 = sphi 0, %s76
    %s79 = sphi 0, %s78
    %s93 = sphi 0, %s79
    %s97 = sphi 0, %s97
    %s99 = sphi 0, %s97
    %s100 = sphi 0, %s99
    %s114 = sphi 0, %s100
    %s118 = sphi 0, %s118
    %s120 = sphi 0, %s118
    %s121 = sphi 0, %s120
    %s135 = sphi 0, %s121
    %s139 = sphi 0, %s139
    %s141 = sphi 0, %s139
    %s142 = sphi 0, %s141
    %s156 = sphi 0, %s142
    %s160 = sphi 0, %s160
    %s162 = sphi 0, %s160
    %s163 = sphi 0, %s162
    %s177 = sphi 0, %s163
    %s181 = sphi 0, %s181
    %s183 = sphi 0, %s181
    %s184 = sphi 0, %s183
    %s198 = sphi 0, %s184
    %s202 = sphi 0, %s202
    %s204 = sphi 0, %s202
    %s205 = sphi 0, %s204
    %s219 = sphi 0, %s205
    %s223 = sphi 0, %s223
    %s225 = sphi 0, %s223
    %s226 = sphi 0, %s225
    %s240 = sphi 0, %s226
    %s244 = sphi 0, %s244
    %s246 = sphi 0, %s244
    %s247 = sphi 0, %s246
    %s261 = sphi 0, %s247
    %s265 = sphi 0, %s265
    %s267 = sphi 0, %s265
    %s268 = sphi 0, %s267
    %s282 = sphi 0, %s268
    %s288 = sphi 0, %s290
    %s291 = sphi 0, %s288
    %s292 = sphi 0, %s291
    %s308 = sphi 0, %s292
    %s314 = sphi 0, %s316
    %s317 = sphi 0, %s314
    %s318 = sphi 0, %s317
    %s334 = sphi 0, %s318
    %s340 = sphi 0, %s342
    %s343 = sphi 0, %s340
    %s344 = sphi 0, %s343
    %s360 = sphi 0, %s344
    %s366 = sphi 0, %s368
    %s369 = sphi 0, %s366
    %s370 = sphi 0, %s369
    %s386 = sphi 0, %s370
    %s392 = sphi 0, %s394
    %s395 = sphi 0, %s392
    %s396 = sphi 0, %s395
    %s412 = sphi 0, %s396
    %s418 = sphi 0, %s420
    %s421 = sphi 0, %s418
    %s422 = sphi 0, %s421
    %s438 = sphi 0, %s422
    %s444 = sphi 0, %s446
    %s447 = sphi 0, %s444
    %s448 = sphi 0, %s447
    %s464 = sphi 0, %s448
    %s470 = sphi 0, %s472
    %s473 = sphi 0, %s470
    %s474 = sphi 0, %s473
    %s490 = sphi 0, %s474
    %s494 = sphi 0, %s494
    %s496 = sphi 0, %s494
    %s497 = sphi 0, %s496
    %s511 = sphi 0, %s497
  $region4: #{decoder_forward_pallas.1} parent=0 // loop_header_branch
    %29 = sbr.rel (%p27) target = $region8
  $region5: #{decoder_forward_pallas.1} parent=0 // loop_body
    %s31 = ssub.s32 %s26, 1
    %s32 = ssub.s32 %s26, 2
    %s33 = sadd.s32 %s26, 1
    %s35 = sadd.s32 %s34, 1
    %p38 = scmp.eq.s32.totalorder %s26, 1
    %p39 = scmp.ne.s32.totalorder %s34, %s36
    %p40 = scmp.eq.s32.totalorder %s26, 0
    %p41 = por %p39, %p40
    %p42 = scmp.ne.s32.totalorder %s34, %s36
    %p43 = scmp.eq.s32.totalorder %s31, 1
    %p44 = por %p42, %p43
    %p45 = scmp.ne.s32.totalorder %s36, %s37
    %p46 = scmp.eq.s32.totalorder %s31, 0
    %p47 = por %p45, %p46
    %p48 = scmp.ne.s32.totalorder %s36, %s37
    %p49 = scmp.eq.s32.totalorder %s32, 1
    %p50 = por %p48, %p49
    %p52 = scmp.ne.s32.totalorder %s37, %s51
    %p53 = scmp.eq.s32.totalorder %s32, 0
    %p54 = por %p52, %p53
    %s56 = sadd.s32 %s55, 1
    %p59 = scmp.eq.s32.totalorder %s26, 1
    %p60 = scmp.ne.s32.totalorder %s55, %s57
    %p61 = scmp.eq.s32.totalorder %s26, 0
    %p62 = por %p60, %p61
    %p63 = scmp.ne.s32.totalorder %s55, %s57
    %p64 = scmp.eq.s32.totalorder %s31, 1
    %p65 = por %p63, %p64
    %p66 = scmp.ne.s32.totalorder %s57, %s58
    %p67 = scmp.eq.s32.totalorder %s31, 0
    %p68 = por %p66, %p67
    %p69 = scmp.ne.s32.totalorder %s57, %s58
    %p70 = scmp.eq.s32.totalorder %s32, 1
    %p71 = por %p69, %p70
    %p73 = scmp.ne.s32.totalorder %s58, %s72
    %p74 = scmp.eq.s32.totalorder %s32, 0
    %p75 = por %p73, %p74
    %s77 = sadd.s32 %s76, 1
    %p80 = scmp.eq.s32.totalorder %s26, 1
    %p81 = scmp.ne.s32.totalorder %s76, %s78
    %p82 = scmp.eq.s32.totalorder %s26, 0
    %p83 = por %p81, %p82
    %p84 = scmp.ne.s32.totalorder %s76, %s78
    %p85 = scmp.eq.s32.totalorder %s31, 1
    %p86 = por %p84, %p85
    %p87 = scmp.ne.s32.totalorder %s78, %s79
    %p88 = scmp.eq.s32.totalorder %s31, 0
    %p89 = por %p87, %p88
    %p90 = scmp.ne.s32.totalorder %s78, %s79
    %p91 = scmp.eq.s32.totalorder %s32, 1
    %p92 = por %p90, %p91
    %p94 = scmp.ne.s32.totalorder %s79, %s93
    %p95 = scmp.eq.s32.totalorder %s32, 0
    %p96 = por %p94, %p95
    %s98 = sadd.s32 %s97, 1
    %p101 = scmp.eq.s32.totalorder %s26, 1
    %p102 = scmp.ne.s32.totalorder %s97, %s99
    %p103 = scmp.eq.s32.totalorder %s26, 0
    %p104 = por %p102, %p103
    %p105 = scmp.ne.s32.totalorder %s97, %s99
    %p106 = scmp.eq.s32.totalorder %s31, 1
    %p107 = por %p105, %p106
    %p108 = scmp.ne.s32.totalorder %s99, %s100
    %p109 = scmp.eq.s32.totalorder %s31, 0
    %p110 = por %p108, %p109
    %p111 = scmp.ne.s32.totalorder %s99, %s100
    %p112 = scmp.eq.s32.totalorder %s32, 1
    %p113 = por %p111, %p112
    %p115 = scmp.ne.s32.totalorder %s100, %s114
    %p116 = scmp.eq.s32.totalorder %s32, 0
    %p117 = por %p115, %p116
    %s119 = sadd.s32 %s118, 1
    %p122 = scmp.eq.s32.totalorder %s26, 1
    %p123 = scmp.ne.s32.totalorder %s118, %s120
    %p124 = scmp.eq.s32.totalorder %s26, 0
    %p125 = por %p123, %p124
    %p126 = scmp.ne.s32.totalorder %s118, %s120
    %p127 = scmp.eq.s32.totalorder %s31, 1
    %p128 = por %p126, %p127
    %p129 = scmp.ne.s32.totalorder %s120, %s121
    %p130 = scmp.eq.s32.totalorder %s31, 0
    %p131 = por %p129, %p130
    %p132 = scmp.ne.s32.totalorder %s120, %s121
    %p133 = scmp.eq.s32.totalorder %s32, 1
    %p134 = por %p132, %p133
    %p136 = scmp.ne.s32.totalorder %s121, %s135
    %p137 = scmp.eq.s32.totalorder %s32, 0
    %p138 = por %p136, %p137
    %s140 = sadd.s32 %s139, 1
    %p143 = scmp.eq.s32.totalorder %s26, 1
    %p144 = scmp.ne.s32.totalorder %s139, %s141
    %p145 = scmp.eq.s32.totalorder %s26, 0
    %p146 = por %p144, %p145
    %p147 = scmp.ne.s32.totalorder %s139, %s141
    %p148 = scmp.eq.s32.totalorder %s31, 1
    %p149 = por %p147, %p148
    %p150 = scmp.ne.s32.totalorder %s141, %s142
    %p151 = scmp.eq.s32.totalorder %s31, 0
    %p152 = por %p150, %p151
    %p153 = scmp.ne.s32.totalorder %s141, %s142
    %p154 = scmp.eq.s32.totalorder %s32, 1
    %p155 = por %p153, %p154
    %p157 = scmp.ne.s32.totalorder %s142, %s156
    %p158 = scmp.eq.s32.totalorder %s32, 0
    %p159 = por %p157, %p158
    %s161 = sadd.s32 %s160, 1
    %p164 = scmp.eq.s32.totalorder %s26, 1
    %p165 = scmp.ne.s32.totalorder %s160, %s162
    %p166 = scmp.eq.s32.totalorder %s26, 0
    %p167 = por %p165, %p166
    %p168 = scmp.ne.s32.totalorder %s160, %s162
    %p169 = scmp.eq.s32.totalorder %s31, 1
    %p170 = por %p168, %p169
    %p171 = scmp.ne.s32.totalorder %s162, %s163
    %p172 = scmp.eq.s32.totalorder %s31, 0
    %p173 = por %p171, %p172
    %p174 = scmp.ne.s32.totalorder %s162, %s163
    %p175 = scmp.eq.s32.totalorder %s32, 1
    %p176 = por %p174, %p175
    %p178 = scmp.ne.s32.totalorder %s163, %s177
    %p179 = scmp.eq.s32.totalorder %s32, 0
    %p180 = por %p178, %p179
    %s182 = sadd.s32 %s181, 1
    %p185 = scmp.eq.s32.totalorder %s26, 1
    %p186 = scmp.ne.s32.totalorder %s181, %s183
    %p187 = scmp.eq.s32.totalorder %s26, 0
    %p188 = por %p186, %p187
    %p189 = scmp.ne.s32.totalorder %s181, %s183
    %p190 = scmp.eq.s32.totalorder %s31, 1
    %p191 = por %p189, %p190
    %p192 = scmp.ne.s32.totalorder %s183, %s184
    %p193 = scmp.eq.s32.totalorder %s31, 0
    %p194 = por %p192, %p193
    %p195 = scmp.ne.s32.totalorder %s183, %s184
    %p196 = scmp.eq.s32.totalorder %s32, 1
    %p197 = por %p195, %p196
    %p199 = scmp.ne.s32.totalorder %s184, %s198
    %p200 = scmp.eq.s32.totalorder %s32, 0
    %p201 = por %p199, %p200
    %s203 = sadd.s32 %s202, 1
    %p206 = scmp.eq.s32.totalorder %s26, 1
    %p207 = scmp.ne.s32.totalorder %s202, %s204
    %p208 = scmp.eq.s32.totalorder %s26, 0
    %p209 = por %p207, %p208
    %p210 = scmp.ne.s32.totalorder %s202, %s204
    %p211 = scmp.eq.s32.totalorder %s31, 1
    %p212 = por %p210, %p211
    %p213 = scmp.ne.s32.totalorder %s204, %s205
    %p214 = scmp.eq.s32.totalorder %s31, 0
    %p215 = por %p213, %p214
    %p216 = scmp.ne.s32.totalorder %s204, %s205
    %p217 = scmp.eq.s32.totalorder %s32, 1
    %p218 = por %p216, %p217
    %p220 = scmp.ne.s32.totalorder %s205, %s219
    %p221 = scmp.eq.s32.totalorder %s32, 0
    %p222 = por %p220, %p221
    %s224 = sadd.s32 %s223, 1
    %p227 = scmp.eq.s32.totalorder %s26, 1
    %p228 = scmp.ne.s32.totalorder %s223, %s225
    %p229 = scmp.eq.s32.totalorder %s26, 0
    %p230 = por %p228, %p229
    %p231 = scmp.ne.s32.totalorder %s223, %s225
    %p232 = scmp.eq.s32.totalorder %s31, 1
    %p233 = por %p231, %p232
    %p234 = scmp.ne.s32.totalorder %s225, %s226
    %p235 = scmp.eq.s32.totalorder %s31, 0
    %p236 = por %p234, %p235
    %p237 = scmp.ne.s32.totalorder %s225, %s226
    %p238 = scmp.eq.s32.totalorder %s32, 1
    %p239 = por %p237, %p238
    %p241 = scmp.ne.s32.totalorder %s226, %s240
    %p242 = scmp.eq.s32.totalorder %s32, 0
    %p243 = por %p241, %p242
    %s245 = sadd.s32 %s244, 1
    %p248 = scmp.eq.s32.totalorder %s26, 1
    %p249 = scmp.ne.s32.totalorder %s244, %s246
    %p250 = scmp.eq.s32.totalorder %s26, 0
    %p251 = por %p249, %p250
    %p252 = scmp.ne.s32.totalorder %s244, %s246
    %p253 = scmp.eq.s32.totalorder %s31, 1
    %p254 = por %p252, %p253
    %p255 = scmp.ne.s32.totalorder %s246, %s247
    %p256 = scmp.eq.s32.totalorder %s31, 0
    %p257 = por %p255, %p256
    %p258 = scmp.ne.s32.totalorder %s246, %s247
    %p259 = scmp.eq.s32.totalorder %s32, 1
    %p260 = por %p258, %p259
    %p262 = scmp.ne.s32.totalorder %s247, %s261
    %p263 = scmp.eq.s32.totalorder %s32, 0
    %p264 = por %p262, %p263
    %s266 = sadd.s32 %s265, 1
    %p269 = scmp.eq.s32.totalorder %s26, 1
    %p270 = scmp.ne.s32.totalorder %s265, %s267
    %p271 = scmp.eq.s32.totalorder %s26, 0
    %p272 = por %p270, %p271
    %p273 = scmp.ne.s32.totalorder %s265, %s267
    %p274 = scmp.eq.s32.totalorder %s31, 1
    %p275 = por %p273, %p274
    %p276 = scmp.ne.s32.totalorder %s267, %s268
    %p277 = scmp.eq.s32.totalorder %s31, 0
    %p278 = por %p276, %p277
    %p279 = scmp.ne.s32.totalorder %s267, %s268
    %p280 = scmp.eq.s32.totalorder %s32, 1
    %p281 = por %p279, %p280
    %p283 = scmp.ne.s32.totalorder %s268, %s282
    %p284 = scmp.eq.s32.totalorder %s32, 0
    %p285 = por %p283, %p284
    %s286 = ssub.s32 %s26, %s33
    %p287 = scmp.eq.s32.totalorder %s286, 0
    %s289 = sadd.s32 %s288, 1
    %s290 = scalar_select %p287, %s288, %s289
    %p293 = pneg %p287
    %p294 = scmp.eq.s32.totalorder %s26, 1
    %p295 = por %p293, %p294
    %p296 = scmp.ne.s32.totalorder %s288, %s291
    %p297 = scmp.eq.s32.totalorder %s26, 0
    %p298 = por %p296, %p297
    %p299 = scmp.ne.s32.totalorder %s288, %s291
    %p300 = scmp.eq.s32.totalorder %s31, 1
    %p301 = por %p299, %p300
    %p302 = scmp.ne.s32.totalorder %s291, %s292
    %p303 = scmp.eq.s32.totalorder %s31, 0
    %p304 = por %p302, %p303
    %p305 = scmp.ne.s32.totalorder %s291, %s292
    %p306 = scmp.eq.s32.totalorder %s32, 1
    %p307 = por %p305, %p306
    %p309 = scmp.ne.s32.totalorder %s292, %s308
    %p310 = scmp.eq.s32.totalorder %s32, 0
    %p311 = por %p309, %p310
    %s312 = ssub.s32 %s26, %s33
    %p313 = scmp.eq.s32.totalorder %s312, 0
    %s315 = sadd.s32 %s314, 1
    %s316 = scalar_select %p313, %s314, %s315
    %p319 = pneg %p313
    %p320 = scmp.eq.s32.totalorder %s26, 1
    %p321 = por %p319, %p320
    %p322 = scmp.ne.s32.totalorder %s314, %s317
    %p323 = scmp.eq.s32.totalorder %s26, 0
    %p324 = por %p322, %p323
    %p325 = scmp.ne.s32.totalorder %s314, %s317
    %p326 = scmp.eq.s32.totalorder %s31, 1
    %p327 = por %p325, %p326
    %p328 = scmp.ne.s32.totalorder %s317, %s318
    %p329 = scmp.eq.s32.totalorder %s31, 0
    %p330 = por %p328, %p329
    %p331 = scmp.ne.s32.totalorder %s317, %s318
    %p332 = scmp.eq.s32.totalorder %s32, 1
    %p333 = por %p331, %p332
    %p335 = scmp.ne.s32.totalorder %s318, %s334
    %p336 = scmp.eq.s32.totalorder %s32, 0
    %p337 = por %p335, %p336
    %s338 = ssub.s32 %s26, %s33
    %p339 = scmp.eq.s32.totalorder %s338, 0
    %s341 = sadd.s32 %s340, 1
    %s342 = scalar_select %p339, %s340, %s341
    %p345 = pneg %p339
    %p346 = scmp.eq.s32.totalorder %s26, 1
    %p347 = por %p345, %p346
    %p348 = scmp.ne.s32.totalorder %s340, %s343
    %p349 = scmp.eq.s32.totalorder %s26, 0
    %p350 = por %p348, %p349
    %p351 = scmp.ne.s32.totalorder %s340, %s343
    %p352 = scmp.eq.s32.totalorder %s31, 1
    %p353 = por %p351, %p352
    %p354 = scmp.ne.s32.totalorder %s343, %s344
    %p355 = scmp.eq.s32.totalorder %s31, 0
    %p356 = por %p354, %p355
    %p357 = scmp.ne.s32.totalorder %s343, %s344
    %p358 = scmp.eq.s32.totalorder %s32, 1
    %p359 = por %p357, %p358
    %p361 = scmp.ne.s32.totalorder %s344, %s360
    %p362 = scmp.eq.s32.totalorder %s32, 0
    %p363 = por %p361, %p362
    %s364 = ssub.s32 %s26, %s33
    %p365 = scmp.eq.s32.totalorder %s364, 0
    %s367 = sadd.s32 %s366, 1
    %s368 = scalar_select %p365, %s366, %s367
    %p371 = pneg %p365
    %p372 = scmp.eq.s32.totalorder %s26, 1
    %p373 = por %p371, %p372
    %p374 = scmp.ne.s32.totalorder %s366, %s369
    %p375 = scmp.eq.s32.totalorder %s26, 0
    %p376 = por %p374, %p375
    %p377 = scmp.ne.s32.totalorder %s366, %s369
    %p378 = scmp.eq.s32.totalorder %s31, 1
    %p379 = por %p377, %p378
    %p380 = scmp.ne.s32.totalorder %s369, %s370
    %p381 = scmp.eq.s32.totalorder %s31, 0
    %p382 = por %p380, %p381
    %p383 = scmp.ne.s32.totalorder %s369, %s370
    %p384 = scmp.eq.s32.totalorder %s32, 1
    %p385 = por %p383, %p384
    %p387 = scmp.ne.s32.totalorder %s370, %s386
    %p388 = scmp.eq.s32.totalorder %s32, 0
    %p389 = por %p387, %p388
    %s390 = ssub.s32 %s26, %s33
    %p391 = scmp.eq.s32.totalorder %s390, 0
    %s393 = sadd.s32 %s392, 1
    %s394 = scalar_select %p391, %s392, %s393
    %p397 = pneg %p391
    %p398 = scmp.eq.s32.totalorder %s26, 1
    %p399 = por %p397, %p398
    %p400 = scmp.ne.s32.totalorder %s392, %s395
    %p401 = scmp.eq.s32.totalorder %s26, 0
    %p402 = por %p400, %p401
    %p403 = scmp.ne.s32.totalorder %s392, %s395
    %p404 = scmp.eq.s32.totalorder %s31, 1
    %p405 = por %p403, %p404
    %p406 = scmp.ne.s32.totalorder %s395, %s396
    %p407 = scmp.eq.s32.totalorder %s31, 0
    %p408 = por %p406, %p407
    %p409 = scmp.ne.s32.totalorder %s395, %s396
    %p410 = scmp.eq.s32.totalorder %s32, 1
    %p411 = por %p409, %p410
    %p413 = scmp.ne.s32.totalorder %s396, %s412
    %p414 = scmp.eq.s32.totalorder %s32, 0
    %p415 = por %p413, %p414
    %s416 = ssub.s32 %s26, %s33
    %p417 = scmp.eq.s32.totalorder %s416, 0
    %s419 = sadd.s32 %s418, 1
    %s420 = scalar_select %p417, %s418, %s419
    %p423 = pneg %p417
    %p424 = scmp.eq.s32.totalorder %s26, 1
    %p425 = por %p423, %p424
    %p426 = scmp.ne.s32.totalorder %s418, %s421
    %p427 = scmp.eq.s32.totalorder %s26, 0
    %p428 = por %p426, %p427
    %p429 = scmp.ne.s32.totalorder %s418, %s421
    %p430 = scmp.eq.s32.totalorder %s31, 1
    %p431 = por %p429, %p430
    %p432 = scmp.ne.s32.totalorder %s421, %s422
    %p433 = scmp.eq.s32.totalorder %s31, 0
    %p434 = por %p432, %p433
    %p435 = scmp.ne.s32.totalorder %s421, %s422
    %p436 = scmp.eq.s32.totalorder %s32, 1
    %p437 = por %p435, %p436
    %p439 = scmp.ne.s32.totalorder %s422, %s438
    %p440 = scmp.eq.s32.totalorder %s32, 0
    %p441 = por %p439, %p440
    %s442 = ssub.s32 %s26, %s33
    %p443 = scmp.eq.s32.totalorder %s442, 0
    %s445 = sadd.s32 %s444, 1
    %s446 = scalar_select %p443, %s444, %s445
    %p449 = pneg %p443
    %p450 = scmp.eq.s32.totalorder %s26, 1
    %p451 = por %p449, %p450
    %p452 = scmp.ne.s32.totalorder %s444, %s447
    %p453 = scmp.eq.s32.totalorder %s26, 0
    %p454 = por %p452, %p453
    %p455 = scmp.ne.s32.totalorder %s444, %s447
    %p456 = scmp.eq.s32.totalorder %s31, 1
    %p457 = por %p455, %p456
    %p458 = scmp.ne.s32.totalorder %s447, %s448
    %p459 = scmp.eq.s32.totalorder %s31, 0
    %p460 = por %p458, %p459
    %p461 = scmp.ne.s32.totalorder %s447, %s448
    %p462 = scmp.eq.s32.totalorder %s32, 1
    %p463 = por %p461, %p462
    %p465 = scmp.ne.s32.totalorder %s448, %s464
    %p466 = scmp.eq.s32.totalorder %s32, 0
    %p467 = por %p465, %p466
    %s468 = ssub.s32 %s26, %s33
    %p469 = scmp.eq.s32.totalorder %s468, 0
    %s471 = sadd.s32 %s470, 1
    %s472 = scalar_select %p469, %s470, %s471
    %p475 = pneg %p469
    %p476 = scmp.eq.s32.totalorder %s26, 1
    %p477 = por %p475, %p476
    %p478 = scmp.ne.s32.totalorder %s470, %s473
    %p479 = scmp.eq.s32.totalorder %s26, 0
    %p480 = por %p478, %p479
    %p481 = scmp.ne.s32.totalorder %s470, %s473
    %p482 = scmp.eq.s32.totalorder %s31, 1
    %p483 = por %p481, %p482
    %p484 = scmp.ne.s32.totalorder %s473, %s474
    %p485 = scmp.eq.s32.totalorder %s31, 0
    %p486 = por %p484, %p485
    %p487 = scmp.ne.s32.totalorder %s473, %s474
    %p488 = scmp.eq.s32.totalorder %s32, 1
    %p489 = por %p487, %p488
    %p491 = scmp.ne.s32.totalorder %s474, %s490
    %p492 = scmp.eq.s32.totalorder %s32, 0
    %p493 = por %p491, %p492
    %s495 = sadd.s32 %s494, 1
    %p498 = scmp.eq.s32.totalorder %s26, 1
    %p499 = scmp.ne.s32.totalorder %s494, %s496
    %p500 = scmp.eq.s32.totalorder %s26, 0
    %p501 = por %p499, %p500
    %p502 = scmp.ne.s32.totalorder %s494, %s496
    %p503 = scmp.eq.s32.totalorder %s31, 1
    %p504 = por %p502, %p503
    %p505 = scmp.ne.s32.totalorder %s496, %s497
    %p506 = scmp.eq.s32.totalorder %s31, 0
    %p507 = por %p505, %p506
    %p508 = scmp.ne.s32.totalorder %s496, %s497
    %p509 = scmp.eq.s32.totalorder %s32, 1
    %p510 = por %p508, %p509
    %p512 = scmp.ne.s32.totalorder %s497, %s511
    %p513 = scmp.eq.s32.totalorder %s32, 0
    %p514 = por %p512, %p513
    %p515 = scmp.le.s32.totalorder 1, %s26
    %p516 = scmp.lt.s32.totalorder %s26, 3
    %p517 = pnand %p515, %p516
    %p518 = pneg %p517
    // Predicated region
    $region9: #{decoder_forward_pallas.1} parent=5 // pred_check
      _
    $region10: #{decoder_forward_pallas.1} parent=5 // pred_check_branch
      %520 = sbr.rel (%p517) target = $region12
    $region11: #{decoder_forward_pallas.1} parent=5 // pred_region
      %s521 = ssub.s32 %s26, 1
      // Predicated region
      $region13: #{decoder_forward_pallas.1} parent=11 // pred_check
        %p522 = pneg %p47
      $region14: #{decoder_forward_pallas.1} parent=11 // pred_check_branch
        %524 = sbr.rel (%p522) target = $region16
      $region15: #{decoder_forward_pallas.1} parent=11 // pred_region
        _
      $region16: #{decoder_forward_pallas.1} parent=11 // pred_fallthru
        _
      // Predicated region
      $region17: #{decoder_forward_pallas.1} parent=11 // pred_check
        %p525 = pneg %p68
      $region18: #{decoder_forward_pallas.1} parent=11 // pred_check_branch
        %527 = sbr.rel (%p525) target = $region20
      $region19: #{decoder_forward_pallas.1} parent=11 // pred_region
        _
      $region20: #{decoder_forward_pallas.1} parent=11 // pred_fallthru
        _
      // Predicated region
      $region21: #{decoder_forward_pallas.1} parent=11 // pred_check
        %p528 = pneg %p89
      $region22: #{decoder_forward_pallas.1} parent=11 // pred_check_branch
        %530 = sbr.rel (%p528) target = $region24
      $region23: #{decoder_forward_pallas.1} parent=11 // pred_region
        _
      $region24: #{decoder_forward_pallas.1} parent=11 // pred_fallthru
        _
      // Predicated region
      $region25: #{decoder_forward_pallas.1} parent=11 // pred_check
        %p531 = pneg %p110
      $region26: #{decoder_forward_pallas.1} parent=11 // pred_check_branch
        %533 = sbr.rel (%p531) target = $region28
      $region27: #{decoder_forward_pallas.1} parent=11 // pred_region
        _
      $region28: #{decoder_forward_pallas.1} parent=11 // pred_fallthru
        _
      // Predicated region
      $region29: #{decoder_forward_pallas.1} parent=11 // pred_check
        %p534 = pneg %p131
      $region30: #{decoder_forward_pallas.1} parent=11 // pred_check_branch
        %536 = sbr.rel (%p534) target = $region32
      $region31: #{decoder_forward_pallas.1} parent=11 // pred_region
        _
      $region32: #{decoder_forward_pallas.1} parent=11 // pred_fallthru
        _
      // Predicated region
      $region33: #{decoder_forward_pallas.1} parent=11 // pred_check
        %p537 = pneg %p152
      $region34: #{decoder_forward_pallas.1} parent=11 // pred_check_branch
        %539 = sbr.rel (%p537) target = $region36
      $region35: #{decoder_forward_pallas.1} parent=11 // pred_region
        _
      $region36: #{decoder_forward_pallas.1} parent=11 // pred_fallthru
        _
      // Predicated region
      $region37: #{decoder_forward_pallas.1} parent=11 // pred_check
        %p540 = pneg %p173
      $region38: #{decoder_forward_pallas.1} parent=11 // pred_check_branch
        %542 = sbr.rel (%p540) target = $region40
      $region39: #{decoder_forward_pallas.1} parent=11 // pred_region
        _
      $region40: #{decoder_forward_pallas.1} parent=11 // pred_fallthru
        _
      // Predicated region
      $region41: #{decoder_forward_pallas.1} parent=11 // pred_check
        %p543 = pneg %p194
      $region42: #{decoder_forward_pallas.1} parent=11 // pred_check_branch
        %545 = sbr.rel (%p543) target = $region44
      $region43: #{decoder_forward_pallas.1} parent=11 // pred_region
        _
      $region44: #{decoder_forward_pallas.1} parent=11 // pred_fallthru
        _
      // Predicated region
      $region45: #{decoder_forward_pallas.1} parent=11 // pred_check
        %p546 = pneg %p215
      $region46: #{decoder_forward_pallas.1} parent=11 // pred_check_branch
        %548 = sbr.rel (%p546) target = $region48
      $region47: #{decoder_forward_pallas.1} parent=11 // pred_region
        _
      $region48: #{decoder_forward_pallas.1} parent=11 // pred_fallthru
        _
      // Predicated region
      $region49: #{decoder_forward_pallas.1} parent=11 // pred_check
        %p549 = pneg %p236
      $region50: #{decoder_forward_pallas.1} parent=11 // pred_check_branch
        %551 = sbr.rel (%p549) target = $region52
      $region51: #{decoder_forward_pallas.1} parent=11 // pred_region
        _
      $region52: #{decoder_forward_pallas.1} parent=11 // pred_fallthru
        _
      // Predicated region
      $region53: #{decoder_forward_pallas.1} parent=11 // pred_check
        %p552 = pneg %p257
      $region54: #{decoder_forward_pallas.1} parent=11 // pred_check_branch
        %554 = sbr.rel (%p552) target = $region56
      $region55: #{decoder_forward_pallas.1} parent=11 // pred_region
        _
      $region56: #{decoder_forward_pallas.1} parent=11 // pred_fallthru
        _
      // Predicated region
      $region57: #{decoder_forward_pallas.1} parent=11 // pred_check
        %p555 = pneg %p278
      $region58: #{decoder_forward_pallas.1} parent=11 // pred_check_branch
        %557 = sbr.rel (%p555) target = $region60
      $region59: #{decoder_forward_pallas.1} parent=11 // pred_region
        _
      $region60: #{decoder_forward_pallas.1} parent=11 // pred_fallthru
        _
    $region12: #{decoder_forward_pallas.1} parent=5 // pred_fallthru
      _
    %p558 = scmp.lt.s32.totalorder %s26, 2
    // Predicated region
    $region61: #{decoder_forward_pallas.1} parent=5 // pred_check
      %p559 = pneg %p558
    $region62: #{decoder_forward_pallas.1} parent=5 // pred_check_branch
      %561 = sbr.rel (%p559) target = $region64
    $region63: #{decoder_forward_pallas.1} parent=5 // pred_region
      // Predicated region
      $region65: #{decoder_forward_pallas.1} parent=63 // pred_check
        %p562 = pneg %p298
      $region66: #{decoder_forward_pallas.1} parent=63 // pred_check_branch
        %564 = sbr.rel (%p562) target = $region68
      $region67: #{decoder_forward_pallas.1} parent=63 // pred_region
        %p565 = scmp.lt.s32.totalorder %s26, 1
        %s566 = scalar_select %p565, %s26, 1
        %s567 = smul.addr %s566, 4
        %s568 = scalar_lea.vmem %s12, %s567
      $region68: #{decoder_forward_pallas.1} parent=63 // pred_fallthru
        _
      // Predicated region
      $region69: #{decoder_forward_pallas.1} parent=63 // pred_check
        %p569 = pneg %p324
      $region70: #{decoder_forward_pallas.1} parent=63 // pred_check_branch
        %571 = sbr.rel (%p569) target = $region72
      $region71: #{decoder_forward_pallas.1} parent=63 // pred_region
        %p572 = scmp.lt.s32.totalorder %s26, 1
        %s573 = scalar_select %p572, %s26, 1
        %s574 = smul.addr %s573, 8
        %s575 = smul.addr %s574, 4
        %s576 = scalar_lea.vmem %s13, %s575
      $region72: #{decoder_forward_pallas.1} parent=63 // pred_fallthru
        _
      // Predicated region
      $region73: #{decoder_forward_pallas.1} parent=63 // pred_check
        %p577 = pneg %p350
      $region74: #{decoder_forward_pallas.1} parent=63 // pred_check_branch
        %579 = sbr.rel (%p577) target = $region76
      $region75: #{decoder_forward_pallas.1} parent=63 // pred_region
        %p580 = scmp.lt.s32.totalorder %s26, 1
        %s581 = scalar_select %p580, %s26, 1
        %s582 = smul.addr %s581, 8
        %s583 = smul.addr %s582, 4
        %s584 = scalar_lea.vmem %s14, %s583
      $region76: #{decoder_forward_pallas.1} parent=63 // pred_fallthru
        _
      // Predicated region
      $region77: #{decoder_forward_pallas.1} parent=63 // pred_check
        %p585 = pneg %p376
      $region78: #{decoder_forward_pallas.1} parent=63 // pred_check_branch
        %587 = sbr.rel (%p585) target = $region80
      $region79: #{decoder_forward_pallas.1} parent=63 // pred_region
        %p588 = scmp.lt.s32.totalorder %s26, 1
        %s589 = scalar_select %p588, %s26, 1
        %s590 = smul.addr %s589, 8
        %s591 = smul.addr %s590, 4
        %s592 = scalar_lea.vmem %s15, %s591
      $region80: #{decoder_forward_pallas.1} parent=63 // pred_fallthru
        _
      // Predicated region
      $region81: #{decoder_forward_pallas.1} parent=63 // pred_check
        %p593 = pneg %p402
      $region82: #{decoder_forward_pallas.1} parent=63 // pred_check_branch
        %595 = sbr.rel (%p593) target = $region84
      $region83: #{decoder_forward_pallas.1} parent=63 // pred_region
        %p596 = scmp.lt.s32.totalorder %s26, 1
        %s597 = scalar_select %p596, %s26, 1
        %s598 = smul.addr %s597, 4
        %s599 = smul.addr %s598, 4
        %s600 = scalar_lea.vmem %s16, %s599
      $region84: #{decoder_forward_pallas.1} parent=63 // pred_fallthru
        _
      // Predicated region
      $region85: #{decoder_forward_pallas.1} parent=63 // pred_check
        %p601 = pneg %p428
      $region86: #{decoder_forward_pallas.1} parent=63 // pred_check_branch
        %603 = sbr.rel (%p601) target = $region88
      $region87: #{decoder_forward_pallas.1} parent=63 // pred_region
        %p604 = scmp.lt.s32.totalorder %s26, 1
        %s605 = scalar_select %p604, %s26, 1
        %s606 = smul.addr %s605, 4
        %s607 = smul.addr %s606, 4
        %s608 = scalar_lea.vmem %s17, %s607
      $region88: #{decoder_forward_pallas.1} parent=63 // pred_fallthru
        _
      // Predicated region
      $region89: #{decoder_forward_pallas.1} parent=63 // pred_check
        %p609 = pneg %p454
      $region90: #{decoder_forward_pallas.1} parent=63 // pred_check_branch
        %611 = sbr.rel (%p609) target = $region92
      $region91: #{decoder_forward_pallas.1} parent=63 // pred_region
        %p612 = scmp.lt.s32.totalorder %s26, 1
        %s613 = scalar_select %p612, %s26, 1
        %s614 = smul.addr %s613, 16
        %s615 = smul.addr %s614, 4
        %s616 = scalar_lea.vmem %s18, %s615
      $region92: #{decoder_forward_pallas.1} parent=63 // pred_fallthru
        _
      // Predicated region
      $region93: #{decoder_forward_pallas.1} parent=63 // pred_check
        %p617 = pneg %p480
      $region94: #{decoder_forward_pallas.1} parent=63 // pred_check_branch
        %619 = sbr.rel (%p617) target = $region96
      $region95: #{decoder_forward_pallas.1} parent=63 // pred_region
        %p620 = scmp.lt.s32.totalorder %s26, 1
        %s621 = scalar_select %p620, %s26, 1
        %s622 = smul.addr %s621, 16
        %s623 = smul.addr %s622, 4
        %s624 = scalar_lea.vmem %s19, %s623
      $region96: #{decoder_forward_pallas.1} parent=63 // pred_fallthru
        _
    $region64: #{decoder_forward_pallas.1} parent=5 // pred_fallthru
      _
    %p625 = scmp.le.s32.totalorder 1, %s26
    %p626 = scmp.lt.s32.totalorder %s26, 3
    %p627 = pnand %p625, %p626
    %p628 = pneg %p627
    // Predicated region
    $region97: #{decoder_forward_pallas.1} parent=5 // pred_check
      _
    $region98: #{decoder_forward_pallas.1} parent=5 // pred_check_branch
      %630 = sbr.rel (%p627) target = $region100
    $region99: #{decoder_forward_pallas.1} parent=5 // pred_region
      %s631 = ssub.s32 %s26, 1
      %p632 = pneg %p47
      %p633 = pneg %p44
      %p634 = pneg %p68
      %p635 = pneg %p65
      %p636 = pneg %p89
      %p637 = pneg %p86
      %p638 = pneg %p110
      %p639 = pneg %p107
      %p640 = pneg %p131
      %p641 = pneg %p128
      %p642 = pneg %p152
      %p643 = pneg %p149
      %p644 = pneg %p173
      %p645 = pneg %p170
      %p646 = pneg %p194
      %p647 = pneg %p191
      %p648 = pneg %p215
      %p649 = pneg %p212
      %p650 = pneg %p236
      %p651 = pneg %p233
      %p652 = pneg %p257
      %p653 = pneg %p254
      %p654 = pneg %p278
      %p655 = pneg %p275
      %p656 = scmp.lt.s32.totalorder %s31, 1
      %s657 = scalar_select %p656, %s31, 1
      %s658 = smul.addr %s657, 4
      %s659 = scalar_lea.vmem %s12, %s658
      %p660 = pneg %p304
      %p661 = pneg %p301
      %p662 = scmp.lt.s32.totalorder %s31, 1
      %s663 = scalar_select %p662, %s31, 1
      %s664 = smul.addr %s663, 8
      %s665 = smul.addr %s664, 4
      %s666 = scalar_lea.vmem %s13, %s665
      %p667 = pneg %p330
      %p668 = pneg %p327
      %p669 = scmp.lt.s32.totalorder %s31, 1
      %s670 = scalar_select %p669, %s31, 1
      %s671 = smul.addr %s670, 8
      %s672 = smul.addr %s671, 4
      %s673 = scalar_lea.vmem %s14, %s672
      %p674 = pneg %p356
      %p675 = pneg %p353
      %p676 = scmp.lt.s32.totalorder %s31, 1
      %s677 = scalar_select %p676, %s31, 1
      %s678 = smul.addr %s677, 8
      %s679 = smul.addr %s678, 4
      %s680 = scalar_lea.vmem %s15, %s679
      %p681 = pneg %p382
      %p682 = pneg %p379
      %p683 = scmp.lt.s32.totalorder %s31, 1
      %s684 = scalar_select %p683, %s31, 1
      %s685 = smul.addr %s684, 4
      %s686 = smul.addr %s685, 4
      %s687 = scalar_lea.vmem %s16, %s686
      %p688 = pneg %p408
      %p689 = pneg %p405
      %p690 = scmp.lt.s32.totalorder %s31, 1
      %s691 = scalar_select %p690, %s31, 1
      %s692 = smul.addr %s691, 4
      %s693 = smul.addr %s692, 4
      %s694 = scalar_lea.vmem %s17, %s693
      %p695 = pneg %p434
      %p696 = pneg %p431
      %p697 = scmp.lt.s32.totalorder %s31, 1
      %s698 = scalar_select %p697, %s31, 1
      %s699 = smul.addr %s698, 16
      %s700 = smul.addr %s699, 4
      %s701 = scalar_lea.vmem %s18, %s700
      %p702 = pneg %p460
      %p703 = pneg %p457
      %p704 = scmp.lt.s32.totalorder %s31, 1
      %s705 = scalar_select %p704, %s31, 1
      %s706 = smul.addr %s705, 16
      %s707 = smul.addr %s706, 4
      %s708 = scalar_lea.vmem %s19, %s707
      %p709 = pneg %p486
      %p710 = pneg %p483
      %p711 = pneg %p507
      %p712 = pneg %p504
      %p713 = scmp.lt.s32.totalorder %s31, 1
      %s714 = scalar_select %p713, %s31, 1
      %s715 = smul.addr %s714, 4
      %s716 = scalar_lea.vmem %s12, %s715
      %p717 = scmp.lt.s32.totalorder %s31, 1
      %s718 = scalar_select %p717, %s31, 1
      %s719 = smul.addr %s718, 8
      %s720 = smul.addr %s719, 4
      %s721 = scalar_lea.vmem %s13, %s720
      %p722 = scmp.lt.s32.totalorder %s31, 1
      %s723 = scalar_select %p722, %s31, 1
      %s724 = smul.addr %s723, 8
      %s725 = smul.addr %s724, 4
      %s726 = scalar_lea.vmem %s14, %s725
      %p727 = scmp.lt.s32.totalorder %s31, 1
      %s728 = scalar_select %p727, %s31, 1
      %s729 = smul.addr %s728, 8
      %s730 = smul.addr %s729, 4
      %s731 = scalar_lea.vmem %s15, %s730
      %p732 = scmp.lt.s32.totalorder %s31, 1
      %s733 = scalar_select %p732, %s31, 1
      %s734 = smul.addr %s733, 4
      %s735 = smul.addr %s734, 4
      %s736 = scalar_lea.vmem %s16, %s735
      %p737 = scmp.lt.s32.totalorder %s31, 1
      %s738 = scalar_select %p737, %s31, 1
      %s739 = smul.addr %s738, 4
      %s740 = smul.addr %s739, 4
      %s741 = scalar_lea.vmem %s17, %s740
      %p742 = scmp.lt.s32.totalorder %s31, 1
      %s743 = scalar_select %p742, %s31, 1
      %s744 = smul.addr %s743, 16
      %s745 = smul.addr %s744, 4
      %s746 = scalar_lea.vmem %s18, %s745
      %p747 = scmp.lt.s32.totalorder %s31, 1
      %s748 = scalar_select %p747, %s31, 1
      %s749 = smul.addr %s748, 16
      %s750 = smul.addr %s749, 4
      %s751 = scalar_lea.vmem %s19, %s750
      %p753 = scmp.eq.s32.totalorder %s31, 0
      // Predicated region
      $region101: #{decoder_forward_pallas.1} parent=99 // pred_check
        %p754 = pneg %p753
      $region102: #{decoder_forward_pallas.1} parent=99 // pred_check_branch
        %756 = sbr.rel (%p754) target = $region104
      $region103: #{decoder_forward_pallas.1} parent=99 // pred_region
        %v757 = vld [vmem:[%s0] sm:$0xff]
        %v758 = vld [vmem:[%s0 + $0x8] sm:$0xff]
        %vm759 = vcmask 523264
        %760 = vst.msk [vmem:[#allocation2] sm:$0xff] %vm759, %v757
        %761 = vst.msk [vmem:[#allocation2 + $0x8] sm:$0xff] %vm759, %v758
      $region104: #{decoder_forward_pallas.1} parent=99 // pred_fallthru
        _
      %v762 = vld [vmem:[#allocation2] sm:$0xff]
      %v763 = vld [vmem:[#allocation2 + $0x8] sm:$0xff]
      %v764 = vld [vmem:[%s716] sm:$0x7]
      %v765 = vmul.f32 %v762, %v762
      %v766 = vmul.f32 %v763, %v763
      %vm767 = vcmask 523264
      %v768 = vsel %vm767, %v765, 0.0
      %769 = vadd.xlane.f32.xlu0 %v768
      %v770 = vpop.xlane.xlu0 %769
      %v771 = vsel %vm767, %v766, 0.0
      %772 = vadd.xlane.f32.xlu0 %v771
      %v773 = vpop.xlane.xlu0 %772
      %v774 = vrcp.pop 64.0
      %v775 = vmul.f32 64.0, %v774
      %v776 = vsub.f32 1.0, %v775
      %v777 = vmul.f32 %v774, %v776
      %v778 = vadd.f32 %v774, %v777
      %vm779 = vweird.f32 %v774
      %v780 = vsel %vm779, %v774, %v778
      %v781 = vmul.f32 %v770, %v780
      %v782 = vmul.f32 %v773, %v780
      %v783 = vadd.f32 %v781, 1e-05
      %v784 = vadd.f32 %v782, 1e-05
      %v785 = vrsqrt.pop %v783
      %v786 = vmul.f32 %v785, %v783
      %v787 = vmul.f32 %v786, %v785
      %v788 = vmul.f32 0.5, %v787
      %v789 = vsub.f32 1.5, %v788
      %v790 = vmul.f32 %v785, %v789
      %vm791 = vweird.f32 %v783
      %vm792 = vweird.f32 %v785
      %vm793 = vmor %vm791, %vm792
      %v794 = vsel %vm793, %v785, %v790
      %v795 = vrsqrt.pop %v784
      %v796 = vmul.f32 %v795, %v784
      %v797 = vmul.f32 %v796, %v795
      %v798 = vmul.f32 0.5, %v797
      %v799 = vsub.f32 1.5, %v798
      %v800 = vmul.f32 %v795, %v799
      %vm801 = vweird.f32 %v784
      %vm802 = vweird.f32 %v795
      %vm803 = vmor %vm801, %vm802
      %v804 = vsel %vm803, %v795, %v800
      %v805 = vmul.f32 %v762, %v794
      %v806 = vmul.f32 %v763, %v804
      %v807 = vperm.slane %v764, 0
      %v808 = vmul.f32 %v805, %v807
      %v809 = vmul.f32 %v806, %v807
      %v810 = vld [vmem:[%s721] sm:$0xf]
      %v811 = vld [vmem:[%s721 + $0x4] sm:$0xf]
      %v812 = vld [vmem:[%s721 + $0x8] sm:$0xf]
      %v813 = vld [vmem:[%s721 + $0xc] sm:$0xf]
      %v814 = vld [vmem:[%s721 + $0x10] sm:$0xf]
      %v815 = vld [vmem:[%s721 + $0x14] sm:$0xf]
      %v816 = vld [vmem:[%s721 + $0x18] sm:$0xf]
      %v817 = vld [vmem:[%s721 + $0x1c] sm:$0xf]
      %v818 = vpack.c.bf16 %v809, %v808
      %v827 = vunpack.c.l.b16 %v810
      %v828 = vunpack.c.l.b16 %v811
      %v829 = vunpack.c.l.b16 %v812
      %v830 = vunpack.c.l.b16 %v813
      %v831 = vunpack.c.l.b16 %v814
      %v832 = vunpack.c.l.b16 %v815
      %v833 = vunpack.c.l.b16 %v816
      %v834 = vunpack.c.l.b16 %v817
      %v835 = vpack.c.b16 %v828, %v827
      %v836 = vpack.c.b16 %v830, %v829
      %v837 = vpack.c.b16 %v832, %v831
      %v838 = vpack.c.b16 %v834, %v833
      %v844 = vsel %vm767, %v818, 0
      %846 = vmatpush.bf16.msra.mxu0 0
      %847 = vmatpush.bf16.msra.mxu0 0
      %848 = vmatpush.bf16.msra.mxu0 0
      %849 = vmatpush.bf16.msra.mxu0 0
      %850 = vmatpush.bf16.msra.mxu0 %v838
      %851 = vmatpush.bf16.msra.mxu0 %v837
      %852 = vmatpush.bf16.msra.mxu0 %v836
      %853 = vmatpush.bf16.msra.mxu0 %v835
      %854 = vmatmul.bf16.gmra.mxu0 %v844
      %v855 = vpop.f32.mrf.mxu0
      %v856 = vadd.f32 0.0, %v855
      %v857 = vpop.f32.mrf.mxu0
      %v858 = vadd.f32 0.0, %v857
      %859 = vdwg.mxu0
      %v860 = vld [vmem:[%s4] sm:$0xff]
      %v861 = vld [vmem:[%s4 + $0x8] sm:$0xff]
      %v862 = vld [vmem:[%s4 + $0x10] sm:$0xff]
      %v863 = vld [vmem:[%s4 + $0x18] sm:$0xff]
      %v864 = vmul.f32 %v856, %v860
      %v865 = vmul.f32 %v858, %v862
      %v866 = vld [vmem:[%s7] sm:$0xf]
      %v867 = vld [vmem:[%s7 + $0x4] sm:$0xf]
      %v868 = vld [vmem:[%s7 + $0x8] sm:$0xf]
      %v869 = vld [vmem:[%s7 + $0xc] sm:$0xf]
      %v870 = vld [vmem:[%s7 + $0x10] sm:$0xf]
      %v871 = vld [vmem:[%s7 + $0x14] sm:$0xf]
      %v872 = vld [vmem:[%s7 + $0x18] sm:$0xf]
      %v873 = vld [vmem:[%s7 + $0x1c] sm:$0xf]
      %v874 = vld [vmem:[%s7 + $0x20] sm:$0xf]
      %v875 = vld [vmem:[%s7 + $0x24] sm:$0xf]
      %v876 = vld [vmem:[%s7 + $0x28] sm:$0xf]
      %v877 = vld [vmem:[%s7 + $0x2c] sm:$0xf]
      %v878 = vld [vmem:[%s7 + $0x30] sm:$0xf]
      %v879 = vld [vmem:[%s7 + $0x34] sm:$0xf]
      %v880 = vld [vmem:[%s7 + $0x38] sm:$0xf]
      %v881 = vld [vmem:[%s7 + $0x3c] sm:$0xf]
      %v882 = vpack.c.bf16 %v858, %v856
      %v899 = vunpack.c.l.b16 %v866
      %v900 = vunpack.c.l.b16 %v867
      %v901 = vunpack.c.l.b16 %v868
      %v902 = vunpack.c.l.b16 %v869
      %v903 = vunpack.c.l.b16 %v870
      %v904 = vunpack.c.l.b16 %v871
      %v905 = vunpack.c.l.b16 %v872
      %v906 = vunpack.c.l.b16 %v873
      %v907 = vunpack.c.l.b16 %v874
      %v908 = vunpack.c.l.b16 %v875
      %v909 = vunpack.c.l.b16 %v876
      %v910 = vunpack.c.l.b16 %v877
      %v911 = vunpack.c.l.b16 %v878
      %v912 = vunpack.c.l.b16 %v879
      %v913 = vunpack.c.l.b16 %v880
      %v914 = vunpack.c.l.b16 %v881
      %v915 = vpack.c.b16 %v900, %v899
      %v916 = vpack.c.b16 %v902, %v901
      %v917 = vpack.c.b16 %v904, %v903
      %v918 = vpack.c.b16 %v906, %v905
      %v919 = vpack.c.b16 %v908, %v907
      %v920 = vpack.c.b16 %v910, %v909
      %v921 = vpack.c.b16 %v912, %v911
      %v922 = vpack.c.b16 %v914, %v913
      %931 = vmatpush.bf16.msra.mxu0 %v922
      %932 = vmatpush.bf16.msra.mxu0 %v921
      %933 = vmatpush.bf16.msra.mxu0 %v920
      %934 = vmatpush.bf16.msra.mxu0 %v919
      %935 = vmatpush.bf16.msra.mxu0 %v918
      %936 = vmatpush.bf16.msra.mxu0 %v917
      %937 = vmatpush.bf16.msra.mxu0 %v916
      %938 = vmatpush.bf16.msra.mxu0 %v915
      %939 = vmatmul.bf16.gmra.mxu0 %v882
      %v940 = vpop.f32.mrf.mxu0
      %v941 = vadd.f32 0.0, %v940
      %v942 = vpop.f32.mrf.mxu0
      %v943 = vadd.f32 0.0, %v942
      %944 = vdwg.mxu0
      %v945 = vmul.f32 %v941, %v861
      %v946 = vmul.f32 %v943, %v863
      %v947 = vadd.f32 %v864, %v945
      %v948 = vadd.f32 %v865, %v946
      %v949 = vld [vmem:[%s2] sm:$0xff]
      %v950 = vld [vmem:[%s2 + $0x8] sm:$0xff]
      %953 = vrot.lane.b32.xlu0 %v947, 64
      %v954 = vpop.permute.xlu0 %953
      %955 = vrot.lane.b32.xlu0 %v948, 64
      %v956 = vpop.permute.xlu0 %955
      %vm957 = vcmask 130048
      %v958 = vsel %vm957, %v947, 0
      %v960 = vsel %vm957, %v948, 0
      %v962 = vsel %vm957, %v954, 0
      %v964 = vsel %vm957, %v956, 0
      %966 = vmatpush.xpose.msra.mxu0 0.0
      %967 = vmatpush.xpose.msra.mxu0 0.0
      %968 = vmatpush.xpose.msra.mxu0 0.0
      %969 = vmatpush.xpose.msra.mxu0 0.0
      %970 = vmatpush.xpose.msra.mxu0 0.0
      %971 = vmatpush.xpose.msra.mxu0 0.0
      %972 = vmatpush.xpose.msra.mxu0 0.0
      %973 = vmatpush.xpose.msra.mxu0 0.0
      %974 = vmatpush.xpose.msra.mxu0 0.0
      %975 = vmatpush.xpose.msra.mxu0 0.0
      %976 = vmatpush.xpose.msra.mxu0 0.0
      %977 = vmatpush.xpose.msra.mxu0 0.0
      %978 = vmatpush.xpose.msra.mxu0 0.0
      %979 = vmatpush.xpose.msra.mxu0 0.0
      %980 = vmatpush.xpose.msra.mxu0 %v964
      %981 = vmatpush.xpose.msra.mxu0 %v962
      %982 = vmatmul.f32.gmra.mxu0 %v958
      %v983 = vpop.f32.mrf.mxu0
      %v984 = vadd.f32 %v949, %v983
      %985 = vmatmul.f32.gmra.mxu0 %v960
      %v986 = vpop.f32.mrf.mxu0
      %v987 = vadd.f32 %v950, %v986
      %988 = vdwg.mxu0
      %v989 = vsel %vm957, %v984, -inf
      %990 = vmax.xlane.f32.xlu0 %v989
      %v991 = vpop.xlane.xlu0 %990
      %v992 = vsel %vm957, %v987, -inf
      %993 = vmax.xlane.f32.xlu0 %v992
      %v994 = vpop.xlane.xlu0 %993
      %v995 = vsub.f32 %v984, %v991
      %v996 = vsub.f32 %v987, %v994
      %v997 = vmul.f32 %v995, 1.442695
      %v998 = vpow.pop %v997
      %v999 = vmul.f32 %v996, 1.442695
      %v1000 = vpow.pop %v999
      %v1001 = vsel %vm957, %v998, 0.0
      %1002 = vadd.xlane.f32.xlu0 %v1001
      %v1003 = vpop.xlane.xlu0 %1002
      %v1004 = vsel %vm957, %v1000, 0.0
      %1005 = vadd.xlane.f32.xlu0 %v1004
      %v1006 = vpop.xlane.xlu0 %1005
      %v1007 = vpack.c.bf16 %v1000, %v998
      %v1008 = vpack.c.bf16 %v948, %v947
      %1010 = vrot.lane.b32.xlu0 %v1008, 32
      %v1011 = vpop.permute.xlu0 %1010
      %v1014 = vsel %vm957, %v1007, 0
      %1016 = vmatpush.bf16.msra.mxu0 0
      %1017 = vmatpush.bf16.msra.mxu0 0
      %1018 = vmatpush.bf16.msra.mxu0 0
      %1019 = vmatpush.bf16.msra.mxu0 0
      %1020 = vmatpush.bf16.msra.mxu0 0
      %1021 = vmatpush.bf16.msra.mxu0 0
      %1022 = vmatpush.bf16.msra.mxu0 0
      %1023 = vmatpush.bf16.msra.mxu0 %v1011
      %1024 = vmatmul.bf16.gmra.mxu0 %v1014
      %v1025 = vpop.f32.mrf.mxu0
      %v1026 = vadd.f32 0.0, %v1025
      %v1027 = vpop.f32.mrf.mxu0
      %v1028 = vadd.f32 0.0, %v1027
      %1029 = vdwg.mxu0
      %v1030 = vrcp.pop %v1003
      %v1031 = vrcp.pop %v1006
      %v1032 = vmul.f32 %v1026, %v1030
      %v1033 = vmul.f32 %v1028, %v1031
      %1034 = vrot.lane.b32.xlu0 %v947, 112
      %v1035 = vpop.permute.xlu0 %1034
      %1036 = vrot.lane.b32.xlu0 %v948, 112
      %v1037 = vpop.permute.xlu0 %1036
      %v1038 = vsel %vm957, %v1035, 0
      %v1040 = vsel %vm957, %v1037, 0
      %1042 = vmatpush.xpose.msra.mxu0 0.0
      %1043 = vmatpush.xpose.msra.mxu0 0.0
      %1044 = vmatpush.xpose.msra.mxu0 0.0
      %1045 = vmatpush.xpose.msra.mxu0 0.0
      %1046 = vmatpush.xpose.msra.mxu0 0.0
      %1047 = vmatpush.xpose.msra.mxu0 0.0
      %1048 = vmatpush.xpose.msra.mxu0 0.0
      %1049 = vmatpush.xpose.msra.mxu0 0.0
      %1050 = vmatpush.xpose.msra.mxu0 0.0
      %1051 = vmatpush.xpose.msra.mxu0 0.0
      %1052 = vmatpush.xpose.msra.mxu0 0.0
      %1053 = vmatpush.xpose.msra.mxu0 0.0
      %1054 = vmatpush.xpose.msra.mxu0 0.0
      %1055 = vmatpush.xpose.msra.mxu0 0.0
      %1056 = vmatpush.xpose.msra.mxu0 %v964
      %1057 = vmatpush.xpose.msra.mxu0 %v962
      %1058 = vmatmul.f32.gmra.mxu0 %v1038
      %v1059 = vpop.f32.mrf.mxu0
      %v1060 = vadd.f32 %v949, %v1059
      %1061 = vmatmul.f32.gmra.mxu0 %v1040
      %v1062 = vpop.f32.mrf.mxu0
      %v1063 = vadd.f32 %v950, %v1062
      %1064 = vdwg.mxu0
      %v1065 = vsel %vm957, %v1060, -inf
      %1066 = vmax.xlane.f32.xlu0 %v1065
      %v1067 = vpop.xlane.xlu0 %1066
      %v1068 = vsel %vm957, %v1063, -inf
      %1069 = vmax.xlane.f32.xlu0 %v1068
      %v1070 = vpop.xlane.xlu0 %1069
      %v1071 = vsub.f32 %v1060, %v1067
      %v1072 = vsub.f32 %v1063, %v1070
      %v1073 = vmul.f32 %v1071, 1.442695
      %v1074 = vpow.pop %v1073
      %v1075 = vmul.f32 %v1072, 1.442695
      %v1076 = vpow.pop %v1075
      %v1077 = vsel %vm957, %v1074, 0.0
      %1078 = vadd.xlane.f32.xlu0 %v1077
      %v1079 = vpop.xlane.xlu0 %1078
      %v1080 = vsel %vm957, %v1076, 0.0
      %1081 = vadd.xlane.f32.xlu0 %v1080
      %v1082 = vpop.xlane.xlu0 %1081
      %v1083 = vpack.c.bf16 %v1076, %v1074
      %v1085 = vsel %vm957, %v1083, 0
      %1087 = vmatpush.bf16.msra.mxu0 0
      %1088 = vmatpush.bf16.msra.mxu0 0
      %1089 = vmatpush.bf16.msra.mxu0 0
      %1090 = vmatpush.bf16.msra.mxu0 0
      %1091 = vmatpush.bf16.msra.mxu0 0
      %1092 = vmatpush.bf16.msra.mxu0 0
      %1093 = vmatpush.bf16.msra.mxu0 0
      %1094 = vmatpush.bf16.msra.mxu0 %v1011
      %1095 = vmatmul.bf16.gmra.mxu0 %v1085
      %v1096 = vpop.f32.mrf.mxu0
      %v1097 = vadd.f32 0.0, %v1096
      %v1098 = vpop.f32.mrf.mxu0
      %v1099 = vadd.f32 0.0, %v1098
      %1100 = vdwg.mxu0
      %v1101 = vrcp.pop %v1079
      %v1102 = vrcp.pop %v1082
      %v1103 = vmul.f32 %v1097, %v1101
      %v1104 = vmul.f32 %v1099, %v1102
      %1105 = vrot.lane.b32.xlu0 %v947, 96
      %v1106 = vpop.permute.xlu0 %1105
      %1107 = vrot.lane.b32.xlu0 %v948, 96
      %v1108 = vpop.permute.xlu0 %1107
      %1109 = vrot.lane.b32.xlu0 %v947, 48
      %v1110 = vpop.permute.xlu0 %1109
      %1111 = vrot.lane.b32.xlu0 %v948, 48
      %v1112 = vpop.permute.xlu0 %1111
      %v1113 = vsel %vm957, %v1106, 0
      %v1115 = vsel %vm957, %v1108, 0
      %v1117 = vsel %vm957, %v1110, 0
      %v1119 = vsel %vm957, %v1112, 0
      %1121 = vmatpush.xpose.msra.mxu0 0.0
      %1122 = vmatpush.xpose.msra.mxu0 0.0
      %1123 = vmatpush.xpose.msra.mxu0 0.0
      %1124 = vmatpush.xpose.msra.mxu0 0.0
      %1125 = vmatpush.xpose.msra.mxu0 0.0
      %1126 = vmatpush.xpose.msra.mxu0 0.0
      %1127 = vmatpush.xpose.msra.mxu0 0.0
      %1128 = vmatpush.xpose.msra.mxu0 0.0
      %1129 = vmatpush.xpose.msra.mxu0 0.0
      %1130 = vmatpush.xpose.msra.mxu0 0.0
      %1131 = vmatpush.xpose.msra.mxu0 0.0
      %1132 = vmatpush.xpose.msra.mxu0 0.0
      %1133 = vmatpush.xpose.msra.mxu0 0.0
      %1134 = vmatpush.xpose.msra.mxu0 0.0
      %1135 = vmatpush.xpose.msra.mxu0 %v1119
      %1136 = vmatpush.xpose.msra.mxu0 %v1117
      %1137 = vmatmul.f32.gmra.mxu0 %v1113
      %v1138 = vpop.f32.mrf.mxu0
      %v1139 = vadd.f32 %v949, %v1138
      %1140 = vmatmul.f32.gmra.mxu0 %v1115
      %v1141 = vpop.f32.mrf.mxu0
      %v1142 = vadd.f32 %v950, %v1141
      %1143 = vdwg.mxu0
      %v1144 = vsel %vm957, %v1139, -inf
      %1145 = vmax.xlane.f32.xlu0 %v1144
      %v1146 = vpop.xlane.xlu0 %1145
      %v1147 = vsel %vm957, %v1142, -inf
      %1148 = vmax.xlane.f32.xlu0 %v1147
      %v1149 = vpop.xlane.xlu0 %1148
      %v1150 = vsub.f32 %v1139, %v1146
      %v1151 = vsub.f32 %v1142, %v1149
      %v1152 = vmul.f32 %v1150, 1.442695
      %v1153 = vpow.pop %v1152
      %v1154 = vmul.f32 %v1151, 1.442695
      %v1155 = vpow.pop %v1154
      %v1156 = vsel %vm957, %v1153, 0.0
      %1157 = vadd.xlane.f32.xlu0 %v1156
      %v1158 = vpop.xlane.xlu0 %1157
      %v1159 = vsel %vm957, %v1155, 0.0
      %1160 = vadd.xlane.f32.xlu0 %v1159
      %v1161 = vpop.xlane.xlu0 %1160
      %v1162 = vpack.c.bf16 %v1155, %v1153
      %1163 = vrot.lane.b32.xlu0 %v1008, 16
      %v1164 = vpop.permute.xlu0 %1163
      %v1167 = vsel %vm957, %v1162, 0
      %1169 = vmatpush.bf16.msra.mxu0 0
      %1170 = vmatpush.bf16.msra.mxu0 0
      %1171 = vmatpush.bf16.msra.mxu0 0
      %1172 = vmatpush.bf16.msra.mxu0 0
      %1173 = vmatpush.bf16.msra.mxu0 0
      %1174 = vmatpush.bf16.msra.mxu0 0
      %1175 = vmatpush.bf16.msra.mxu0 0
      %1176 = vmatpush.bf16.msra.mxu0 %v1164
      %1177 = vmatmul.bf16.gmra.mxu0 %v1167
      %v1178 = vpop.f32.mrf.mxu0
      %v1179 = vadd.f32 0.0, %v1178
      %v1180 = vpop.f32.mrf.mxu0
      %v1181 = vadd.f32 0.0, %v1180
      %1182 = vdwg.mxu0
      %v1183 = vrcp.pop %v1158
      %v1184 = vrcp.pop %v1161
      %v1185 = vmul.f32 %v1179, %v1183
      %v1186 = vmul.f32 %v1181, %v1184
      %1187 = vrot.lane.b32.xlu0 %v947, 80
      %v1188 = vpop.permute.xlu0 %1187
      %1189 = vrot.lane.b32.xlu0 %v948, 80
      %v1190 = vpop.permute.xlu0 %1189
      %v1191 = vsel %vm957, %v1188, 0
      %v1193 = vsel %vm957, %v1190, 0
      %1195 = vmatpush.xpose.msra.mxu0 0.0
      %1196 = vmatpush.xpose.msra.mxu0 0.0
      %1197 = vmatpush.xpose.msra.mxu0 0.0
      %1198 = vmatpush.xpose.msra.mxu0 0.0
      %1199 = vmatpush.xpose.msra.mxu0 0.0
      %1200 = vmatpush.xpose.msra.mxu0 0.0
      %1201 = vmatpush.xpose.msra.mxu0 0.0
      %1202 = vmatpush.xpose.msra.mxu0 0.0
      %1203 = vmatpush.xpose.msra.mxu0 0.0
      %1204 = vmatpush.xpose.msra.mxu0 0.0
      %1205 = vmatpush.xpose.msra.mxu0 0.0
      %1206 = vmatpush.xpose.msra.mxu0 0.0
      %1207 = vmatpush.xpose.msra.mxu0 0.0
      %1208 = vmatpush.xpose.msra.mxu0 0.0
      %1209 = vmatpush.xpose.msra.mxu0 %v1119
      %1210 = vmatpush.xpose.msra.mxu0 %v1117
      %1211 = vmatmul.f32.gmra.mxu0 %v1191
      %v1212 = vpop.f32.mrf.mxu0
      %v1213 = vadd.f32 %v949, %v1212
      %1214 = vmatmul.f32.gmra.mxu0 %v1193
      %v1215 = vpop.f32.mrf.mxu0
      %v1216 = vadd.f32 %v950, %v1215
      %1217 = vdwg.mxu0
      %v1218 = vsel %vm957, %v1213, -inf
      %1219 = vmax.xlane.f32.xlu0 %v1218
      %v1220 = vpop.xlane.xlu0 %1219
      %v1221 = vsel %vm957, %v1216, -inf
      %1222 = vmax.xlane.f32.xlu0 %v1221
      %v1223 = vpop.xlane.xlu0 %1222
      %v1224 = vsub.f32 %v1213, %v1220
      %v1225 = vsub.f32 %v1216, %v1223
      %v1226 = vmul.f32 %v1224, 1.442695
      %v1227 = vpow.pop %v1226
      %v1228 = vmul.f32 %v1225, 1.442695
      %v1229 = vpow.pop %v1228
      %v1230 = vsel %vm957, %v1227, 0.0
      %1231 = vadd.xlane.f32.xlu0 %v1230
      %v1232 = vpop.xlane.xlu0 %1231
      %v1233 = vsel %vm957, %v1229, 0.0
      %1234 = vadd.xlane.f32.xlu0 %v1233
      %v1235 = vpop.xlane.xlu0 %1234
      %v1236 = vpack.c.bf16 %v1229, %v1227
      %v1238 = vsel %vm957, %v1236, 0
      %1240 = vmatpush.bf16.msra.mxu0 0
      %1241 = vmatpush.bf16.msra.mxu0 0
      %1242 = vmatpush.bf16.msra.mxu0 0
      %1243 = vmatpush.bf16.msra.mxu0 0
      %1244 = vmatpush.bf16.msra.mxu0 0
      %1245 = vmatpush.bf16.msra.mxu0 0
      %1246 = vmatpush.bf16.msra.mxu0 0
      %1247 = vmatpush.bf16.msra.mxu0 %v1164
      %1248 = vmatmul.bf16.gmra.mxu0 %v1238
      %v1249 = vpop.f32.mrf.mxu0
      %v1250 = vadd.f32 0.0, %v1249
      %v1251 = vpop.f32.mrf.mxu0
      %v1252 = vadd.f32 0.0, %v1251
      %1253 = vdwg.mxu0
      %v1254 = vrcp.pop %v1232
      %v1255 = vrcp.pop %v1235
      %v1256 = vmul.f32 %v1250, %v1254
      %v1257 = vmul.f32 %v1252, %v1255
      %1260 = vrot.lane.b32.xlu0 %v1103, 16
      %v1261 = vpop.permute.xlu0 %1260
      %1262 = vrot.lane.b32.xlu0 %v1104, 16
      %v1263 = vpop.permute.xlu0 %1262
      %1268 = vrot.lane.b32.xlu0 %v1185, 32
      %v1269 = vpop.permute.xlu0 %1268
      %1270 = vrot.lane.b32.xlu0 %v1186, 32
      %v1271 = vpop.permute.xlu0 %1270
      %1276 = vrot.lane.b32.xlu0 %v1256, 48
      %v1277 = vpop.permute.xlu0 %1276
      %1278 = vrot.lane.b32.xlu0 %v1257, 48
      %v1279 = vpop.permute.xlu0 %1278
      %v1282 = vsel %vm957, %v1032, %v1261
      %v1283 = vsel %vm957, %v1033, %v1263
      %vm1284 = vcmask 261120
      %v1285 = vsel %vm1284, %v1282, %v1269
      %v1286 = vsel %vm1284, %v1283, %v1271
      %vm1287 = vcmask 392192
      %v1288 = vsel %vm1287, %v1285, %v1277
      %v1289 = vsel %vm1287, %v1286, %v1279
      %v1290 = vld [vmem:[%s726] sm:$0xf]
      %v1291 = vld [vmem:[%s726 + $0x4] sm:$0xf]
      %v1292 = vld [vmem:[%s726 + $0x8] sm:$0xf]
      %v1293 = vld [vmem:[%s726 + $0xc] sm:$0xf]
      %v1294 = vld [vmem:[%s726 + $0x10] sm:$0xf]
      %v1295 = vld [vmem:[%s726 + $0x14] sm:$0xf]
      %v1296 = vld [vmem:[%s726 + $0x18] sm:$0xf]
      %v1297 = vld [vmem:[%s726 + $0x1c] sm:$0xf]
      %v1298 = vpack.c.bf16 %v1289, %v1288
      %v1307 = vunpack.c.l.b16 %v1290
      %v1308 = vunpack.c.l.b16 %v1291
      %v1309 = vunpack.c.l.b16 %v1292
      %v1310 = vunpack.c.l.b16 %v1293
      %v1311 = vunpack.c.l.b16 %v1294
      %v1312 = vunpack.c.l.b16 %v1295
      %v1313 = vunpack.c.l.b16 %v1296
      %v1314 = vunpack.c.l.b16 %v1297
      %v1315 = vpack.c.b16 %v1308, %v1307
      %v1316 = vpack.c.b16 %v1310, %v1309
      %v1317 = vpack.c.b16 %v1312, %v1311
      %v1318 = vpack.c.b16 %v1314, %v1313
      %v1324 = vsel %vm767, %v1298, 0
      %1326 = vmatpush.bf16.msra.mxu0 0
      %1327 = vmatpush.bf16.msra.mxu0 0
      %1328 = vmatpush.bf16.msra.mxu0 0
      %1329 = vmatpush.bf16.msra.mxu0 0
      %1330 = vmatpush.bf16.msra.mxu0 %v1318
      %1331 = vmatpush.bf16.msra.mxu0 %v1317
      %1332 = vmatpush.bf16.msra.mxu0 %v1316
      %1333 = vmatpush.bf16.msra.mxu0 %v1315
      %1334 = vmatmul.bf16.gmra.mxu0 %v1324
      %v1335 = vpop.f32.mrf.mxu0
      %v1336 = vadd.f32 0.0, %v1335
      %v1337 = vpop.f32.mrf.mxu0
      %v1338 = vadd.f32 0.0, %v1337
      %1339 = vdwg.mxu0
      %v1340 = vadd.f32 %v762, %v1336
      %v1341 = vadd.f32 %v763, %v1338
      %v1342 = vmul.f32 %v1340, %v1340
      %v1343 = vmul.f32 %v1341, %v1341
      %v1344 = vsel %vm767, %v1342, 0.0
      %1345 = vadd.xlane.f32.xlu0 %v1344
      %v1346 = vpop.xlane.xlu0 %1345
      %v1347 = vsel %vm767, %v1343, 0.0
      %1348 = vadd.xlane.f32.xlu0 %v1347
      %v1349 = vpop.xlane.xlu0 %1348
      %v1350 = vmul.f32 %v1346, %v780
      %v1351 = vmul.f32 %v1349, %v780
      %v1352 = vadd.f32 %v1350, 1e-05
      %v1353 = vadd.f32 %v1351, 1e-05
      %v1354 = vrsqrt.pop %v1352
      %v1355 = vmul.f32 %v1354, %v1352
      %v1356 = vmul.f32 %v1355, %v1354
      %v1357 = vmul.f32 0.5, %v1356
      %v1358 = vsub.f32 1.5, %v1357
      %v1359 = vmul.f32 %v1354, %v1358
      %vm1360 = vweird.f32 %v1352
      %vm1361 = vweird.f32 %v1354
      %vm1362 = vmor %vm1360, %vm1361
      %v1363 = vsel %vm1362, %v1354, %v1359
      %v1364 = vrsqrt.pop %v1353
      %v1365 = vmul.f32 %v1364, %v1353
      %v1366 = vmul.f32 %v1365, %v1364
      %v1367 = vmul.f32 0.5, %v1366
      %v1368 = vsub.f32 1.5, %v1367
      %v1369 = vmul.f32 %v1364, %v1368
      %vm1370 = vweird.f32 %v1353
      %vm1371 = vweird.f32 %v1364
      %vm1372 = vmor %vm1370, %vm1371
      %v1373 = vsel %vm1372, %v1364, %v1369
      %v1374 = vmul.f32 %v1340, %v1363
      %v1375 = vmul.f32 %v1341, %v1373
      %v1376 = vperm.slane %v764, 1
      %v1377 = vmul.f32 %v1374, %v1376
      %v1378 = vmul.f32 %v1375, %v1376
      %v1379 = vld [vmem:[%s731] sm:$0xf]
      %v1380 = vld [vmem:[%s731 + $0x4] sm:$0xf]
      %v1381 = vld [vmem:[%s731 + $0x8] sm:$0xf]
      %v1382 = vld [vmem:[%s731 + $0xc] sm:$0xf]
      %v1383 = vld [vmem:[%s731 + $0x10] sm:$0xf]
      %v1384 = vld [vmem:[%s731 + $0x14] sm:$0xf]
      %v1385 = vld [vmem:[%s731 + $0x18] sm:$0xf]
      %v1386 = vld [vmem:[%s731 + $0x1c] sm:$0xf]
      %v1387 = vpack.c.bf16 %v1378, %v1377
      %v1396 = vunpack.c.l.b16 %v1379
      %v1397 = vunpack.c.l.b16 %v1380
      %v1398 = vunpack.c.l.b16 %v1381
      %v1399 = vunpack.c.l.b16 %v1382
      %v1400 = vunpack.c.l.b16 %v1383
      %v1401 = vunpack.c.l.b16 %v1384
      %v1402 = vunpack.c.l.b16 %v1385
      %v1403 = vunpack.c.l.b16 %v1386
      %v1404 = vpack.c.b16 %v1397, %v1396
      %v1405 = vpack.c.b16 %v1399, %v1398
      %v1406 = vpack.c.b16 %v1401, %v1400
      %v1407 = vpack.c.b16 %v1403, %v1402
      %v1413 = vsel %vm767, %v1387, 0
      %1415 = vmatpush.bf16.msra.mxu0 0
      %1416 = vmatpush.bf16.msra.mxu0 0
      %1417 = vmatpush.bf16.msra.mxu0 0
      %1418 = vmatpush.bf16.msra.mxu0 0
      %1419 = vmatpush.bf16.msra.mxu0 %v1407
      %1420 = vmatpush.bf16.msra.mxu0 %v1406
      %1421 = vmatpush.bf16.msra.mxu0 %v1405
      %1422 = vmatpush.bf16.msra.mxu0 %v1404
      %1423 = vmatmul.bf16.gmra.mxu0 %v1413
      %v1424 = vpop.f32.mrf.mxu0
      %v1425 = vadd.f32 0.0, %v1424
      %v1426 = vpop.f32.mrf.mxu0
      %v1427 = vadd.f32 0.0, %v1426
      %1428 = vdwg.mxu0
      %v1429 = vld [vmem:[%s5] sm:$0xff]
      %v1430 = vld [vmem:[%s5 + $0x8] sm:$0xff]
      %v1431 = vmul.f32 %v1425, %v1429
      %v1432 = vmul.f32 %v1427, %v1430
      %v1433 = vld [vmem:[%s8] sm:$0xf]
      %v1434 = vld [vmem:[%s8 + $0x4] sm:$0xf]
      %v1435 = vld [vmem:[%s8 + $0x8] sm:$0xf]
      %v1436 = vld [vmem:[%s8 + $0xc] sm:$0xf]
      %v1437 = vpack.c.bf16 %v1427, %v1425
      %v1442 = vunpack.c.l.b16 %v1433
      %v1443 = vunpack.c.l.b16 %v1434
      %v1444 = vunpack.c.l.b16 %v1435
      %v1445 = vunpack.c.l.b16 %v1436
      %v1446 = vpack.c.b16 %v1443, %v1442
      %v1447 = vpack.c.b16 %v1445, %v1444
      %v1451 = vsel %vm1284, %v1437, 0
      %1453 = vmatpush.bf16.msra.mxu0 0
      %1454 = vmatpush.bf16.msra.mxu0 0
      %1455 = vmatpush.bf16.msra.mxu0 0
      %1456 = vmatpush.bf16.msra.mxu0 0
      %1457 = vmatpush.bf16.msra.mxu0 0
      %1458 = vmatpush.bf16.msra.mxu0 0
      %1459 = vmatpush.bf16.msra.mxu0 %v1447
      %1460 = vmatpush.bf16.msra.mxu0 %v1446
      %1461 = vmatmul.bf16.gmra.mxu0 %v1451
      %v1462 = vpop.f32.mrf.mxu0
      %v1463 = vadd.f32 0.0, %v1462
      %v1464 = vpop.f32.mrf.mxu0
      %v1465 = vadd.f32 0.0, %v1464
      %1466 = vdwg.mxu0
      %1469 = vrot.lane.b32.xlu0 %v1429, 96
      %v1470 = vpop.permute.xlu0 %1469
      %1471 = vrot.lane.b32.xlu0 %v1430, 96
      %v1472 = vpop.permute.xlu0 %1471
      %v1475 = vmul.f32 %v1463, %v1470
      %v1476 = vmul.f32 %v1465, %v1472
      %v1477 = vadd.f32 %v1431, %v1475
      %v1478 = vadd.f32 %v1432, %v1476
      %v1479 = vld [vmem:[%s1] sm:$0xff]
      %v1480 = vld [vmem:[%s1 + $0x8] sm:$0xff]
      %v1481 = vld [vmem:[%s1 + $0x10] sm:$0xff]
      %v1482 = vld [vmem:[%s1 + $0x18] sm:$0xff]
      %v1483 = vld [vmem:[%s736] sm:$0xf]
      %v1484 = vld [vmem:[%s736 + $0x4] sm:$0xf]
      %v1485 = vld [vmem:[%s736 + $0x8] sm:$0xf]
      %v1486 = vld [vmem:[%s736 + $0xc] sm:$0xf]
      %v1487 = vpack.c.bf16 %v1480, %v1479
      %v1488 = vpack.c.bf16 %v1482, %v1481
      %v1493 = vunpack.c.l.b16 %v1483
      %v1494 = vunpack.c.l.b16 %v1484
      %v1495 = vunpack.c.l.b16 %v1485
      %v1496 = vunpack.c.l.b16 %v1486
      %v1497 = vpack.c.b16 %v1494, %v1493
      %v1498 = vpack.c.b16 %v1496, %v1495
      %v1502 = vsel %vm1284, %v1487, 0
      %v1505 = vsel %vm1284, %v1488, 0
      %1507 = vmatpush.bf16.msra.mxu0 0
      %1508 = vmatpush.bf16.msra.mxu0 0
      %1509 = vmatpush.bf16.msra.mxu0 0
      %1510 = vmatpush.bf16.msra.mxu0 0
      %1511 = vmatpush.bf16.msra.mxu0 0
      %1512 = vmatpush.bf16.msra.mxu0 0
      %1513 = vmatpush.bf16.msra.mxu0 %v1498
      %1514 = vmatpush.bf16.msra.mxu0 %v1497
      %1515 = vmatmul.bf16.gmra.mxu0 %v1502
      %v1516 = vpop.f32.mrf.mxu0
      %v1517 = vadd.f32 0.0, %v1516
      %v1518 = vpop.f32.mrf.mxu0
      %v1519 = vadd.f32 0.0, %v1518
      %1520 = vmatmul.bf16.gmra.mxu0 %v1505
      %v1521 = vpop.f32.mrf.mxu0
      %v1522 = vadd.f32 0.0, %v1521
      %v1523 = vpop.f32.mrf.mxu0
      %v1524 = vadd.f32 0.0, %v1523
      %1525 = vdwg.mxu0
      %v1526 = vld [vmem:[%s6] sm:$0xff]
      %v1527 = vld [vmem:[%s6 + $0x8] sm:$0xff]
      %v1528 = vld [vmem:[%s6 + $0x10] sm:$0xff]
      %v1529 = vld [vmem:[%s6 + $0x18] sm:$0xff]
      %v1530 = vmul.f32 %v1517, %v1526
      %v1531 = vmul.f32 %v1519, %v1527
      %v1532 = vmul.f32 %v1522, %v1528
      %v1533 = vmul.f32 %v1524, %v1529
      %v1534 = vld [vmem:[%s9] sm:$0xf]
      %v1535 = vld [vmem:[%s9 + $0x4] sm:$0xf]
      %v1536 = vld [vmem:[%s9 + $0x8] sm:$0xf]
      %v1537 = vld [vmem:[%s9 + $0xc] sm:$0xf]
      %v1538 = vld [vmem:[%s9 + $0x10] sm:$0xf]
      %v1539 = vld [vmem:[%s9 + $0x14] sm:$0xf]
      %v1540 = vld [vmem:[%s9 + $0x18] sm:$0xf]
      %v1541 = vld [vmem:[%s9 + $0x1c] sm:$0xf]
      %v1542 = vpack.c.bf16 %v1519, %v1517
      %v1543 = vpack.c.bf16 %v1524, %v1522
      %v1552 = vunpack.c.l.b16 %v1534
      %v1553 = vunpack.c.l.b16 %v1535
      %v1554 = vunpack.c.l.b16 %v1536
      %v1555 = vunpack.c.l.b16 %v1537
      %v1556 = vunpack.c.l.b16 %v1538
      %v1557 = vunpack.c.l.b16 %v1539
      %v1558 = vunpack.c.l.b16 %v1540
      %v1559 = vunpack.c.l.b16 %v1541
      %v1560 = vpack.c.b16 %v1553, %v1552
      %v1561 = vpack.c.b16 %v1555, %v1554
      %v1562 = vpack.c.b16 %v1557, %v1556
      %v1563 = vpack.c.b16 %v1559, %v1558
      %v1569 = vsel %vm767, %v1542, 0
      %v1572 = vsel %vm767, %v1543, 0
      %1574 = vmatpush.bf16.msra.mxu0 0
      %1575 = vmatpush.bf16.msra.mxu0 0
      %1576 = vmatpush.bf16.msra.mxu0 0
      %1577 = vmatpush.bf16.msra.mxu0 0
      %1578 = vmatpush.bf16.msra.mxu0 %v1563
      %1579 = vmatpush.bf16.msra.mxu0 %v1562
      %1580 = vmatpush.bf16.msra.mxu0 %v1561
      %1581 = vmatpush.bf16.msra.mxu0 %v1560
      %1582 = vmatmul.bf16.gmra.mxu0 %v1569
      %v1583 = vpop.f32.mrf.mxu0
      %v1584 = vadd.f32 0.0, %v1583
      %v1585 = vpop.f32.mrf.mxu0
      %v1586 = vadd.f32 0.0, %v1585
      %1587 = vmatmul.bf16.gmra.mxu0 %v1572
      %v1588 = vpop.f32.mrf.mxu0
      %v1589 = vadd.f32 0.0, %v1588
      %v1590 = vpop.f32.mrf.mxu0
      %v1591 = vadd.f32 0.0, %v1590
      %1592 = vdwg.mxu0
      %1597 = vrot.lane.b32.xlu0 %v1526, 64
      %v1598 = vpop.permute.xlu0 %1597
      %1599 = vrot.lane.b32.xlu0 %v1527, 64
      %v1600 = vpop.permute.xlu0 %1599
      %1601 = vrot.lane.b32.xlu0 %v1528, 64
      %v1602 = vpop.permute.xlu0 %1601
      %1603 = vrot.lane.b32.xlu0 %v1529, 64
      %v1604 = vpop.permute.xlu0 %1603
      %v1609 = vmul.f32 %v1584, %v1598
      %v1610 = vmul.f32 %v1586, %v1600
      %v1611 = vmul.f32 %v1589, %v1602
      %v1612 = vmul.f32 %v1591, %v1604
      %v1613 = vadd.f32 %v1530, %v1609
      %v1614 = vadd.f32 %v1531, %v1610
      %v1615 = vadd.f32 %v1532, %v1611
      %v1616 = vadd.f32 %v1533, %v1612
      %v1617 = vld [vmem:[%s3] sm:$0xff]
      %v1618 = vld [vmem:[%s3 + $0x8] sm:$0xff]
      %v1620 = vsel %vm957, %v1477, 0
      %v1623 = vsel %vm957, %v1478, 0
      %v1626 = vsel %vm957, %v1613, 0
      %v1629 = vsel %vm957, %v1614, 0
      %v1632 = vsel %vm957, %v1615, 0
      %v1635 = vsel %vm957, %v1616, 0
      %1637 = vmatpush.xpose.msra.mxu0 0.0
      %1638 = vmatpush.xpose.msra.mxu0 0.0
      %1639 = vmatpush.xpose.msra.mxu0 0.0
      %1640 = vmatpush.xpose.msra.mxu0 0.0
      %1641 = vmatpush.xpose.msra.mxu0 0.0
      %1642 = vmatpush.xpose.msra.mxu0 0.0
      %1643 = vmatpush.xpose.msra.mxu0 0.0
      %1644 = vmatpush.xpose.msra.mxu0 0.0
      %1645 = vmatpush.xpose.msra.mxu0 0.0
      %1646 = vmatpush.xpose.msra.mxu0 0.0
      %1647 = vmatpush.xpose.msra.mxu0 0.0
      %1648 = vmatpush.xpose.msra.mxu0 0.0
      %1649 = vmatpush.xpose.msra.mxu0 %v1635
      %1650 = vmatpush.xpose.msra.mxu0 %v1632
      %1651 = vmatpush.xpose.msra.mxu0 %v1629
      %1652 = vmatpush.xpose.msra.mxu0 %v1626
      %1653 = vmatmul.f32.gmra.mxu0 %v1620
      %v1654 = vpop.f32.mrf.mxu0
      %v1655 = vadd.f32 %v1617, %v1654
      %1656 = vmatmul.f32.gmra.mxu0 %v1623
      %v1657 = vpop.f32.mrf.mxu0
      %v1658 = vadd.f32 %v1618, %v1657
      %1659 = vdwg.mxu0
      %v1660 = vsel %vm1284, %v1655, -inf
      %1661 = vmax.xlane.f32.xlu0 %v1660
      %v1662 = vpop.xlane.xlu0 %1661
      %v1663 = vsel %vm1284, %v1658, -inf
      %1664 = vmax.xlane.f32.xlu0 %v1663
      %v1665 = vpop.xlane.xlu0 %1664
      %v1666 = vsub.f32 %v1655, %v1662
      %v1667 = vsub.f32 %v1658, %v1665
      %v1668 = vmul.f32 %v1666, 1.442695
      %v1669 = vpow.pop %v1668
      %v1670 = vmul.f32 %v1667, 1.442695
      %v1671 = vpow.pop %v1670
      %v1672 = vsel %vm1284, %v1669, 0.0
      %1673 = vadd.xlane.f32.xlu0 %v1672
      %v1674 = vpop.xlane.xlu0 %1673
      %v1675 = vsel %vm1284, %v1671, 0.0
      %1676 = vadd.xlane.f32.xlu0 %v1675
      %v1677 = vpop.xlane.xlu0 %1676
      %v1678 = vpack.c.bf16 %v1671, %v1669
      %v1679 = vpack.c.bf16 %v1614, %v1613
      %v1680 = vpack.c.bf16 %v1616, %v1615
      %1683 = vrot.lane.b32.xlu0 %v1679, 96
      %v1684 = vpop.permute.xlu0 %1683
      %1685 = vrot.lane.b32.xlu0 %v1680, 96
      %v1686 = vpop.permute.xlu0 %1685
      %v1690 = vsel %vm1284, %v1678, 0
      %1692 = vmatpush.bf16.msra.mxu0 0
      %1693 = vmatpush.bf16.msra.mxu0 0
      %1694 = vmatpush.bf16.msra.mxu0 0
      %1695 = vmatpush.bf16.msra.mxu0 0
      %1696 = vmatpush.bf16.msra.mxu0 0
      %1697 = vmatpush.bf16.msra.mxu0 0
      %1698 = vmatpush.bf16.msra.mxu0 %v1686
      %1699 = vmatpush.bf16.msra.mxu0 %v1684
      %1700 = vmatmul.bf16.gmra.mxu0 %v1690
      %v1701 = vpop.f32.mrf.mxu0
      %v1702 = vadd.f32 0.0, %v1701
      %v1703 = vpop.f32.mrf.mxu0
      %v1704 = vadd.f32 0.0, %v1703
      %1705 = vdwg.mxu0
      %v1706 = vrcp.pop %v1674
      %v1707 = vrcp.pop %v1677
      %v1708 = vmul.f32 %v1702, %v1706
      %v1709 = vmul.f32 %v1704, %v1707
      %1710 = vrot.lane.b32.xlu0 %v1477, 112
      %v1711 = vpop.permute.xlu0 %1710
      %1712 = vrot.lane.b32.xlu0 %v1478, 112
      %v1713 = vpop.permute.xlu0 %1712
      %1714 = vrot.lane.b32.xlu0 %v1613, 112
      %v1715 = vpop.permute.xlu0 %1714
      %1716 = vrot.lane.b32.xlu0 %v1614, 112
      %v1717 = vpop.permute.xlu0 %1716
      %1718 = vrot.lane.b32.xlu0 %v1615, 112
      %v1719 = vpop.permute.xlu0 %1718
      %1720 = vrot.lane.b32.xlu0 %v1616, 112
      %v1721 = vpop.permute.xlu0 %1720
      %v1722 = vsel %vm957, %v1711, 0
      %v1724 = vsel %vm957, %v1713, 0
      %v1726 = vsel %vm957, %v1715, 0
      %v1728 = vsel %vm957, %v1717, 0
      %v1730 = vsel %vm957, %v1719, 0
      %v1732 = vsel %vm957, %v1721, 0
      %1734 = vmatpush.xpose.msra.mxu0 0.0
      %1735 = vmatpush.xpose.msra.mxu0 0.0
      %1736 = vmatpush.xpose.msra.mxu0 0.0
      %1737 = vmatpush.xpose.msra.mxu0 0.0
      %1738 = vmatpush.xpose.msra.mxu0 0.0
      %1739 = vmatpush.xpose.msra.mxu0 0.0
      %1740 = vmatpush.xpose.msra.mxu0 0.0
      %1741 = vmatpush.xpose.msra.mxu0 0.0
      %1742 = vmatpush.xpose.msra.mxu0 0.0
      %1743 = vmatpush.xpose.msra.mxu0 0.0
      %1744 = vmatpush.xpose.msra.mxu0 0.0
      %1745 = vmatpush.xpose.msra.mxu0 0.0
      %1746 = vmatpush.xpose.msra.mxu0 %v1732
      %1747 = vmatpush.xpose.msra.mxu0 %v1730
      %1748 = vmatpush.xpose.msra.mxu0 %v1728
      %1749 = vmatpush.xpose.msra.mxu0 %v1726
      %1750 = vmatmul.f32.gmra.mxu0 %v1722
      %v1751 = vpop.f32.mrf.mxu0
      %v1752 = vadd.f32 %v1617, %v1751
      %1753 = vmatmul.f32.gmra.mxu0 %v1724
      %v1754 = vpop.f32.mrf.mxu0
      %v1755 = vadd.f32 %v1618, %v1754
      %1756 = vdwg.mxu0
      %v1757 = vsel %vm1284, %v1752, -inf
      %1758 = vmax.xlane.f32.xlu0 %v1757
      %v1759 = vpop.xlane.xlu0 %1758
      %v1760 = vsel %vm1284, %v1755, -inf
      %1761 = vmax.xlane.f32.xlu0 %v1760
      %v1762 = vpop.xlane.xlu0 %1761
      %v1763 = vsub.f32 %v1752, %v1759
      %v1764 = vsub.f32 %v1755, %v1762
      %v1765 = vmul.f32 %v1763, 1.442695
      %v1766 = vpow.pop %v1765
      %v1767 = vmul.f32 %v1764, 1.442695
      %v1768 = vpow.pop %v1767
      %v1769 = vsel %vm1284, %v1766, 0.0
      %1770 = vadd.xlane.f32.xlu0 %v1769
      %v1771 = vpop.xlane.xlu0 %1770
      %v1772 = vsel %vm1284, %v1768, 0.0
      %1773 = vadd.xlane.f32.xlu0 %v1772
      %v1774 = vpop.xlane.xlu0 %1773
      %v1775 = vpack.c.bf16 %v1768, %v1766
      %1776 = vrot.lane.b32.xlu0 %v1679, 80
      %v1777 = vpop.permute.xlu0 %1776
      %1778 = vrot.lane.b32.xlu0 %v1680, 80
      %v1779 = vpop.permute.xlu0 %1778
      %v1783 = vsel %vm1284, %v1775, 0
      %1785 = vmatpush.bf16.msra.mxu0 0
      %1786 = vmatpush.bf16.msra.mxu0 0
      %1787 = vmatpush.bf16.msra.mxu0 0
      %1788 = vmatpush.bf16.msra.mxu0 0
      %1789 = vmatpush.bf16.msra.mxu0 0
      %1790 = vmatpush.bf16.msra.mxu0 0
      %1791 = vmatpush.bf16.msra.mxu0 %v1779
      %1792 = vmatpush.bf16.msra.mxu0 %v1777
      %1793 = vmatmul.bf16.gmra.mxu0 %v1783
      %v1794 = vpop.f32.mrf.mxu0
      %v1795 = vadd.f32 0.0, %v1794
      %v1796 = vpop.f32.mrf.mxu0
      %v1797 = vadd.f32 0.0, %v1796
      %1798 = vdwg.mxu0
      %v1799 = vrcp.pop %v1771
      %v1800 = vrcp.pop %v1774
      %v1801 = vmul.f32 %v1795, %v1799
      %v1802 = vmul.f32 %v1797, %v1800
      %1805 = vrot.lane.b32.xlu0 %v1801, 16
      %v1806 = vpop.permute.xlu0 %1805
      %1807 = vrot.lane.b32.xlu0 %v1802, 16
      %v1808 = vpop.permute.xlu0 %1807
      %v1811 = vsel %vm957, %v1708, %v1806
      %v1812 = vsel %vm957, %v1709, %v1808
      %v1813 = vld [vmem:[%s741] sm:$0xf]
      %v1814 = vld [vmem:[%s741 + $0x4] sm:$0xf]
      %v1815 = vld [vmem:[%s741 + $0x8] sm:$0xf]
      %v1816 = vld [vmem:[%s741 + $0xc] sm:$0xf]
      %v1817 = vpack.c.bf16 %v1812, %v1811
      %v1822 = vunpack.c.l.b16 %v1813
      %v1823 = vunpack.c.l.b16 %v1814
      %v1824 = vunpack.c.l.b16 %v1815
      %v1825 = vunpack.c.l.b16 %v1816
      %v1826 = vpack.c.b16 %v1823, %v1822
      %v1827 = vpack.c.b16 %v1825, %v1824
      %v1831 = vsel %vm1284, %v1817, 0
      %1833 = vmatpush.bf16.msra.mxu0 0
      %1834 = vmatpush.bf16.msra.mxu0 0
      %1835 = vmatpush.bf16.msra.mxu0 0
      %1836 = vmatpush.bf16.msra.mxu0 0
      %1837 = vmatpush.bf16.msra.mxu0 0
      %1838 = vmatpush.bf16.msra.mxu0 0
      %1839 = vmatpush.bf16.msra.mxu0 %v1827
      %1840 = vmatpush.bf16.msra.mxu0 %v1826
      %1841 = vmatmul.bf16.gmra.mxu0 %v1831
      %v1842 = vpop.f32.mrf.mxu0
      %v1843 = vadd.f32 0.0, %v1842
      %v1844 = vpop.f32.mrf.mxu0
      %v1845 = vadd.f32 0.0, %v1844
      %1846 = vdwg.mxu0
      %v1847 = vadd.f32 %v1340, %v1843
      %v1848 = vadd.f32 %v1341, %v1845
      %v1849 = vmul.f32 %v1847, %v1847
      %v1850 = vmul.f32 %v1848, %v1848
      %v1851 = vsel %vm767, %v1849, 0.0
      %1852 = vadd.xlane.f32.xlu0 %v1851
      %v1853 = vpop.xlane.xlu0 %1852
      %v1854 = vsel %vm767, %v1850, 0.0
      %1855 = vadd.xlane.f32.xlu0 %v1854
      %v1856 = vpop.xlane.xlu0 %1855
      %v1857 = vmul.f32 %v1853, %v780
      %v1858 = vmul.f32 %v1856, %v780
      %v1859 = vadd.f32 %v1857, 1e-05
      %v1860 = vadd.f32 %v1858, 1e-05
      %v1861 = vrsqrt.pop %v1859
      %v1862 = vmul.f32 %v1861, %v1859
      %v1863 = vmul.f32 %v1862, %v1861
      %v1864 = vmul.f32 0.5, %v1863
      %v1865 = vsub.f32 1.5, %v1864
      %v1866 = vmul.f32 %v1861, %v1865
      %vm1867 = vweird.f32 %v1859
      %vm1868 = vweird.f32 %v1861
      %vm1869 = vmor %vm1867, %vm1868
      %v1870 = vsel %vm1869, %v1861, %v1866
      %v1871 = vrsqrt.pop %v1860
      %v1872 = vmul.f32 %v1871, %v1860
      %v1873 = vmul.f32 %v1872, %v1871
      %v1874 = vmul.f32 0.5, %v1873
      %v1875 = vsub.f32 1.5, %v1874
      %v1876 = vmul.f32 %v1871, %v1875
      %vm1877 = vweird.f32 %v1860
      %vm1878 = vweird.f32 %v1871
      %vm1879 = vmor %vm1877, %vm1878
      %v1880 = vsel %vm1879, %v1871, %v1876
      %v1881 = vmul.f32 %v1847, %v1870
      %v1882 = vmul.f32 %v1848, %v1880
      %v1883 = vperm.slane %v764, 2
      %v1884 = vmul.f32 %v1881, %v1883
      %v1885 = vmul.f32 %v1882, %v1883
      %v1886 = vld [vmem:[%s746] sm:$0xff]
      %v1887 = vld [vmem:[%s746 + $0x8] sm:$0xff]
      %v1888 = vld [vmem:[%s746 + $0x10] sm:$0xff]
      %v1889 = vld [vmem:[%s746 + $0x18] sm:$0xff]
      %v1890 = vld [vmem:[%s746 + $0x20] sm:$0xff]
      %v1891 = vld [vmem:[%s746 + $0x28] sm:$0xff]
      %v1892 = vld [vmem:[%s746 + $0x30] sm:$0xff]
      %v1893 = vld [vmem:[%s746 + $0x38] sm:$0xff]
      %v1894 = vpack.c.bf16 %v1885, %v1884
      %v1903 = vunpack.c.l.b16 %v1886
      %v1904 = vunpack.c.h.b16 %v1886
      %v1905 = vunpack.c.l.b16 %v1887
      %v1906 = vunpack.c.h.b16 %v1887
      %v1907 = vunpack.c.l.b16 %v1888
      %v1908 = vunpack.c.h.b16 %v1888
      %v1909 = vunpack.c.l.b16 %v1889
      %v1910 = vunpack.c.h.b16 %v1889
      %v1911 = vunpack.c.l.b16 %v1890
      %v1912 = vunpack.c.h.b16 %v1890
      %v1913 = vunpack.c.l.b16 %v1891
      %v1914 = vunpack.c.h.b16 %v1891
      %v1915 = vunpack.c.l.b16 %v1892
      %v1916 = vunpack.c.h.b16 %v1892
      %v1917 = vunpack.c.l.b16 %v1893
      %v1918 = vunpack.c.h.b16 %v1893
      %v1919 = vpack.c.b16 %v1905, %v1903
      %v1920 = vpack.c.b16 %v1906, %v1904
      %v1921 = vpack.c.b16 %v1909, %v1907
      %v1922 = vpack.c.b16 %v1910, %v1908
      %v1923 = vpack.c.b16 %v1913, %v1911
      %v1924 = vpack.c.b16 %v1914, %v1912
      %v1925 = vpack.c.b16 %v1917, %v1915
      %v1926 = vpack.c.b16 %v1918, %v1916
      %v1936 = vsel %vm767, %v1894, 0
      %1938 = vmatpush.bf16.msra.mxu0 0
      %1939 = vmatpush.bf16.msra.mxu0 0
      %1940 = vmatpush.bf16.msra.mxu0 0
      %1941 = vmatpush.bf16.msra.mxu0 0
      %1942 = vmatpush.bf16.msra.mxu0 %v1925
      %1943 = vmatpush.bf16.msra.mxu0 %v1923
      %1944 = vmatpush.bf16.msra.mxu0 %v1921
      %1945 = vmatpush.bf16.msra.mxu0 %v1919
      %1946 = vmatmul.bf16.gmra.mxu0 %v1936
      %v1947 = vpop.f32.mrf.mxu0
      %v1948 = vadd.f32 0.0, %v1947
      %v1949 = vpop.f32.mrf.mxu0
      %v1950 = vadd.f32 0.0, %v1949
      %1951 = vdwg.mxu0
      %1952 = vmatpush.bf16.msra.mxu0 0
      %1953 = vmatpush.bf16.msra.mxu0 0
      %1954 = vmatpush.bf16.msra.mxu0 0
      %1955 = vmatpush.bf16.msra.mxu0 0
      %1956 = vmatpush.bf16.msra.mxu0 %v1926
      %1957 = vmatpush.bf16.msra.mxu0 %v1924
      %1958 = vmatpush.bf16.msra.mxu0 %v1922
      %1959 = vmatpush.bf16.msra.mxu0 %v1920
      %1960 = vmatmul.bf16.gmra.mxu0 %v1936
      %v1961 = vpop.f32.mrf.mxu0
      %v1962 = vadd.f32 0.0, %v1961
      %v1963 = vpop.f32.mrf.mxu0
      %v1964 = vadd.f32 0.0, %v1963
      %1965 = vdwg.mxu0
      %v1966 = vxor.u32 %v1948, 2147483648
      %v1967 = vxor.u32 %v1950, 2147483648
      %v1968 = vmul.f32 %v1966, 1.442695
      %v1969 = vpow.pop %v1968
      %v1970 = vmul.f32 %v1967, 1.442695
      %v1971 = vpow.pop %v1970
      %v1972 = vadd.f32 %v1969, 1.0
      %v1973 = vadd.f32 %v1971, 1.0
      %v1974 = vrcp.pop %v1972
      %v1975 = vmul.f32 %v1972, %v1974
      %v1976 = vsub.f32 1.0, %v1975
      %v1977 = vmul.f32 %v1974, %v1976
      %v1978 = vadd.f32 %v1974, %v1977
      %vm1979 = vweird.f32 %v1972
      %vm1980 = vweird.f32 %v1974
      %vm1981 = vmor %vm1979, %vm1980
      %v1982 = vsel %vm1981, %v1974, %v1978
      %v1983 = vand.u32 2147483647, %v1972
      %vm1984 = vcmp.eq.f32.partialorder %v1983, 8.507059e+37
      %v1985 = vand.u32 %v1972, 2147483648
      %v1986 = vor.u32 1.1754944e-38, %v1985
      %v1987 = vsel %vm1984, %v1986, %v1982
      %v1988 = vmul.f32 1.0, %v1987
      %v1989 = vrcp.pop %v1973
      %v1990 = vmul.f32 %v1973, %v1989
      %v1991 = vsub.f32 1.0, %v1990
      %v1992 = vmul.f32 %v1989, %v1991
      %v1993 = vadd.f32 %v1989, %v1992
      %vm1994 = vweird.f32 %v1973
      %vm1995 = vweird.f32 %v1989
      %vm1996 = vmor %vm1994, %vm1995
      %v1997 = vsel %vm1996, %v1989, %v1993
      %v1998 = vand.u32 2147483647, %v1973
      %vm1999 = vcmp.eq.f32.partialorder %v1998, 8.507059e+37
      %v2000 = vand.u32 %v1973, 2147483648
      %v2001 = vor.u32 1.1754944e-38, %v2000
      %v2002 = vsel %vm1999, %v2001, %v1997
      %v2003 = vmul.f32 1.0, %v2002
      %v2004 = vmul.f32 %v1948, %v1988
      %v2005 = vmul.f32 %v1950, %v2003
      %v2006 = vmul.f32 %v2004, %v1962
      %v2007 = vmul.f32 %v2005, %v1964
      %v2008 = vld [vmem:[%s751] sm:$0xf]
      %v2009 = vld [vmem:[%s751 + $0x4] sm:$0xf]
      %v2010 = vld [vmem:[%s751 + $0x8] sm:$0xf]
      %v2011 = vld [vmem:[%s751 + $0xc] sm:$0xf]
      %v2012 = vld [vmem:[%s751 + $0x10] sm:$0xf]
      %v2013 = vld [vmem:[%s751 + $0x14] sm:$0xf]
      %v2014 = vld [vmem:[%s751 + $0x18] sm:$0xf]
      %v2015 = vld [vmem:[%s751 + $0x1c] sm:$0xf]
      %v2016 = vld [vmem:[%s751 + $0x20] sm:$0xf]
      %v2017 = vld [vmem:[%s751 + $0x24] sm:$0xf]
      %v2018 = vld [vmem:[%s751 + $0x28] sm:$0xf]
      %v2019 = vld [vmem:[%s751 + $0x2c] sm:$0xf]
      %v2020 = vld [vmem:[%s751 + $0x30] sm:$0xf]
      %v2021 = vld [vmem:[%s751 + $0x34] sm:$0xf]
      %v2022 = vld [vmem:[%s751 + $0x38] sm:$0xf]
      %v2023 = vld [vmem:[%s751 + $0x3c] sm:$0xf]
      %v2024 = vpack.c.bf16 %v2007, %v2006
      %v2041 = vunpack.c.l.b16 %v2008
      %v2042 = vunpack.c.l.b16 %v2009
      %v2043 = vunpack.c.l.b16 %v2010
      %v2044 = vunpack.c.l.b16 %v2011
      %v2045 = vunpack.c.l.b16 %v2012
      %v2046 = vunpack.c.l.b16 %v2013
      %v2047 = vunpack.c.l.b16 %v2014
      %v2048 = vunpack.c.l.b16 %v2015
      %v2049 = vunpack.c.l.b16 %v2016
      %v2050 = vunpack.c.l.b16 %v2017
      %v2051 = vunpack.c.l.b16 %v2018
      %v2052 = vunpack.c.l.b16 %v2019
      %v2053 = vunpack.c.l.b16 %v2020
      %v2054 = vunpack.c.l.b16 %v2021
      %v2055 = vunpack.c.l.b16 %v2022
      %v2056 = vunpack.c.l.b16 %v2023
      %v2057 = vpack.c.b16 %v2042, %v2041
      %v2058 = vpack.c.b16 %v2044, %v2043
      %v2059 = vpack.c.b16 %v2046, %v2045
      %v2060 = vpack.c.b16 %v2048, %v2047
      %v2061 = vpack.c.b16 %v2050, %v2049
      %v2062 = vpack.c.b16 %v2052, %v2051
      %v2063 = vpack.c.b16 %v2054, %v2053
      %v2064 = vpack.c.b16 %v2056, %v2055
      %2073 = vmatpush.bf16.msra.mxu0 %v2064
      %2074 = vmatpush.bf16.msra.mxu0 %v2063
      %2075 = vmatpush.bf16.msra.mxu0 %v2062
      %2076 = vmatpush.bf16.msra.mxu0 %v2061
      %2077 = vmatpush.bf16.msra.mxu0 %v2060
      %2078 = vmatpush.bf16.msra.mxu0 %v2059
      %2079 = vmatpush.bf16.msra.mxu0 %v2058
      %2080 = vmatpush.bf16.msra.mxu0 %v2057
      %2081 = vmatmul.bf16.gmra.mxu0 %v2024
      %v2082 = vpop.f32.mrf.mxu0
      %v2083 = vadd.f32 0.0, %v2082
      %v2084 = vpop.f32.mrf.mxu0
      %v2085 = vadd.f32 0.0, %v2084
      %2086 = vdwg.mxu0
      %v2087 = vadd.f32 %v1847, %v2083
      %v2088 = vadd.f32 %v1848, %v2085
      %2089 = vst.msk [vmem:[#allocation2] sm:$0xff] %vm767, %v2087
      %2090 = vst.msk [vmem:[#allocation2 + $0x8] sm:$0xff] %vm767, %v2088
      %p2091 = scmp.eq.s32.totalorder %s31, 1
      // Predicated region
      $region105: #{decoder_forward_pallas.1} parent=99 // pred_check
        %p2092 = pneg %p2091
      $region106: #{decoder_forward_pallas.1} parent=99 // pred_check_branch
        %2094 = sbr.rel (%p2092) target = $region108
      $region107: #{decoder_forward_pallas.1} parent=99 // pred_region
        %v2095 = vld [vmem:[%s10] sm:$0x1]
        %v2096 = vmul.f32 %v2087, %v2087
        %v2097 = vmul.f32 %v2088, %v2088
        %v2098 = vsel %vm767, %v2096, 0.0
        %2099 = vadd.xlane.f32.xlu0 %v2098
        %v2100 = vpop.xlane.xlu0 %2099
        %v2101 = vsel %vm767, %v2097, 0.0
        %2102 = vadd.xlane.f32.xlu0 %v2101
        %v2103 = vpop.xlane.xlu0 %2102
        %v2104 = vmul.f32 %v2100, %v780
        %v2105 = vmul.f32 %v2103, %v780
        %v2106 = vadd.f32 %v2104, 1e-05
        %v2107 = vadd.f32 %v2105, 1e-05
        %v2108 = vrsqrt.pop %v2106
        %v2109 = vmul.f32 %v2108, %v2106
        %v2110 = vmul.f32 %v2109, %v2108
        %v2111 = vmul.f32 0.5, %v2110
        %v2112 = vsub.f32 1.5, %v2111
        %v2113 = vmul.f32 %v2108, %v2112
        %vm2114 = vweird.f32 %v2106
        %vm2115 = vweird.f32 %v2108
        %vm2116 = vmor %vm2114, %vm2115
        %v2117 = vsel %vm2116, %v2108, %v2113
        %v2118 = vrsqrt.pop %v2107
        %v2119 = vmul.f32 %v2118, %v2107
        %v2120 = vmul.f32 %v2119, %v2118
        %v2121 = vmul.f32 0.5, %v2120
        %v2122 = vsub.f32 1.5, %v2121
        %v2123 = vmul.f32 %v2118, %v2122
        %vm2124 = vweird.f32 %v2107
        %vm2125 = vweird.f32 %v2118
        %vm2126 = vmor %vm2124, %vm2125
        %v2127 = vsel %vm2126, %v2118, %v2123
        %v2128 = vmul.f32 %v2087, %v2117
        %v2129 = vmul.f32 %v2088, %v2127
        %v2131 = vperm.slane %v2095, 0
        %v2133 = vmul.f32 %v2128, %v2131
        %v2134 = vmul.f32 %v2129, %v2131
        %v2135 = vld [vmem:[%s11] sm:$0xf]
        %v2136 = vld [vmem:[%s11 + $0x4] sm:$0xf]
        %v2137 = vld [vmem:[%s11 + $0x8] sm:$0xf]
        %v2138 = vld [vmem:[%s11 + $0xc] sm:$0xf]
        %v2139 = vld [vmem:[%s11 + $0x10] sm:$0xf]
        %v2140 = vld [vmem:[%s11 + $0x14] sm:$0xf]
        %v2141 = vld [vmem:[%s11 + $0x18] sm:$0xf]
        %v2142 = vld [vmem:[%s11 + $0x1c] sm:$0xf]
        %v2143 = vpack.c.bf16 %v2134, %v2133
        %v2152 = vunpack.c.l.b16 %v2135
        %v2153 = vunpack.c.l.b16 %v2136
        %v2154 = vunpack.c.l.b16 %v2137
        %v2155 = vunpack.c.l.b16 %v2138
        %v2156 = vunpack.c.l.b16 %v2139
        %v2157 = vunpack.c.l.b16 %v2140
        %v2158 = vunpack.c.l.b16 %v2141
        %v2159 = vunpack.c.l.b16 %v2142
        %v2160 = vpack.c.b16 %v2153, %v2152
        %v2161 = vpack.c.b16 %v2155, %v2154
        %v2162 = vpack.c.b16 %v2157, %v2156
        %v2163 = vpack.c.b16 %v2159, %v2158
        %v2169 = vsel %vm767, %v2143, 0
        %2171 = vmatpush.bf16.msra.mxu0 0
        %2172 = vmatpush.bf16.msra.mxu0 0
        %2173 = vmatpush.bf16.msra.mxu0 0
        %2174 = vmatpush.bf16.msra.mxu0 0
        %2175 = vmatpush.bf16.msra.mxu0 %v2163
        %2176 = vmatpush.bf16.msra.mxu0 %v2162
        %2177 = vmatpush.bf16.msra.mxu0 %v2161
        %2178 = vmatpush.bf16.msra.mxu0 %v2160
        %2179 = vmatmul.bf16.gmra.mxu0 %v2169
        %v2180 = vpop.f32.mrf.mxu0
        %v2181 = vadd.f32 0.0, %v2180
        %v2182 = vpop.f32.mrf.mxu0
        %v2183 = vadd.f32 0.0, %v2182
        %2184 = vdwg.mxu0
        %2185 = vst [vmem:[%s20] sm:$0xff] %v2181
        %2186 = vst [vmem:[%s20 + $0x8] sm:$0xff] %v2183
      $region108: #{decoder_forward_pallas.1} parent=99 // pred_fallthru
        _
      // Predicated region
      $region109: #{decoder_forward_pallas.1} parent=99 // pred_check
        %p2187 = pneg %p504
      $region110: #{decoder_forward_pallas.1} parent=99 // pred_check_branch
        %2189 = sbr.rel (%p2187) target = $region112
      $region111: #{decoder_forward_pallas.1} parent=99 // pred_region
        _
      $region112: #{decoder_forward_pallas.1} parent=99 // pred_fallthru
        _
      // Predicated region
      $region113: #{decoder_forward_pallas.1} parent=99 // pred_check
        %p2190 = pneg %p504
      $region114: #{decoder_forward_pallas.1} parent=99 // pred_check_branch
        %2192 = sbr.rel (%p2190) target = $region116
      $region115: #{decoder_forward_pallas.1} parent=99 // pred_region
        _
      $region116: #{decoder_forward_pallas.1} parent=99 // pred_fallthru
        _
    $region100: #{decoder_forward_pallas.1} parent=5 // pred_fallthru
      _
    %p2193 = scmp.le.s32.totalorder 2, %s26
    // Predicated region
    $region117: #{decoder_forward_pallas.1} parent=5 // pred_check
      %p2194 = pneg %p2193
    $region118: #{decoder_forward_pallas.1} parent=5 // pred_check_branch
      %2196 = sbr.rel (%p2194) target = $region120
    $region119: #{decoder_forward_pallas.1} parent=5 // pred_region
      %s2197 = ssub.s32 %s26, 2
    $region120: #{decoder_forward_pallas.1} parent=5 // pred_fallthru
      _
  $region6: #{decoder_forward_pallas.1} parent=0 // loop_footer
    %s30 = sadd.s32 1, %s26
  $region7: #{decoder_forward_pallas.1} parent=0 // loop_footer_branch
    %25 = sbr.rel target = $region3
  $region8: #{decoder_forward_pallas.1} parent=0 // loop_exit
    _

</llo_original>
